<compile_context>
chip_gen: v7x
topology: tpu7x:2x2x1
jax: 0.10.0
libtpu: 0.0.40
codegen_flags: <defaults>
</compile_context>

<pallas_src>
import functools

import jax
import jax.numpy as jnp
from jax.experimental import pallas as pl
from jax.experimental.pallas import tpu as pltpu


def _vmem_spec():
    return pl.BlockSpec(memory_space=pltpu.MemorySpace.VMEM)


# ------------------------------ fused kernel ----------------------------------
def lstm_fcn_kernel(x_ref, wih_ref, whh_ref, lb_ref,
                    w1_ref, s1_ref, t1_ref,
                    w2_ref, s2_ref, t2_ref,
                    w3_ref, s3_ref, t3_ref,
                    wlh_ref, wly_ref, bl_ref,
                    o_ref, *, hidden_size, ksizes):
    """Fused LSTM_FCN forward: LSTM branch + conv stack + head in one body."""
    H = hidden_size
    x = x_ref[...]                          # (B, T) float32
    B, T = x.shape
    K1, K2, K3 = ksizes

    # --------------------------- LSTM branch ---------------------------------
    wih = wih_ref[...]                      # (1, 4H)   (input_size = 1)
    whh = whh_ref[...]                      # (H, 4H)
    b = lb_ref[...]                         # (1, 4H)   (b_ih + b_hh)

    # Hoisted input contribution for all timesteps, laid out (T, B, 4H) so the
    # per-step read gx[t] is a contiguous tile (pure leading-axis offset).
    xt = x.T                                # (T, B) one-time transpose
    gx = xt[:, :, None] * wih[None, :, :] + b[None, :, :]   # (T, B, 4H)

    h = jnp.zeros((B, H), jnp.float32)
    c = jnp.zeros((B, H), jnp.float32)
    # T is small & static -> fully unrolled; per-step critical path is only
    # h @ w_hh -> full-width sigmoid/tanh -> elementwise state update.
    # TODO(synk): hold w_hh MXU-resident across steps (matmul_push_rhs /
    # matmul_acc_lhs / matmul_pop) once those primitives are validated here.
    for t in range(T):
        gates = gx[t] + jnp.dot(h, whh, preferred_element_type=jnp.float32)
        sg = jax.nn.sigmoid(gates)          # one EUP pass over the full (B, 4H)
        th = jnp.tanh(gates)                # one EUP pass over the full (B, 4H)
        c = sg[:, H:2 * H] * c + sg[:, 0:H] * th[:, 2 * H:3 * H]
        h = sg[:, 3 * H:4 * H] * jnp.tanh(c)
    # Dropout(p=0.8) on h is identity in eval mode.

    # ---------------------------- FCN branch ---------------------------------
    # Conv1 (Cin=1): three time-shifted VPU broadcast multiply-adds.
    w1 = w1_ref[...]                        # (K1, 1, C1)
    v = x[:, :, None]                       # (B, T, 1) channels-last
    z1 = jnp.zeros((B, 1, 1), jnp.float32)
    vp = jnp.concatenate([z1, v, z1], axis=1)                # pad=1 in time
    acc = vp[:, 0:T, :] * w1[0][None, :, :]
    for k in range(1, K1):
        acc = acc + vp[:, k:k + T, :] * w1[k][None, :, :]    # (B, T, C1)
    y = jnp.maximum(acc * s1_ref[...] + t1_ref[...], 0.0)    # BN(eval)+ReLU

    # Conv2 / Conv3: K accumulated (B*T, Cin) @ (Cin, Cout) MXU dots.
    def conv_bn_relu(v, w_ref, scale_ref, shift_ref, K):
        Bv, Tv, Cin = v.shape
        w = w_ref[...]                      # (K, Cin, Cout)
        Cout = w.shape[2]
        zz = jnp.zeros((Bv, 1, Cin), jnp.float32)
        vpad = jnp.concatenate([zz, v, zz], axis=1)          # (B, T+2, Cin)
        a = jnp.dot(vpad[:, 0:Tv, :].reshape(Bv * Tv, Cin), w[0],
                    preferred_element_type=jnp.float32)
        for k in range(1, K):
            a = a + jnp.dot(vpad[:, k:k + Tv, :].reshape(Bv * Tv, Cin), w[k],
                            preferred_element_type=jnp.float32)
        # Folded conv-bias + BatchNorm (eval) + ReLU.
        a = jnp.maximum(a * scale_ref[...] + shift_ref[...], 0.0)
        return a.reshape(Bv, Tv, Cout)

    y = conv_bn_relu(y, w2_ref, s2_ref, t2_ref, K2)          # (B, T, C2)
    y = conv_bn_relu(y, w3_ref, s3_ref, t3_ref, K3)          # (B, T, C3)
    pooled = jnp.mean(y, axis=1)                             # global avg pool

    # ----------------------- fused head: one final write ---------------------
    o_ref[...] = (jnp.dot(h, wlh_ref[...], preferred_element_type=jnp.float32)
                  + jnp.dot(pooled, wly_ref[...],
                            preferred_element_type=jnp.float32)
                  + bl_ref[...])


# ------------------------------- forward glue ----------------------------------
def lstm_fcn_forward(x, params, hidden_size, ksizes=(3, 3, 3)):
    B, T = x.shape
    NC = params["bl"].shape[1]
    return pl.pallas_call(
        functools.partial(lstm_fcn_kernel, hidden_size=hidden_size,
                          ksizes=ksizes),
        out_shape=jax.ShapeDtypeStruct((B, NC), jnp.float32),
        in_specs=[_vmem_spec()] * 16,
        out_specs=_vmem_spec(),
        compiler_params=pltpu.CompilerParams(
            vmem_limit_bytes=32 * 1024 * 1024),
    )(x,
      params["w_ih_t"], params["w_hh_t"], params["lstm_b"],
      params["w1"], params["s1"], params["t1"],
      params["w2"], params["s2"], params["t2"],
      params["w3"], params["s3"], params["t3"],
      params["wl_h"], params["wl_y"], params["bl"])


# ------------------------------ pure-JAX reference ------------------------------
def ref_forward(x, params, H, ksizes=(3, 3, 3)):
    B, T = x.shape
    h = jnp.zeros((B, H), jnp.float32)
    c = jnp.zeros((B, H), jnp.float32)
    for t in range(T):
        gates = (x[:, t:t + 1] * params["w_ih_t"] + h @ params["w_hh_t"]
                 + params["lstm_b"])
        i = jax.nn.sigmoid(gates[:, :H])
        f = jax.nn.sigmoid(gates[:, H:2 * H])
        g = jnp.tanh(gates[:, 2 * H:3 * H])
        o = jax.nn.sigmoid(gates[:, 3 * H:])
        c = f * c + i * g
        h = o * jnp.tanh(c)
    y = x[:, :, None]
    for name, K in zip(("1", "2", "3"), ksizes):
        w = params["w" + name]                       # (K, Cin, Cout)
        yp = jnp.pad(y, ((0, 0), (1, 1), (0, 0)))
        Tout = yp.shape[1] - K + 1
        acc = sum(jnp.einsum("btc,cd->btd", yp[:, k:k + Tout, :], w[k])
                  for k in range(K))
        y = jnp.maximum(acc * params["s" + name] + params["t" + name], 0.0)
    pooled = y.mean(axis=1)
    return h @ params["wl_h"] + pooled @ params["wl_y"] + params["bl"]


# -------------------------------- parameter init --------------------------------
def init_params(key, hidden_size, c1, c2, c3, k1, k2, k3, num_class):
    ks = jax.random.split(key, 12)

    def uni(k, shape, bound):
        return jax.random.uniform(k, shape, jnp.float32, -bound, bound)

    H = hidden_size
    stdv = 1.0 / jnp.sqrt(H)
    w_ih_t = uni(ks[0], (1, 4 * H), stdv)           # LSTM weight_ih^T (input=1)
    w_hh_t = uni(ks[1], (H, 4 * H), stdv)           # LSTM weight_hh^T
    lstm_b = uni(ks[2], (1, 4 * H), stdv) + uni(ks[3], (1, 4 * H), stdv)  # b_ih+b_hh

    eps = 1e-5
    bn_scale = 1.0 / jnp.sqrt(1.0 + eps)            # gamma=1, running_var=1

    def conv_params(kw, kb, K, cin, cout):
        bound_w = jnp.sqrt(6.0 / (cin * K))         # kaiming_uniform
        w = uni(kw, (K, cin, cout), bound_w)        # (K, Cin, Cout)
        b = uni(kb, (1, cout), 1.0 / jnp.sqrt(cin * K))
        scale = jnp.full((1, cout), bn_scale, jnp.float32)
        shift = b * bn_scale                        # beta=0, running_mean=0
        return w, scale, shift

    w1, s1, t1 = conv_params(ks[4], ks[5], k1, 1, c1)
    w2, s2, t2 = conv_params(ks[6], ks[7], k2, c1, c2)
    w3, s3, t3 = conv_params(ks[8], ks[9], k3, c2, c3)

    fan = c3 + H
    bound_l = 1.0 / jnp.sqrt(fan)
    W_lin = uni(ks[10], (num_class, H + c3), bound_l)   # torch Linear layout
    bl = uni(ks[11], (1, num_class), bound_l)
    wl_h = W_lin[:, :H].T                               # (H, NC)
    wl_y = W_lin[:, H:].T                               # (C3, NC)

    return dict(w_ih_t=w_ih_t, w_hh_t=w_hh_t, lstm_b=lstm_b,
                w1=w1, s1=s1, t1=t1, w2=w2, s2=s2, t2=t2, w3=w3, s3=s3, t3=t3,
                wl_h=wl_h, wl_y=wl_y, bl=bl)


if __name__ == "__main__":
    # Hyper-params implied by forward(): in_channel=1 (unsqueeze(1)),
    # channel_3=128 (Linear(128 + hidden_size)), kernel sizes=3 / padding=1.
    B, T = 8, 16
    HIDDEN = 32
    C1, C2, C3 = 16, 32, 128
    K1 = K2 = K3 = 3
    NUM_CLASS = 6

    key = jax.random.PRNGKey(0)
    k_x, k_p = jax.random.split(key)
    x = jax.random.normal(k_x, (B, T), jnp.float32)
    params = init_params(k_p, HIDDEN, C1, C2, C3, K1, K2, K3, NUM_CLASS)

    out = jax.block_until_ready(
        lstm_fcn_forward(x, params, HIDDEN, (K1, K2, K3)))
    ref = jax.block_until_ready(ref_forward(x, params, HIDDEN, (K1, K2, K3)))

    assert out.shape == (B, NUM_CLASS)
    assert jnp.allclose(out, ref, atol=1e-4, rtol=1e-4), "mismatch vs reference"

    print("KERNEL_OK")
</pallas_src>

<mosaic_0001>
module attributes {stable_mosaic.version = 11 : i64} {
  func.func @lstm_fcn_kernel(%arg0: memref<8x16xf32, #tpu.memory_space<vmem>>, %arg1: memref<1x128xf32, #tpu.memory_space<vmem>>, %arg2: memref<32x128xf32, #tpu.memory_space<vmem>>, %arg3: memref<1x128xf32, #tpu.memory_space<vmem>>, %arg4: memref<3x1x16xf32, #tpu.memory_space<vmem>>, %arg5: memref<1x16xf32, #tpu.memory_space<vmem>>, %arg6: memref<1x16xf32, #tpu.memory_space<vmem>>, %arg7: memref<3x16x32xf32, #tpu.memory_space<vmem>>, %arg8: memref<1x32xf32, #tpu.memory_space<vmem>>, %arg9: memref<1x32xf32, #tpu.memory_space<vmem>>, %arg10: memref<3x32x128xf32, #tpu.memory_space<vmem>>, %arg11: memref<1x128xf32, #tpu.memory_space<vmem>>, %arg12: memref<1x128xf32, #tpu.memory_space<vmem>>, %arg13: memref<32x6xf32, #tpu.memory_space<vmem>>, %arg14: memref<128x6xf32, #tpu.memory_space<vmem>>, %arg15: memref<1x6xf32, #tpu.memory_space<vmem>>, %arg16: memref<8x6xf32, #tpu.memory_space<vmem>>) attributes {dimension_semantics = [], scalar_prefetch = 0 : i64, scratch_operands = 0 : i64, tpu.core_type = #tpu.core_type<tc>} {
    %c0 = arith.constant 0 : index
    %c0_0 = arith.constant 0 : index
    %0 = vector.load %arg0[%c0, %c0_0] : memref<8x16xf32, #tpu.memory_space<vmem>>, vector<8x16xf32>
    %c0_1 = arith.constant 0 : index
    %c0_2 = arith.constant 0 : index
    %1 = vector.load %arg1[%c0_1, %c0_2] : memref<1x128xf32, #tpu.memory_space<vmem>>, vector<1x128xf32>
    %c0_3 = arith.constant 0 : index
    %c0_4 = arith.constant 0 : index
    %2 = vector.load %arg2[%c0_3, %c0_4] : memref<32x128xf32, #tpu.memory_space<vmem>>, vector<32x128xf32>
    %c0_5 = arith.constant 0 : index
    %c0_6 = arith.constant 0 : index
    %3 = vector.load %arg3[%c0_5, %c0_6] : memref<1x128xf32, #tpu.memory_space<vmem>>, vector<1x128xf32>
    %4 = tpu.transpose %0, [1, 0] : vector<8x16xf32> -> vector<16x8xf32>
    %5 = vector.shape_cast %4 : vector<16x8xf32> to vector<16x8x1xf32>
    %6 = vector.shape_cast %1 : vector<1x128xf32> to vector<1x1x128xf32>
    %7 = vector.broadcast %5 : vector<16x8x1xf32> to vector<16x8x128xf32>
    %8 = vector.broadcast %6 : vector<1x1x128xf32> to vector<16x8x128xf32>
    %9 = arith.mulf %7, %8 : vector<16x8x128xf32>
    %10 = vector.shape_cast %3 : vector<1x128xf32> to vector<1x1x128xf32>
    %11 = vector.broadcast %10 : vector<1x1x128xf32> to vector<16x8x128xf32>
    %12 = arith.addf %9, %11 : vector<16x8x128xf32>
    %cst = arith.constant 0.000000e+00 : f32
    %13 = vector.broadcast %cst : f32 to vector<8x32xf32>
    %cst_7 = arith.constant 0.000000e+00 : f32
    %14 = vector.broadcast %cst_7 : f32 to vector<8x32xf32>
    %15 = vector.extract_strided_slice %12 {offsets = [0, 0, 0], sizes = [1, 8, 128], strides = [1, 1, 1]} : vector<16x8x128xf32> to vector<1x8x128xf32>
    %16 = vector.shape_cast %15 : vector<1x8x128xf32> to vector<8x128xf32>
    %cst_8 = arith.constant dense<0.000000e+00> : vector<8x128xf32>
    %17 = tpu.matmul %13, %2, %cst_8 {dimension_numbers = #tpu.dot_dimension_numbers<[1], [0], [0], [1], [0, 0, 1, 1], [], []>} : vector<8x32xf32>, vector<32x128xf32>, vector<8x128xf32> -> vector<8x128xf32>
    %18 = arith.addf %16, %17 : vector<8x128xf32>
    %19 = arith.negf %18 : vector<8x128xf32>
    %20 = math.exp %19 : vector<8x128xf32>
    %cst_9 = arith.constant 1.000000e+00 : f32
    %21 = vector.broadcast %cst_9 : f32 to vector<8x128xf32>
    %22 = arith.addf %21, %20 : vector<8x128xf32>
    %23 = arith.divf %21, %22 : vector<8x128xf32>
    %24 = math.tanh %18 : vector<8x128xf32>
    %25 = vector.extract_strided_slice %23 {offsets = [0, 32], sizes = [8, 32], strides = [1, 1]} : vector<8x128xf32> to vector<8x32xf32>
    %26 = arith.mulf %25, %14 : vector<8x32xf32>
    %27 = vector.extract_strided_slice %23 {offsets = [0, 0], sizes = [8, 32], strides = [1, 1]} : vector<8x128xf32> to vector<8x32xf32>
    %28 = vector.extract_strided_slice %24 {offsets = [0, 64], sizes = [8, 32], strides = [1, 1]} : vector<8x128xf32> to vector<8x32xf32>
    %29 = arith.mulf %27, %28 : vector<8x32xf32>
    %30 = arith.addf %26, %29 : vector<8x32xf32>
    %31 = vector.extract_strided_slice %23 {offsets = [0, 96], sizes = [8, 32], strides = [1, 1]} : vector<8x128xf32> to vector<8x32xf32>
    %32 = math.tanh %30 : vector<8x32xf32>
    %33 = arith.mulf %31, %32 : vector<8x32xf32>
    %34 = vector.extract_strided_slice %12 {offsets = [1, 0, 0], sizes = [1, 8, 128], strides = [1, 1, 1]} : vector<16x8x128xf32> to vector<1x8x128xf32>
    %35 = vector.shape_cast %34 : vector<1x8x128xf32> to vector<8x128xf32>
    %cst_10 = arith.constant dense<0.000000e+00> : vector<8x128xf32>
    %36 = tpu.matmul %33, %2, %cst_10 {dimension_numbers = #tpu.dot_dimension_numbers<[1], [0], [0], [1], [0, 0, 1, 1], [], []>} : vector<8x32xf32>, vector<32x128xf32>, vector<8x128xf32> -> vector<8x128xf32>
    %37 = arith.addf %35, %36 : vector<8x128xf32>
    %38 = arith.negf %37 : vector<8x128xf32>
    %39 = math.exp %38 : vector<8x128xf32>
    %cst_11 = arith.constant 1.000000e+00 : f32
    %40 = vector.broadcast %cst_11 : f32 to vector<8x128xf32>
    %41 = arith.addf %40, %39 : vector<8x128xf32>
    %42 = arith.divf %40, %41 : vector<8x128xf32>
    %43 = math.tanh %37 : vector<8x128xf32>
    %44 = vector.extract_strided_slice %42 {offsets = [0, 32], sizes = [8, 32], strides = [1, 1]} : vector<8x128xf32> to vector<8x32xf32>
    %45 = arith.mulf %44, %30 : vector<8x32xf32>
    %46 = vector.extract_strided_slice %42 {offsets = [0, 0], sizes = [8, 32], strides = [1, 1]} : vector<8x128xf32> to vector<8x32xf32>
    %47 = vector.extract_strided_slice %43 {offsets = [0, 64], sizes = [8, 32], strides = [1, 1]} : vector<8x128xf32> to vector<8x32xf32>
    %48 = arith.mulf %46, %47 : vector<8x32xf32>
    %49 = arith.addf %45, %48 : vector<8x32xf32>
    %50 = vector.extract_strided_slice %42 {offsets = [0, 96], sizes = [8, 32], strides = [1, 1]} : vector<8x128xf32> to vector<8x32xf32>
    %51 = math.tanh %49 : vector<8x32xf32>
    %52 = arith.mulf %50, %51 : vector<8x32xf32>
    %53 = vector.extract_strided_slice %12 {offsets = [2, 0, 0], sizes = [1, 8, 128], strides = [1, 1, 1]} : vector<16x8x128xf32> to vector<1x8x128xf32>
    %54 = vector.shape_cast %53 : vector<1x8x128xf32> to vector<8x128xf32>
    %cst_12 = arith.constant dense<0.000000e+00> : vector<8x128xf32>
    %55 = tpu.matmul %52, %2, %cst_12 {dimension_numbers = #tpu.dot_dimension_numbers<[1], [0], [0], [1], [0, 0, 1, 1], [], []>} : vector<8x32xf32>, vector<32x128xf32>, vector<8x128xf32> -> vector<8x128xf32>
    %56 = arith.addf %54, %55 : vector<8x128xf32>
    %57 = arith.negf %56 : vector<8x128xf32>
    %58 = math.exp %57 : vector<8x128xf32>
    %cst_13 = arith.constant 1.000000e+00 : f32
    %59 = vector.broadcast %cst_13 : f32 to vector<8x128xf32>
    %60 = arith.addf %59, %58 : vector<8x128xf32>
    %61 = arith.divf %59, %60 : vector<8x128xf32>
    %62 = math.tanh %56 : vector<8x128xf32>
    %63 = vector.extract_strided_slice %61 {offsets = [0, 32], sizes = [8, 32], strides = [1, 1]} : vector<8x128xf32> to vector<8x32xf32>
    %64 = arith.mulf %63, %49 : vector<8x32xf32>
    %65 = vector.extract_strided_slice %61 {offsets = [0, 0], sizes = [8, 32], strides = [1, 1]} : vector<8x128xf32> to vector<8x32xf32>
    %66 = vector.extract_strided_slice %62 {offsets = [0, 64], sizes = [8, 32], strides = [1, 1]} : vector<8x128xf32> to vector<8x32xf32>
    %67 = arith.mulf %65, %66 : vector<8x32xf32>
    %68 = arith.addf %64, %67 : vector<8x32xf32>
    %69 = vector.extract_strided_slice %61 {offsets = [0, 96], sizes = [8, 32], strides = [1, 1]} : vector<8x128xf32> to vector<8x32xf32>
    %70 = math.tanh %68 : vector<8x32xf32>
    %71 = arith.mulf %69, %70 : vector<8x32xf32>
    %72 = vector.extract_strided_slice %12 {offsets = [3, 0, 0], sizes = [1, 8, 128], strides = [1, 1, 1]} : vector<16x8x128xf32> to vector<1x8x128xf32>
    %73 = vector.shape_cast %72 : vector<1x8x128xf32> to vector<8x128xf32>
    %cst_14 = arith.constant dense<0.000000e+00> : vector<8x128xf32>
    %74 = tpu.matmul %71, %2, %cst_14 {dimension_numbers = #tpu.dot_dimension_numbers<[1], [0], [0], [1], [0, 0, 1, 1], [], []>} : vector<8x32xf32>, vector<32x128xf32>, vector<8x128xf32> -> vector<8x128xf32>
    %75 = arith.addf %73, %74 : vector<8x128xf32>
    %76 = arith.negf %75 : vector<8x128xf32>
    %77 = math.exp %76 : vector<8x128xf32>
    %cst_15 = arith.constant 1.000000e+00 : f32
    %78 = vector.broadcast %cst_15 : f32 to vector<8x128xf32>
    %79 = arith.addf %78, %77 : vector<8x128xf32>
    %80 = arith.divf %78, %79 : vector<8x128xf32>
    %81 = math.tanh %75 : vector<8x128xf32>
    %82 = vector.extract_strided_slice %80 {offsets = [0, 32], sizes = [8, 32], strides = [1, 1]} : vector<8x128xf32> to vector<8x32xf32>
    %83 = arith.mulf %82, %68 : vector<8x32xf32>
    %84 = vector.extract_strided_slice %80 {offsets = [0, 0], sizes = [8, 32], strides = [1, 1]} : vector<8x128xf32> to vector<8x32xf32>
    %85 = vector.extract_strided_slice %81 {offsets = [0, 64], sizes = [8, 32], strides = [1, 1]} : vector<8x128xf32> to vector<8x32xf32>
    %86 = arith.mulf %84, %85 : vector<8x32xf32>
    %87 = arith.addf %83, %86 : vector<8x32xf32>
    %88 = vector.extract_strided_slice %80 {offsets = [0, 96], sizes = [8, 32], strides = [1, 1]} : vector<8x128xf32> to vector<8x32xf32>
    %89 = math.tanh %87 : vector<8x32xf32>
    %90 = arith.mulf %88, %89 : vector<8x32xf32>
    %91 = vector.extract_strided_slice %12 {offsets = [4, 0, 0], sizes = [1, 8, 128], strides = [1, 1, 1]} : vector<16x8x128xf32> to vector<1x8x128xf32>
    %92 = vector.shape_cast %91 : vector<1x8x128xf32> to vector<8x128xf32>
    %cst_16 = arith.constant dense<0.000000e+00> : vector<8x128xf32>
    %93 = tpu.matmul %90, %2, %cst_16 {dimension_numbers = #tpu.dot_dimension_numbers<[1], [0], [0], [1], [0, 0, 1, 1], [], []>} : vector<8x32xf32>, vector<32x128xf32>, vector<8x128xf32> -> vector<8x128xf32>
    %94 = arith.addf %92, %93 : vector<8x128xf32>
    %95 = arith.negf %94 : vector<8x128xf32>
    %96 = math.exp %95 : vector<8x128xf32>
    %cst_17 = arith.constant 1.000000e+00 : f32
    %97 = vector.broadcast %cst_17 : f32 to vector<8x128xf32>
    %98 = arith.addf %97, %96 : vector<8x128xf32>
    %99 = arith.divf %97, %98 : vector<8x128xf32>
    %100 = math.tanh %94 : vector<8x128xf32>
    %101 = vector.extract_strided_slice %99 {offsets = [0, 32], sizes = [8, 32], strides = [1, 1]} : vector<8x128xf32> to vector<8x32xf32>
    %102 = arith.mulf %101, %87 : vector<8x32xf32>
    %103 = vector.extract_strided_slice %99 {offsets = [0, 0], sizes = [8, 32], strides = [1, 1]} : vector<8x128xf32> to vector<8x32xf32>
    %104 = vector.extract_strided_slice %100 {offsets = [0, 64], sizes = [8, 32], strides = [1, 1]} : vector<8x128xf32> to vector<8x32xf32>
    %105 = arith.mulf %103, %104 : vector<8x32xf32>
    %106 = arith.addf %102, %105 : vector<8x32xf32>
    %107 = vector.extract_strided_slice %99 {offsets = [0, 96], sizes = [8, 32], strides = [1, 1]} : vector<8x128xf32> to vector<8x32xf32>
    %108 = math.tanh %106 : vector<8x32xf32>
    %109 = arith.mulf %107, %108 : vector<8x32xf32>
    %110 = vector.extract_strided_slice %12 {offsets = [5, 0, 0], sizes = [1, 8, 128], strides = [1, 1, 1]} : vector<16x8x128xf32> to vector<1x8x128xf32>
    %111 = vector.shape_cast %110 : vector<1x8x128xf32> to vector<8x128xf32>
    %cst_18 = arith.constant dense<0.000000e+00> : vector<8x128xf32>
    %112 = tpu.matmul %109, %2, %cst_18 {dimension_numbers = #tpu.dot_dimension_numbers<[1], [0], [0], [1], [0, 0, 1, 1], [], []>} : vector<8x32xf32>, vector<32x128xf32>, vector<8x128xf32> -> vector<8x128xf32>
    %113 = arith.addf %111, %112 : vector<8x128xf32>
    %114 = arith.negf %113 : vector<8x128xf32>
    %115 = math.exp %114 : vector<8x128xf32>
    %cst_19 = arith.constant 1.000000e+00 : f32
    %116 = vector.broadcast %cst_19 : f32 to vector<8x128xf32>
    %117 = arith.addf %116, %115 : vector<8x128xf32>
    %118 = arith.divf %116, %117 : vector<8x128xf32>
    %119 = math.tanh %113 : vector<8x128xf32>
    %120 = vector.extract_strided_slice %118 {offsets = [0, 32], sizes = [8, 32], strides = [1, 1]} : vector<8x128xf32> to vector<8x32xf32>
    %121 = arith.mulf %120, %106 : vector<8x32xf32>
    %122 = vector.extract_strided_slice %118 {offsets = [0, 0], sizes = [8, 32], strides = [1, 1]} : vector<8x128xf32> to vector<8x32xf32>
    %123 = vector.extract_strided_slice %119 {offsets = [0, 64], sizes = [8, 32], strides = [1, 1]} : vector<8x128xf32> to vector<8x32xf32>
    %124 = arith.mulf %122, %123 : vector<8x32xf32>
    %125 = arith.addf %121, %124 : vector<8x32xf32>
    %126 = vector.extract_strided_slice %118 {offsets = [0, 96], sizes = [8, 32], strides = [1, 1]} : vector<8x128xf32> to vector<8x32xf32>
    %127 = math.tanh %125 : vector<8x32xf32>
    %128 = arith.mulf %126, %127 : vector<8x32xf32>
    %129 = vector.extract_strided_slice %12 {offsets = [6, 0, 0], sizes = [1, 8, 128], strides = [1, 1, 1]} : vector<16x8x128xf32> to vector<1x8x128xf32>
    %130 = vector.shape_cast %129 : vector<1x8x128xf32> to vector<8x128xf32>
    %cst_20 = arith.constant dense<0.000000e+00> : vector<8x128xf32>
    %131 = tpu.matmul %128, %2, %cst_20 {dimension_numbers = #tpu.dot_dimension_numbers<[1], [0], [0], [1], [0, 0, 1, 1], [], []>} : vector<8x32xf32>, vector<32x128xf32>, vector<8x128xf32> -> vector<8x128xf32>
    %132 = arith.addf %130, %131 : vector<8x128xf32>
    %133 = arith.negf %132 : vector<8x128xf32>
    %134 = math.exp %133 : vector<8x128xf32>
    %cst_21 = arith.constant 1.000000e+00 : f32
    %135 = vector.broadcast %cst_21 : f32 to vector<8x128xf32>
    %136 = arith.addf %135, %134 : vector<8x128xf32>
    %137 = arith.divf %135, %136 : vector<8x128xf32>
    %138 = math.tanh %132 : vector<8x128xf32>
    %139 = vector.extract_strided_slice %137 {offsets = [0, 32], sizes = [8, 32], strides = [1, 1]} : vector<8x128xf32> to vector<8x32xf32>
    %140 = arith.mulf %139, %125 : vector<8x32xf32>
    %141 = vector.extract_strided_slice %137 {offsets = [0, 0], sizes = [8, 32], strides = [1, 1]} : vector<8x128xf32> to vector<8x32xf32>
    %142 = vector.extract_strided_slice %138 {offsets = [0, 64], sizes = [8, 32], strides = [1, 1]} : vector<8x128xf32> to vector<8x32xf32>
    %143 = arith.mulf %141, %142 : vector<8x32xf32>
    %144 = arith.addf %140, %143 : vector<8x32xf32>
    %145 = vector.extract_strided_slice %137 {offsets = [0, 96], sizes = [8, 32], strides = [1, 1]} : vector<8x128xf32> to vector<8x32xf32>
    %146 = math.tanh %144 : vector<8x32xf32>
    %147 = arith.mulf %145, %146 : vector<8x32xf32>
    %148 = vector.extract_strided_slice %12 {offsets = [7, 0, 0], sizes = [1, 8, 128], strides = [1, 1, 1]} : vector<16x8x128xf32> to vector<1x8x128xf32>
    %149 = vector.shape_cast %148 : vector<1x8x128xf32> to vector<8x128xf32>
    %cst_22 = arith.constant dense<0.000000e+00> : vector<8x128xf32>
    %150 = tpu.matmul %147, %2, %cst_22 {dimension_numbers = #tpu.dot_dimension_numbers<[1], [0], [0], [1], [0, 0, 1, 1], [], []>} : vector<8x32xf32>, vector<32x128xf32>, vector<8x128xf32> -> vector<8x128xf32>
    %151 = arith.addf %149, %150 : vector<8x128xf32>
    %152 = arith.negf %151 : vector<8x128xf32>
    %153 = math.exp %152 : vector<8x128xf32>
    %cst_23 = arith.constant 1.000000e+00 : f32
    %154 = vector.broadcast %cst_23 : f32 to vector<8x128xf32>
    %155 = arith.addf %154, %153 : vector<8x128xf32>
    %156 = arith.divf %154, %155 : vector<8x128xf32>
    %157 = math.tanh %151 : vector<8x128xf32>
    %158 = vector.extract_strided_slice %156 {offsets = [0, 32], sizes = [8, 32], strides = [1, 1]} : vector<8x128xf32> to vector<8x32xf32>
    %159 = arith.mulf %158, %144 : vector<8x32xf32>
    %160 = vector.extract_strided_slice %156 {offsets = [0, 0], sizes = [8, 32], strides = [1, 1]} : vector<8x128xf32> to vector<8x32xf32>
    %161 = vector.extract_strided_slice %157 {offsets = [0, 64], sizes = [8, 32], strides = [1, 1]} : vector<8x128xf32> to vector<8x32xf32>
    %162 = arith.mulf %160, %161 : vector<8x32xf32>
    %163 = arith.addf %159, %162 : vector<8x32xf32>
    %164 = vector.extract_strided_slice %156 {offsets = [0, 96], sizes = [8, 32], strides = [1, 1]} : vector<8x128xf32> to vector<8x32xf32>
    %165 = math.tanh %163 : vector<8x32xf32>
    %166 = arith.mulf %164, %165 : vector<8x32xf32>
    %167 = vector.extract_strided_slice %12 {offsets = [8, 0, 0], sizes = [1, 8, 128], strides = [1, 1, 1]} : vector<16x8x128xf32> to vector<1x8x128xf32>
    %168 = vector.shape_cast %167 : vector<1x8x128xf32> to vector<8x128xf32>
    %cst_24 = arith.constant dense<0.000000e+00> : vector<8x128xf32>
    %169 = tpu.matmul %166, %2, %cst_24 {dimension_numbers = #tpu.dot_dimension_numbers<[1], [0], [0], [1], [0, 0, 1, 1], [], []>} : vector<8x32xf32>, vector<32x128xf32>, vector<8x128xf32> -> vector<8x128xf32>
    %170 = arith.addf %168, %169 : vector<8x128xf32>
    %171 = arith.negf %170 : vector<8x128xf32>
    %172 = math.exp %171 : vector<8x128xf32>
    %cst_25 = arith.constant 1.000000e+00 : f32
    %173 = vector.broadcast %cst_25 : f32 to vector<8x128xf32>
    %174 = arith.addf %173, %172 : vector<8x128xf32>
    %175 = arith.divf %173, %174 : vector<8x128xf32>
    %176 = math.tanh %170 : vector<8x128xf32>
    %177 = vector.extract_strided_slice %175 {offsets = [0, 32], sizes = [8, 32], strides = [1, 1]} : vector<8x128xf32> to vector<8x32xf32>
    %178 = arith.mulf %177, %163 : vector<8x32xf32>
    %179 = vector.extract_strided_slice %175 {offsets = [0, 0], sizes = [8, 32], strides = [1, 1]} : vector<8x128xf32> to vector<8x32xf32>
    %180 = vector.extract_strided_slice %176 {offsets = [0, 64], sizes = [8, 32], strides = [1, 1]} : vector<8x128xf32> to vector<8x32xf32>
    %181 = arith.mulf %179, %180 : vector<8x32xf32>
    %182 = arith.addf %178, %181 : vector<8x32xf32>
    %183 = vector.extract_strided_slice %175 {offsets = [0, 96], sizes = [8, 32], strides = [1, 1]} : vector<8x128xf32> to vector<8x32xf32>
    %184 = math.tanh %182 : vector<8x32xf32>
    %185 = arith.mulf %183, %184 : vector<8x32xf32>
    %186 = vector.extract_strided_slice %12 {offsets = [9, 0, 0], sizes = [1, 8, 128], strides = [1, 1, 1]} : vector<16x8x128xf32> to vector<1x8x128xf32>
    %187 = vector.shape_cast %186 : vector<1x8x128xf32> to vector<8x128xf32>
    %cst_26 = arith.constant dense<0.000000e+00> : vector<8x128xf32>
    %188 = tpu.matmul %185, %2, %cst_26 {dimension_numbers = #tpu.dot_dimension_numbers<[1], [0], [0], [1], [0, 0, 1, 1], [], []>} : vector<8x32xf32>, vector<32x128xf32>, vector<8x128xf32> -> vector<8x128xf32>
    %189 = arith.addf %187, %188 : vector<8x128xf32>
    %190 = arith.negf %189 : vector<8x128xf32>
    %191 = math.exp %190 : vector<8x128xf32>
    %cst_27 = arith.constant 1.000000e+00 : f32
    %192 = vector.broadcast %cst_27 : f32 to vector<8x128xf32>
    %193 = arith.addf %192, %191 : vector<8x128xf32>
    %194 = arith.divf %192, %193 : vector<8x128xf32>
    %195 = math.tanh %189 : vector<8x128xf32>
    %196 = vector.extract_strided_slice %194 {offsets = [0, 32], sizes = [8, 32], strides = [1, 1]} : vector<8x128xf32> to vector<8x32xf32>
    %197 = arith.mulf %196, %182 : vector<8x32xf32>
    %198 = vector.extract_strided_slice %194 {offsets = [0, 0], sizes = [8, 32], strides = [1, 1]} : vector<8x128xf32> to vector<8x32xf32>
    %199 = vector.extract_strided_slice %195 {offsets = [0, 64], sizes = [8, 32], strides = [1, 1]} : vector<8x128xf32> to vector<8x32xf32>
    %200 = arith.mulf %198, %199 : vector<8x32xf32>
    %201 = arith.addf %197, %200 : vector<8x32xf32>
    %202 = vector.extract_strided_slice %194 {offsets = [0, 96], sizes = [8, 32], strides = [1, 1]} : vector<8x128xf32> to vector<8x32xf32>
    %203 = math.tanh %201 : vector<8x32xf32>
    %204 = arith.mulf %202, %203 : vector<8x32xf32>
    %205 = vector.extract_strided_slice %12 {offsets = [10, 0, 0], sizes = [1, 8, 128], strides = [1, 1, 1]} : vector<16x8x128xf32> to vector<1x8x128xf32>
    %206 = vector.shape_cast %205 : vector<1x8x128xf32> to vector<8x128xf32>
    %cst_28 = arith.constant dense<0.000000e+00> : vector<8x128xf32>
    %207 = tpu.matmul %204, %2, %cst_28 {dimension_numbers = #tpu.dot_dimension_numbers<[1], [0], [0], [1], [0, 0, 1, 1], [], []>} : vector<8x32xf32>, vector<32x128xf32>, vector<8x128xf32> -> vector<8x128xf32>
    %208 = arith.addf %206, %207 : vector<8x128xf32>
    %209 = arith.negf %208 : vector<8x128xf32>
    %210 = math.exp %209 : vector<8x128xf32>
    %cst_29 = arith.constant 1.000000e+00 : f32
    %211 = vector.broadcast %cst_29 : f32 to vector<8x128xf32>
    %212 = arith.addf %211, %210 : vector<8x128xf32>
    %213 = arith.divf %211, %212 : vector<8x128xf32>
    %214 = math.tanh %208 : vector<8x128xf32>
    %215 = vector.extract_strided_slice %213 {offsets = [0, 32], sizes = [8, 32], strides = [1, 1]} : vector<8x128xf32> to vector<8x32xf32>
    %216 = arith.mulf %215, %201 : vector<8x32xf32>
    %217 = vector.extract_strided_slice %213 {offsets = [0, 0], sizes = [8, 32], strides = [1, 1]} : vector<8x128xf32> to vector<8x32xf32>
    %218 = vector.extract_strided_slice %214 {offsets = [0, 64], sizes = [8, 32], strides = [1, 1]} : vector<8x128xf32> to vector<8x32xf32>
    %219 = arith.mulf %217, %218 : vector<8x32xf32>
    %220 = arith.addf %216, %219 : vector<8x32xf32>
    %221 = vector.extract_strided_slice %213 {offsets = [0, 96], sizes = [8, 32], strides = [1, 1]} : vector<8x128xf32> to vector<8x32xf32>
    %222 = math.tanh %220 : vector<8x32xf32>
    %223 = arith.mulf %221, %222 : vector<8x32xf32>
    %224 = vector.extract_strided_slice %12 {offsets = [11, 0, 0], sizes = [1, 8, 128], strides = [1, 1, 1]} : vector<16x8x128xf32> to vector<1x8x128xf32>
    %225 = vector.shape_cast %224 : vector<1x8x128xf32> to vector<8x128xf32>
    %cst_30 = arith.constant dense<0.000000e+00> : vector<8x128xf32>
    %226 = tpu.matmul %223, %2, %cst_30 {dimension_numbers = #tpu.dot_dimension_numbers<[1], [0], [0], [1], [0, 0, 1, 1], [], []>} : vector<8x32xf32>, vector<32x128xf32>, vector<8x128xf32> -> vector<8x128xf32>
    %227 = arith.addf %225, %226 : vector<8x128xf32>
    %228 = arith.negf %227 : vector<8x128xf32>
    %229 = math.exp %228 : vector<8x128xf32>
    %cst_31 = arith.constant 1.000000e+00 : f32
    %230 = vector.broadcast %cst_31 : f32 to vector<8x128xf32>
    %231 = arith.addf %230, %229 : vector<8x128xf32>
    %232 = arith.divf %230, %231 : vector<8x128xf32>
    %233 = math.tanh %227 : vector<8x128xf32>
    %234 = vector.extract_strided_slice %232 {offsets = [0, 32], sizes = [8, 32], strides = [1, 1]} : vector<8x128xf32> to vector<8x32xf32>
    %235 = arith.mulf %234, %220 : vector<8x32xf32>
    %236 = vector.extract_strided_slice %232 {offsets = [0, 0], sizes = [8, 32], strides = [1, 1]} : vector<8x128xf32> to vector<8x32xf32>
    %237 = vector.extract_strided_slice %233 {offsets = [0, 64], sizes = [8, 32], strides = [1, 1]} : vector<8x128xf32> to vector<8x32xf32>
    %238 = arith.mulf %236, %237 : vector<8x32xf32>
    %239 = arith.addf %235, %238 : vector<8x32xf32>
    %240 = vector.extract_strided_slice %232 {offsets = [0, 96], sizes = [8, 32], strides = [1, 1]} : vector<8x128xf32> to vector<8x32xf32>
    %241 = math.tanh %239 : vector<8x32xf32>
    %242 = arith.mulf %240, %241 : vector<8x32xf32>
    %243 = vector.extract_strided_slice %12 {offsets = [12, 0, 0], sizes = [1, 8, 128], strides = [1, 1, 1]} : vector<16x8x128xf32> to vector<1x8x128xf32>
    %244 = vector.shape_cast %243 : vector<1x8x128xf32> to vector<8x128xf32>
    %cst_32 = arith.constant dense<0.000000e+00> : vector<8x128xf32>
    %245 = tpu.matmul %242, %2, %cst_32 {dimension_numbers = #tpu.dot_dimension_numbers<[1], [0], [0], [1], [0, 0, 1, 1], [], []>} : vector<8x32xf32>, vector<32x128xf32>, vector<8x128xf32> -> vector<8x128xf32>
    %246 = arith.addf %244, %245 : vector<8x128xf32>
    %247 = arith.negf %246 : vector<8x128xf32>
    %248 = math.exp %247 : vector<8x128xf32>
    %cst_33 = arith.constant 1.000000e+00 : f32
    %249 = vector.broadcast %cst_33 : f32 to vector<8x128xf32>
    %250 = arith.addf %249, %248 : vector<8x128xf32>
    %251 = arith.divf %249, %250 : vector<8x128xf32>
    %252 = math.tanh %246 : vector<8x128xf32>
    %253 = vector.extract_strided_slice %251 {offsets = [0, 32], sizes = [8, 32], strides = [1, 1]} : vector<8x128xf32> to vector<8x32xf32>
    %254 = arith.mulf %253, %239 : vector<8x32xf32>
    %255 = vector.extract_strided_slice %251 {offsets = [0, 0], sizes = [8, 32], strides = [1, 1]} : vector<8x128xf32> to vector<8x32xf32>
    %256 = vector.extract_strided_slice %252 {offsets = [0, 64], sizes = [8, 32], strides = [1, 1]} : vector<8x128xf32> to vector<8x32xf32>
    %257 = arith.mulf %255, %256 : vector<8x32xf32>
    %258 = arith.addf %254, %257 : vector<8x32xf32>
    %259 = vector.extract_strided_slice %251 {offsets = [0, 96], sizes = [8, 32], strides = [1, 1]} : vector<8x128xf32> to vector<8x32xf32>
    %260 = math.tanh %258 : vector<8x32xf32>
    %261 = arith.mulf %259, %260 : vector<8x32xf32>
    %262 = vector.extract_strided_slice %12 {offsets = [13, 0, 0], sizes = [1, 8, 128], strides = [1, 1, 1]} : vector<16x8x128xf32> to vector<1x8x128xf32>
    %263 = vector.shape_cast %262 : vector<1x8x128xf32> to vector<8x128xf32>
    %cst_34 = arith.constant dense<0.000000e+00> : vector<8x128xf32>
    %264 = tpu.matmul %261, %2, %cst_34 {dimension_numbers = #tpu.dot_dimension_numbers<[1], [0], [0], [1], [0, 0, 1, 1], [], []>} : vector<8x32xf32>, vector<32x128xf32>, vector<8x128xf32> -> vector<8x128xf32>
    %265 = arith.addf %263, %264 : vector<8x128xf32>
    %266 = arith.negf %265 : vector<8x128xf32>
    %267 = math.exp %266 : vector<8x128xf32>
    %cst_35 = arith.constant 1.000000e+00 : f32
    %268 = vector.broadcast %cst_35 : f32 to vector<8x128xf32>
    %269 = arith.addf %268, %267 : vector<8x128xf32>
    %270 = arith.divf %268, %269 : vector<8x128xf32>
    %271 = math.tanh %265 : vector<8x128xf32>
    %272 = vector.extract_strided_slice %270 {offsets = [0, 32], sizes = [8, 32], strides = [1, 1]} : vector<8x128xf32> to vector<8x32xf32>
    %273 = arith.mulf %272, %258 : vector<8x32xf32>
    %274 = vector.extract_strided_slice %270 {offsets = [0, 0], sizes = [8, 32], strides = [1, 1]} : vector<8x128xf32> to vector<8x32xf32>
    %275 = vector.extract_strided_slice %271 {offsets = [0, 64], sizes = [8, 32], strides = [1, 1]} : vector<8x128xf32> to vector<8x32xf32>
    %276 = arith.mulf %274, %275 : vector<8x32xf32>
    %277 = arith.addf %273, %276 : vector<8x32xf32>
    %278 = vector.extract_strided_slice %270 {offsets = [0, 96], sizes = [8, 32], strides = [1, 1]} : vector<8x128xf32> to vector<8x32xf32>
    %279 = math.tanh %277 : vector<8x32xf32>
    %280 = arith.mulf %278, %279 : vector<8x32xf32>
    %281 = vector.extract_strided_slice %12 {offsets = [14, 0, 0], sizes = [1, 8, 128], strides = [1, 1, 1]} : vector<16x8x128xf32> to vector<1x8x128xf32>
    %282 = vector.shape_cast %281 : vector<1x8x128xf32> to vector<8x128xf32>
    %cst_36 = arith.constant dense<0.000000e+00> : vector<8x128xf32>
    %283 = tpu.matmul %280, %2, %cst_36 {dimension_numbers = #tpu.dot_dimension_numbers<[1], [0], [0], [1], [0, 0, 1, 1], [], []>} : vector<8x32xf32>, vector<32x128xf32>, vector<8x128xf32> -> vector<8x128xf32>
    %284 = arith.addf %282, %283 : vector<8x128xf32>
    %285 = arith.negf %284 : vector<8x128xf32>
    %286 = math.exp %285 : vector<8x128xf32>
    %cst_37 = arith.constant 1.000000e+00 : f32
    %287 = vector.broadcast %cst_37 : f32 to vector<8x128xf32>
    %288 = arith.addf %287, %286 : vector<8x128xf32>
    %289 = arith.divf %287, %288 : vector<8x128xf32>
    %290 = math.tanh %284 : vector<8x128xf32>
    %291 = vector.extract_strided_slice %289 {offsets = [0, 32], sizes = [8, 32], strides = [1, 1]} : vector<8x128xf32> to vector<8x32xf32>
    %292 = arith.mulf %291, %277 : vector<8x32xf32>
    %293 = vector.extract_strided_slice %289 {offsets = [0, 0], sizes = [8, 32], strides = [1, 1]} : vector<8x128xf32> to vector<8x32xf32>
    %294 = vector.extract_strided_slice %290 {offsets = [0, 64], sizes = [8, 32], strides = [1, 1]} : vector<8x128xf32> to vector<8x32xf32>
    %295 = arith.mulf %293, %294 : vector<8x32xf32>
    %296 = arith.addf %292, %295 : vector<8x32xf32>
    %297 = vector.extract_strided_slice %289 {offsets = [0, 96], sizes = [8, 32], strides = [1, 1]} : vector<8x128xf32> to vector<8x32xf32>
    %298 = math.tanh %296 : vector<8x32xf32>
    %299 = arith.mulf %297, %298 : vector<8x32xf32>
    %300 = vector.extract_strided_slice %12 {offsets = [15, 0, 0], sizes = [1, 8, 128], strides = [1, 1, 1]} : vector<16x8x128xf32> to vector<1x8x128xf32>
    %301 = vector.shape_cast %300 : vector<1x8x128xf32> to vector<8x128xf32>
    %cst_38 = arith.constant dense<0.000000e+00> : vector<8x128xf32>
    %302 = tpu.matmul %299, %2, %cst_38 {dimension_numbers = #tpu.dot_dimension_numbers<[1], [0], [0], [1], [0, 0, 1, 1], [], []>} : vector<8x32xf32>, vector<32x128xf32>, vector<8x128xf32> -> vector<8x128xf32>
    %303 = arith.addf %301, %302 : vector<8x128xf32>
    %304 = arith.negf %303 : vector<8x128xf32>
    %305 = math.exp %304 : vector<8x128xf32>
    %cst_39 = arith.constant 1.000000e+00 : f32
    %306 = vector.broadcast %cst_39 : f32 to vector<8x128xf32>
    %307 = arith.addf %306, %305 : vector<8x128xf32>
    %308 = arith.divf %306, %307 : vector<8x128xf32>
    %309 = math.tanh %303 : vector<8x128xf32>
    %310 = vector.extract_strided_slice %308 {offsets = [0, 32], sizes = [8, 32], strides = [1, 1]} : vector<8x128xf32> to vector<8x32xf32>
    %311 = arith.mulf %310, %296 : vector<8x32xf32>
    %312 = vector.extract_strided_slice %308 {offsets = [0, 0], sizes = [8, 32], strides = [1, 1]} : vector<8x128xf32> to vector<8x32xf32>
    %313 = vector.extract_strided_slice %309 {offsets = [0, 64], sizes = [8, 32], strides = [1, 1]} : vector<8x128xf32> to vector<8x32xf32>
    %314 = arith.mulf %312, %313 : vector<8x32xf32>
    %315 = arith.addf %311, %314 : vector<8x32xf32>
    %316 = vector.extract_strided_slice %308 {offsets = [0, 96], sizes = [8, 32], strides = [1, 1]} : vector<8x128xf32> to vector<8x32xf32>
    %317 = math.tanh %315 : vector<8x32xf32>
    %318 = arith.mulf %316, %317 : vector<8x32xf32>
    %c0_40 = arith.constant 0 : index
    %c0_41 = arith.constant 0 : index
    %c0_42 = arith.constant 0 : index
    %319 = vector.load %arg4[%c0_40, %c0_41, %c0_42] : memref<3x1x16xf32, #tpu.memory_space<vmem>>, vector<3x1x16xf32>
    %320 = vector.shape_cast %0 : vector<8x16xf32> to vector<8x16x1xf32>
    %cst_43 = arith.constant 0.000000e+00 : f32
    %321 = vector.broadcast %cst_43 : f32 to vector<8x1x1xf32>
    %322 = tpu.concatenate %321, %320, %321 in 1 : vector<8x1x1xf32>, vector<8x16x1xf32>, vector<8x1x1xf32> -> vector<8x18x1xf32>
    %323 = vector.extract_strided_slice %322 {offsets = [0, 0, 0], sizes = [8, 16, 1], strides = [1, 1, 1]} : vector<8x18x1xf32> to vector<8x16x1xf32>
    %324 = vector.extract_strided_slice %319 {offsets = [0, 0, 0], sizes = [1, 1, 16], strides = [1, 1, 1]} : vector<3x1x16xf32> to vector<1x1x16xf32>
    %325 = vector.shape_cast %324 : vector<1x1x16xf32> to vector<1x16xf32>
    %326 = vector.shape_cast %325 : vector<1x16xf32> to vector<1x1x16xf32>
    %327 = vector.broadcast %323 : vector<8x16x1xf32> to vector<8x16x16xf32>
    %328 = vector.broadcast %326 : vector<1x1x16xf32> to vector<8x16x16xf32>
    %329 = arith.mulf %327, %328 : vector<8x16x16xf32>
    %330 = vector.extract_strided_slice %322 {offsets = [0, 1, 0], sizes = [8, 16, 1], strides = [1, 1, 1]} : vector<8x18x1xf32> to vector<8x16x1xf32>
    %331 = vector.extract_strided_slice %319 {offsets = [1, 0, 0], sizes = [1, 1, 16], strides = [1, 1, 1]} : vector<3x1x16xf32> to vector<1x1x16xf32>
    %332 = vector.shape_cast %331 : vector<1x1x16xf32> to vector<1x16xf32>
    %333 = vector.shape_cast %332 : vector<1x16xf32> to vector<1x1x16xf32>
    %334 = vector.broadcast %330 : vector<8x16x1xf32> to vector<8x16x16xf32>
    %335 = vector.broadcast %333 : vector<1x1x16xf32> to vector<8x16x16xf32>
    %336 = arith.mulf %334, %335 : vector<8x16x16xf32>
    %337 = arith.addf %329, %336 : vector<8x16x16xf32>
    %338 = vector.extract_strided_slice %322 {offsets = [0, 2, 0], sizes = [8, 16, 1], strides = [1, 1, 1]} : vector<8x18x1xf32> to vector<8x16x1xf32>
    %339 = vector.extract_strided_slice %319 {offsets = [2, 0, 0], sizes = [1, 1, 16], strides = [1, 1, 1]} : vector<3x1x16xf32> to vector<1x1x16xf32>
    %340 = vector.shape_cast %339 : vector<1x1x16xf32> to vector<1x16xf32>
    %341 = vector.shape_cast %340 : vector<1x16xf32> to vector<1x1x16xf32>
    %342 = vector.broadcast %338 : vector<8x16x1xf32> to vector<8x16x16xf32>
    %343 = vector.broadcast %341 : vector<1x1x16xf32> to vector<8x16x16xf32>
    %344 = arith.mulf %342, %343 : vector<8x16x16xf32>
    %345 = arith.addf %337, %344 : vector<8x16x16xf32>
    %c0_44 = arith.constant 0 : index
    %c0_45 = arith.constant 0 : index
    %346 = vector.load %arg5[%c0_44, %c0_45] : memref<1x16xf32, #tpu.memory_space<vmem>>, vector<1x16xf32>
    %347 = vector.shape_cast %346 : vector<1x16xf32> to vector<1x1x16xf32>
    %348 = vector.broadcast %347 : vector<1x1x16xf32> to vector<8x16x16xf32>
    %349 = arith.mulf %345, %348 : vector<8x16x16xf32>
    %c0_46 = arith.constant 0 : index
    %c0_47 = arith.constant 0 : index
    %350 = vector.load %arg6[%c0_46, %c0_47] : memref<1x16xf32, #tpu.memory_space<vmem>>, vector<1x16xf32>
    %351 = vector.shape_cast %350 : vector<1x16xf32> to vector<1x1x16xf32>
    %352 = vector.broadcast %351 : vector<1x1x16xf32> to vector<8x16x16xf32>
    %353 = arith.addf %349, %352 : vector<8x16x16xf32>
    %cst_48 = arith.constant 0.000000e+00 : f32
    %354 = vector.broadcast %cst_48 : f32 to vector<8x16x16xf32>
    %355 = arith.maximumf %353, %354 : vector<8x16x16xf32>
    %c0_49 = arith.constant 0 : index
    %c0_50 = arith.constant 0 : index
    %c0_51 = arith.constant 0 : index
    %356 = vector.load %arg7[%c0_49, %c0_50, %c0_51] : memref<3x16x32xf32, #tpu.memory_space<vmem>>, vector<3x16x32xf32>
    %cst_52 = arith.constant 0.000000e+00 : f32
    %357 = vector.broadcast %cst_52 : f32 to vector<8x1x16xf32>
    %358 = tpu.concatenate %357, %355, %357 in 1 : vector<8x1x16xf32>, vector<8x16x16xf32>, vector<8x1x16xf32> -> vector<8x18x16xf32>
    %359 = vector.extract_strided_slice %358 {offsets = [0, 0, 0], sizes = [8, 16, 16], strides = [1, 1, 1]} : vector<8x18x16xf32> to vector<8x16x16xf32>
    %360 = vector.shape_cast %359 : vector<8x16x16xf32> to vector<128x16xf32>
    %361 = vector.extract_strided_slice %356 {offsets = [0, 0, 0], sizes = [1, 16, 32], strides = [1, 1, 1]} : vector<3x16x32xf32> to vector<1x16x32xf32>
    %362 = vector.shape_cast %361 : vector<1x16x32xf32> to vector<16x32xf32>
    %cst_53 = arith.constant dense<0.000000e+00> : vector<128x32xf32>
    %363 = tpu.matmul %360, %362, %cst_53 {dimension_numbers = #tpu.dot_dimension_numbers<[1], [0], [0], [1], [0, 0, 1, 1], [], []>} : vector<128x16xf32>, vector<16x32xf32>, vector<128x32xf32> -> vector<128x32xf32>
    %364 = vector.extract_strided_slice %358 {offsets = [0, 1, 0], sizes = [8, 16, 16], strides = [1, 1, 1]} : vector<8x18x16xf32> to vector<8x16x16xf32>
    %365 = vector.shape_cast %364 : vector<8x16x16xf32> to vector<128x16xf32>
    %366 = vector.extract_strided_slice %356 {offsets = [1, 0, 0], sizes = [1, 16, 32], strides = [1, 1, 1]} : vector<3x16x32xf32> to vector<1x16x32xf32>
    %367 = vector.shape_cast %366 : vector<1x16x32xf32> to vector<16x32xf32>
    %cst_54 = arith.constant dense<0.000000e+00> : vector<128x32xf32>
    %368 = tpu.matmul %365, %367, %cst_54 {dimension_numbers = #tpu.dot_dimension_numbers<[1], [0], [0], [1], [0, 0, 1, 1], [], []>} : vector<128x16xf32>, vector<16x32xf32>, vector<128x32xf32> -> vector<128x32xf32>
    %369 = arith.addf %363, %368 : vector<128x32xf32>
    %370 = vector.extract_strided_slice %358 {offsets = [0, 2, 0], sizes = [8, 16, 16], strides = [1, 1, 1]} : vector<8x18x16xf32> to vector<8x16x16xf32>
    %371 = vector.shape_cast %370 : vector<8x16x16xf32> to vector<128x16xf32>
    %372 = vector.extract_strided_slice %356 {offsets = [2, 0, 0], sizes = [1, 16, 32], strides = [1, 1, 1]} : vector<3x16x32xf32> to vector<1x16x32xf32>
    %373 = vector.shape_cast %372 : vector<1x16x32xf32> to vector<16x32xf32>
    %cst_55 = arith.constant dense<0.000000e+00> : vector<128x32xf32>
    %374 = tpu.matmul %371, %373, %cst_55 {dimension_numbers = #tpu.dot_dimension_numbers<[1], [0], [0], [1], [0, 0, 1, 1], [], []>} : vector<128x16xf32>, vector<16x32xf32>, vector<128x32xf32> -> vector<128x32xf32>
    %375 = arith.addf %369, %374 : vector<128x32xf32>
    %c0_56 = arith.constant 0 : index
    %c0_57 = arith.constant 0 : index
    %376 = vector.load %arg8[%c0_56, %c0_57] : memref<1x32xf32, #tpu.memory_space<vmem>>, vector<1x32xf32>
    %377 = vector.broadcast %376 : vector<1x32xf32> to vector<128x32xf32>
    %378 = arith.mulf %375, %377 : vector<128x32xf32>
    %c0_58 = arith.constant 0 : index
    %c0_59 = arith.constant 0 : index
    %379 = vector.load %arg9[%c0_58, %c0_59] : memref<1x32xf32, #tpu.memory_space<vmem>>, vector<1x32xf32>
    %380 = vector.broadcast %379 : vector<1x32xf32> to vector<128x32xf32>
    %381 = arith.addf %378, %380 : vector<128x32xf32>
    %cst_60 = arith.constant 0.000000e+00 : f32
    %382 = vector.broadcast %cst_60 : f32 to vector<128x32xf32>
    %383 = arith.maximumf %381, %382 : vector<128x32xf32>
    %384 = vector.shape_cast %383 : vector<128x32xf32> to vector<8x16x32xf32>
    %c0_61 = arith.constant 0 : index
    %c0_62 = arith.constant 0 : index
    %c0_63 = arith.constant 0 : index
    %385 = vector.load %arg10[%c0_61, %c0_62, %c0_63] : memref<3x32x128xf32, #tpu.memory_space<vmem>>, vector<3x32x128xf32>
    %cst_64 = arith.constant 0.000000e+00 : f32
    %386 = vector.broadcast %cst_64 : f32 to vector<8x1x32xf32>
    %387 = tpu.concatenate %386, %384, %386 in 1 : vector<8x1x32xf32>, vector<8x16x32xf32>, vector<8x1x32xf32> -> vector<8x18x32xf32>
    %388 = vector.extract_strided_slice %387 {offsets = [0, 0, 0], sizes = [8, 16, 32], strides = [1, 1, 1]} : vector<8x18x32xf32> to vector<8x16x32xf32>
    %389 = vector.shape_cast %388 : vector<8x16x32xf32> to vector<128x32xf32>
    %390 = vector.extract_strided_slice %385 {offsets = [0, 0, 0], sizes = [1, 32, 128], strides = [1, 1, 1]} : vector<3x32x128xf32> to vector<1x32x128xf32>
    %391 = vector.shape_cast %390 : vector<1x32x128xf32> to vector<32x128xf32>
    %cst_65 = arith.constant dense<0.000000e+00> : vector<128x128xf32>
    %392 = tpu.matmul %389, %391, %cst_65 {dimension_numbers = #tpu.dot_dimension_numbers<[1], [0], [0], [1], [0, 0, 1, 1], [], []>} : vector<128x32xf32>, vector<32x128xf32>, vector<128x128xf32> -> vector<128x128xf32>
    %393 = vector.extract_strided_slice %387 {offsets = [0, 1, 0], sizes = [8, 16, 32], strides = [1, 1, 1]} : vector<8x18x32xf32> to vector<8x16x32xf32>
    %394 = vector.shape_cast %393 : vector<8x16x32xf32> to vector<128x32xf32>
    %395 = vector.extract_strided_slice %385 {offsets = [1, 0, 0], sizes = [1, 32, 128], strides = [1, 1, 1]} : vector<3x32x128xf32> to vector<1x32x128xf32>
    %396 = vector.shape_cast %395 : vector<1x32x128xf32> to vector<32x128xf32>
    %cst_66 = arith.constant dense<0.000000e+00> : vector<128x128xf32>
    %397 = tpu.matmul %394, %396, %cst_66 {dimension_numbers = #tpu.dot_dimension_numbers<[1], [0], [0], [1], [0, 0, 1, 1], [], []>} : vector<128x32xf32>, vector<32x128xf32>, vector<128x128xf32> -> vector<128x128xf32>
    %398 = arith.addf %392, %397 : vector<128x128xf32>
    %399 = vector.extract_strided_slice %387 {offsets = [0, 2, 0], sizes = [8, 16, 32], strides = [1, 1, 1]} : vector<8x18x32xf32> to vector<8x16x32xf32>
    %400 = vector.shape_cast %399 : vector<8x16x32xf32> to vector<128x32xf32>
    %401 = vector.extract_strided_slice %385 {offsets = [2, 0, 0], sizes = [1, 32, 128], strides = [1, 1, 1]} : vector<3x32x128xf32> to vector<1x32x128xf32>
    %402 = vector.shape_cast %401 : vector<1x32x128xf32> to vector<32x128xf32>
    %cst_67 = arith.constant dense<0.000000e+00> : vector<128x128xf32>
    %403 = tpu.matmul %400, %402, %cst_67 {dimension_numbers = #tpu.dot_dimension_numbers<[1], [0], [0], [1], [0, 0, 1, 1], [], []>} : vector<128x32xf32>, vector<32x128xf32>, vector<128x128xf32> -> vector<128x128xf32>
    %404 = arith.addf %398, %403 : vector<128x128xf32>
    %c0_68 = arith.constant 0 : index
    %c0_69 = arith.constant 0 : index
    %405 = vector.load %arg11[%c0_68, %c0_69] : memref<1x128xf32, #tpu.memory_space<vmem>>, vector<1x128xf32>
    %406 = vector.broadcast %405 : vector<1x128xf32> to vector<128x128xf32>
    %407 = arith.mulf %404, %406 : vector<128x128xf32>
    %c0_70 = arith.constant 0 : index
    %c0_71 = arith.constant 0 : index
    %408 = vector.load %arg12[%c0_70, %c0_71] : memref<1x128xf32, #tpu.memory_space<vmem>>, vector<1x128xf32>
    %409 = vector.broadcast %408 : vector<1x128xf32> to vector<128x128xf32>
    %410 = arith.addf %407, %409 : vector<128x128xf32>
    %cst_72 = arith.constant 0.000000e+00 : f32
    %411 = vector.broadcast %cst_72 : f32 to vector<128x128xf32>
    %412 = arith.maximumf %410, %411 : vector<128x128xf32>
    %413 = vector.shape_cast %412 : vector<128x128xf32> to vector<8x16x128xf32>
    %cst_73 = arith.constant dense<0.000000e+00> : vector<8x128xf32>
    %414 = vector.multi_reduction <add>, %413, %cst_73 [1] : vector<8x16x128xf32> to vector<8x128xf32>
    %cst_74 = arith.constant 1.600000e+01 : f32
    %415 = vector.broadcast %cst_74 : f32 to vector<8x128xf32>
    %416 = arith.divf %414, %415 : vector<8x128xf32>
    %c0_75 = arith.constant 0 : index
    %c0_76 = arith.constant 0 : index
    %417 = vector.load %arg13[%c0_75, %c0_76] : memref<32x6xf32, #tpu.memory_space<vmem>>, vector<32x6xf32>
    %cst_77 = arith.constant dense<0.000000e+00> : vector<8x6xf32>
    %418 = tpu.matmul %318, %417, %cst_77 {dimension_numbers = #tpu.dot_dimension_numbers<[1], [0], [0], [1], [0, 0, 1, 1], [], []>} : vector<8x32xf32>, vector<32x6xf32>, vector<8x6xf32> -> vector<8x6xf32>
    %c0_78 = arith.constant 0 : index
    %c0_79 = arith.constant 0 : index
    %419 = vector.load %arg14[%c0_78, %c0_79] : memref<128x6xf32, #tpu.memory_space<vmem>>, vector<128x6xf32>
    %cst_80 = arith.constant dense<0.000000e+00> : vector<8x6xf32>
    %420 = tpu.matmul %416, %419, %cst_80 {dimension_numbers = #tpu.dot_dimension_numbers<[1], [0], [0], [1], [0, 0, 1, 1], [], []>} : vector<8x128xf32>, vector<128x6xf32>, vector<8x6xf32> -> vector<8x6xf32>
    %421 = arith.addf %418, %420 : vector<8x6xf32>
    %c0_81 = arith.constant 0 : index
    %c0_82 = arith.constant 0 : index
    %422 = vector.load %arg15[%c0_81, %c0_82] : memref<1x6xf32, #tpu.memory_space<vmem>>, vector<1x6xf32>
    %423 = vector.broadcast %422 : vector<1x6xf32> to vector<8x6xf32>
    %424 = arith.addf %421, %423 : vector<8x6xf32>
    %c0_83 = arith.constant 0 : index
    %c0_84 = arith.constant 0 : index
    %425 = vector.load %arg16[%c0_83, %c0_84] : memref<8x6xf32, #tpu.memory_space<vmem>>, vector<8x6xf32>
    tpu.vector_store %arg16[%c0_83, %c0_84], %424 {strides = array<i32>} : memref<8x6xf32, #tpu.memory_space<vmem>>, vector<8x6xf32>,
    return
  }
}

</mosaic_0001>

<llo_original>
// kernel: tpu_custom_call.1
$region0: #{tpu_custom_call.1}
  #allocation0 [shape = 'u32[]', space=smem, size = 0x4, offset = 0x4, fixed_abs, tag = 'smem constant byte address 0x4 - core index']
  #allocation1 [shape = 'u32[144,128]{1,0:T(1,128)}', space=vmem, size = 0x12000, scoped, tag = 'internal scratch']
  %s0 = inlined_call_operand.hbm [shape: f32[8,16], index: 0, kind: input, shape index: {}]
  %s1 = inlined_call_operand.vmem [shape: f32[1,128], index: 1, kind: input, shape index: {}]
  %s2 = inlined_call_operand.vmem [shape: f32[32,128], index: 2, kind: input, shape index: {}]
  %s3 = inlined_call_operand.vmem [shape: f32[1,128], index: 3, kind: input, shape index: {}]
  %s4 = inlined_call_operand.hbm [shape: f32[3,1,16], index: 4, kind: input, shape index: {}]
  %s5 = inlined_call_operand.hbm [shape: f32[1,16], index: 5, kind: input, shape index: {}]
  %s6 = inlined_call_operand.vmem [shape: f32[1,16], index: 6, kind: input, shape index: {}]
  %s7 = inlined_call_operand.vmem [shape: f32[3,16,32], index: 7, kind: input, shape index: {}]
  %s8 = inlined_call_operand.vmem [shape: f32[1,32], index: 8, kind: input, shape index: {}]
  %s9 = inlined_call_operand.vmem [shape: f32[1,32], index: 9, kind: input, shape index: {}]
  %s10 = inlined_call_operand.vmem [shape: f32[3,32,128], index: 10, kind: input, shape index: {}]
  %s11 = inlined_call_operand.vmem [shape: f32[1,128], index: 11, kind: input, shape index: {}]
  %s12 = inlined_call_operand.vmem [shape: f32[1,128], index: 12, kind: input, shape index: {}]
  %s13 = inlined_call_operand.vmem [shape: f32[32,6], index: 13, kind: input, shape index: {}]
  %s14 = inlined_call_operand.vmem [shape: f32[128,6], index: 14, kind: input, shape index: {}]
  %s15 = inlined_call_operand.vmem [shape: f32[1,6], index: 15, kind: input, shape index: {}]
  %s16 = inlined_call_operand.hbm [shape: f32[8,6], index: 16, kind: output, shape index: {}]
  %s17 = sld [smem:[#allocation0]]
  $region86: #{tpu_custom_call.1} parent=0
    _
  %s19 = ssub.s32 1, %s17
  %s20 = scalar_select 0, %s19, %s17
  $region1: #{tpu_custom_call.1} parent=0
    #allocation2 [shape = 'u8[4096]{0}', space=vmem, size = 0x1000, scoped, tag = 'input window, operand 0, single buffered']
    #allocation3 [shape = 's32[1]{0}', space=sflag, size = 0x4, scoped, tag = 'scoped memory for tpu_custom_call.1']
    #allocation4 [shape = 's32[1]{0}', space=sflag, size = 0x4, scoped, tag = 'scoped memory for tpu_custom_call.1']
    #allocation5 [shape = 'u8[1536]{0}', space=vmem, size = 0x800, scoped, tag = 'input window, operand 4, single buffered']
    #allocation6 [shape = 's32[1]{0}', space=sflag, size = 0x4, scoped, tag = 'scoped memory for tpu_custom_call.1']
    #allocation7 [shape = 'u8[512]{0}', space=vmem, size = 0x400, scoped, tag = 'input window, operand 5, single buffered']
    #allocation8 [shape = 'u8[4096]{0}', space=vmem, size = 0x1000, scoped, tag = 'output window, operand 0, single buffered']
    %21 = vsyncpa [#allocation3], 0
    %22 = vsyncpa [#allocation6], 0
    %23 = vsyncpa [#allocation4], 0
    // Predicated region
    $region2: #{tpu_custom_call.1} parent=1 // pred_check
      _
    $region3: #{tpu_custom_call.1} parent=1 // pred_check_branch
      %25 = sbr.rel (0) target = $region5
    $region4: #{tpu_custom_call.1} parent=1 // pred_region
      %s27 = ssub.s32 128, 128
      %28 = vsyncadd [#allocation3], %s27
      %s30 = sshll.u32 [#allocation2], 4
      %s31 = int_to_ptr.vmem [resolvable:$true] %s30
      %33 = dma.hbm_to_vmem [thread:$0]  %s0, 128, %s31, [#allocation3]
    $region5: #{tpu_custom_call.1} parent=1 // pred_fallthru
      _
    // Predicated region
    $region6: #{tpu_custom_call.1} parent=1 // pred_check
      _
    $region7: #{tpu_custom_call.1} parent=1 // pred_check_branch
      %35 = sbr.rel (0) target = $region9
    $region8: #{tpu_custom_call.1} parent=1 // pred_region
      _
    $region9: #{tpu_custom_call.1} parent=1 // pred_fallthru
      _
    // Predicated region
    $region10: #{tpu_custom_call.1} parent=1 // pred_check
      _
    $region11: #{tpu_custom_call.1} parent=1 // pred_check_branch
      %37 = sbr.rel (0) target = $region13
    $region12: #{tpu_custom_call.1} parent=1 // pred_region
      _
    $region13: #{tpu_custom_call.1} parent=1 // pred_fallthru
      _
    // Predicated region
    $region14: #{tpu_custom_call.1} parent=1 // pred_check
      _
    $region15: #{tpu_custom_call.1} parent=1 // pred_check_branch
      %39 = sbr.rel (0) target = $region17
    $region16: #{tpu_custom_call.1} parent=1 // pred_region
      _
    $region17: #{tpu_custom_call.1} parent=1 // pred_fallthru
      _
    // Predicated region
    $region18: #{tpu_custom_call.1} parent=1 // pred_check
      _
    $region19: #{tpu_custom_call.1} parent=1 // pred_check_branch
      %41 = sbr.rel (0) target = $region21
    $region20: #{tpu_custom_call.1} parent=1 // pred_region
      %s43 = ssub.s32 48, 48
      %44 = vsyncadd [#allocation6], %s43
      %s45 = sshll.u32 [#allocation5], 4
      %s46 = int_to_ptr.vmem [resolvable:$true] %s45
      %51 = dma.hbm_to_vmem [thread:$0]  %s4, 48, %s46, [#allocation6], 16, 16, 1
    $region21: #{tpu_custom_call.1} parent=1 // pred_fallthru
      _
    // Predicated region
    $region22: #{tpu_custom_call.1} parent=1 // pred_check
      _
    $region23: #{tpu_custom_call.1} parent=1 // pred_check_branch
      %53 = sbr.rel (0) target = $region25
    $region24: #{tpu_custom_call.1} parent=1 // pred_region
      %s55 = ssub.s32 16, 16
      %56 = vsyncadd [#allocation6], %s55
      %s58 = sshll.u32 [#allocation7], 4
      %s59 = int_to_ptr.vmem [resolvable:$true] %s58
      %61 = dma.hbm_to_vmem [thread:$0]  %s5, 16, %s59, [#allocation6]
    $region25: #{tpu_custom_call.1} parent=1 // pred_fallthru
      _
    // Predicated region
    $region26: #{tpu_custom_call.1} parent=1 // pred_check
      _
    $region27: #{tpu_custom_call.1} parent=1 // pred_check_branch
      %63 = sbr.rel (0) target = $region29
    $region28: #{tpu_custom_call.1} parent=1 // pred_region
      _
    $region29: #{tpu_custom_call.1} parent=1 // pred_fallthru
      _
    // Predicated region
    $region30: #{tpu_custom_call.1} parent=1 // pred_check
      _
    $region31: #{tpu_custom_call.1} parent=1 // pred_check_branch
      %65 = sbr.rel (0) target = $region33
    $region32: #{tpu_custom_call.1} parent=1 // pred_region
      _
    $region33: #{tpu_custom_call.1} parent=1 // pred_fallthru
      _
    // Predicated region
    $region34: #{tpu_custom_call.1} parent=1 // pred_check
      _
    $region35: #{tpu_custom_call.1} parent=1 // pred_check_branch
      %67 = sbr.rel (0) target = $region37
    $region36: #{tpu_custom_call.1} parent=1 // pred_region
      _
    $region37: #{tpu_custom_call.1} parent=1 // pred_fallthru
      _
    // Predicated region
    $region38: #{tpu_custom_call.1} parent=1 // pred_check
      _
    $region39: #{tpu_custom_call.1} parent=1 // pred_check_branch
      %69 = sbr.rel (0) target = $region41
    $region40: #{tpu_custom_call.1} parent=1 // pred_region
      _
    $region41: #{tpu_custom_call.1} parent=1 // pred_fallthru
      _
    // Predicated region
    $region42: #{tpu_custom_call.1} parent=1 // pred_check
      _
    $region43: #{tpu_custom_call.1} parent=1 // pred_check_branch
      %71 = sbr.rel (0) target = $region45
    $region44: #{tpu_custom_call.1} parent=1 // pred_region
      _
    $region45: #{tpu_custom_call.1} parent=1 // pred_fallthru
      _
    // Predicated region
    $region46: #{tpu_custom_call.1} parent=1 // pred_check
      _
    $region47: #{tpu_custom_call.1} parent=1 // pred_check_branch
      %73 = sbr.rel (0) target = $region49
    $region48: #{tpu_custom_call.1} parent=1 // pred_region
      _
    $region49: #{tpu_custom_call.1} parent=1 // pred_fallthru
      _
    // Predicated region
    $region50: #{tpu_custom_call.1} parent=1 // pred_check
      _
    $region51: #{tpu_custom_call.1} parent=1 // pred_check_branch
      %75 = sbr.rel (0) target = $region53
    $region52: #{tpu_custom_call.1} parent=1 // pred_region
      _
    $region53: #{tpu_custom_call.1} parent=1 // pred_fallthru
      _
    // Predicated region
    $region54: #{tpu_custom_call.1} parent=1 // pred_check
      _
    $region55: #{tpu_custom_call.1} parent=1 // pred_check_branch
      %77 = sbr.rel (0) target = $region57
    $region56: #{tpu_custom_call.1} parent=1 // pred_region
      _
    $region57: #{tpu_custom_call.1} parent=1 // pred_fallthru
      _
    // Predicated region
    $region58: #{tpu_custom_call.1} parent=1 // pred_check
      _
    $region59: #{tpu_custom_call.1} parent=1 // pred_check_branch
      %79 = sbr.rel (0) target = $region61
    $region60: #{tpu_custom_call.1} parent=1 // pred_region
      _
    $region61: #{tpu_custom_call.1} parent=1 // pred_fallthru
      _
    // Predicated region
    $region62: #{tpu_custom_call.1} parent=1 // pred_check
      _
    $region63: #{tpu_custom_call.1} parent=1 // pred_check_branch
      %81 = sbr.rel (0) target = $region65
    $region64: #{tpu_custom_call.1} parent=1 // pred_region
      _
    $region65: #{tpu_custom_call.1} parent=1 // pred_fallthru
      _
    // Predicated region
    $region66: #{tpu_custom_call.1} parent=1 // pred_check
      _
    $region67: #{tpu_custom_call.1} parent=1 // pred_check_branch
      %83 = sbr.rel (0) target = $region69
    $region68: #{tpu_custom_call.1} parent=1 // pred_region
      %84 = dma.done [#allocation3], 128
    $region69: #{tpu_custom_call.1} parent=1 // pred_fallthru
      _
    // Predicated region
    $region70: #{tpu_custom_call.1} parent=1 // pred_check
      _
    $region71: #{tpu_custom_call.1} parent=1 // pred_check_branch
      %86 = sbr.rel (0) target = $region73
    $region72: #{tpu_custom_call.1} parent=1 // pred_region
      %87 = dma.done [#allocation6], 48
    $region73: #{tpu_custom_call.1} parent=1 // pred_fallthru
      _
    // Predicated region
    $region74: #{tpu_custom_call.1} parent=1 // pred_check
      _
    $region75: #{tpu_custom_call.1} parent=1 // pred_check_branch
      %89 = sbr.rel (0) target = $region77
    $region76: #{tpu_custom_call.1} parent=1 // pred_region
      %90 = dma.done [#allocation6], 16
    $region77: #{tpu_custom_call.1} parent=1 // pred_fallthru
      _
    %v91 = vld [vmem:[#allocation2] sm:$0xff]
    %v92 = vld [vmem:[%s1] sm:$0x1]
    %v93 = vld [vmem:[%s2] sm:$0xff]
    %v94 = vld [vmem:[%s2 + $0x8] sm:$0xff]
    %v95 = vld [vmem:[%s2 + $0x10] sm:$0xff]
    %v96 = vld [vmem:[%s2 + $0x18] sm:$0xff]
    %v97 = vld [vmem:[%s3] sm:$0x1]
    %98 = vxpose.xlu0.b32.start [1/16] %v91, 128
    %99 = vxpose.xlu0.b32.cont [2/16] 0.0, 128
    %100 = vxpose.xlu0.b32.cont [3/16] 0.0, 128
    %101 = vxpose.xlu0.b32.cont [4/16] 0.0, 128
    %102 = vxpose.xlu0.b32.cont [5/16] 0.0, 128
    %103 = vxpose.xlu0.b32.cont [6/16] 0.0, 128
    %104 = vxpose.xlu0.b32.cont [7/16] 0.0, 128
    %105 = vxpose.xlu0.b32.cont [8/16] 0.0, 128
    %106 = vxpose.xlu0.b32.cont [9/16] 0.0, 128
    %107 = vxpose.xlu0.b32.cont [10/16] 0.0, 128
    %108 = vxpose.xlu0.b32.cont [11/16] 0.0, 128
    %109 = vxpose.xlu0.b32.cont [12/16] 0.0, 128
    %110 = vxpose.xlu0.b32.cont [13/16] 0.0, 128
    %111 = vxpose.xlu0.b32.cont [14/16] 0.0, 128
    %112 = vxpose.xlu0.b32.cont [15/16] 0.0, 128
    %113 = vxpose.xlu0.b32.end [16/16] 0.0, 128
    %v114 = vpop.trf.xlu0
    %v115 = vpop.trf.xlu0
    %v116 = vpop.trf.xlu0
    %v117 = vpop.trf.xlu0
    %v118 = vpop.trf.xlu0
    %v119 = vpop.trf.xlu0
    %v120 = vpop.trf.xlu0
    %v121 = vpop.trf.xlu0
    %v122 = vpop.trf.xlu0
    %v123 = vpop.trf.xlu0
    %v124 = vpop.trf.xlu0
    %v125 = vpop.trf.xlu0
    %v126 = vpop.trf.xlu0
    %v127 = vpop.trf.xlu0
    %v128 = vpop.trf.xlu0
    %v129 = vpop.trf.xlu0
    %v130 = vlaneseq
    %v131 = vshrl.u32 %v130, 7
    %v132 = vsub.s32 0, %v131
    %v133 = vrot.slane %v114, %v132
    %135 = vbcast.lane.b32.xlu0 %v133, 256
    %v136 = vpop.permute.xlu0 %135
    %v137 = vlaneseq
    %v138 = vshrl.u32 %v137, 7
    %v139 = vsub.s32 1, %v138
    %v140 = vrot.slane %v114, %v139
    %142 = vbcast.lane.b32.xlu0 %v140, 256
    %v143 = vpop.permute.xlu0 %142
    %v144 = vlaneseq
    %v145 = vshrl.u32 %v144, 7
    %v146 = vsub.s32 2, %v145
    %v147 = vrot.slane %v114, %v146
    %149 = vbcast.lane.b32.xlu0 %v147, 256
    %v150 = vpop.permute.xlu0 %149
    %v151 = vlaneseq
    %v152 = vshrl.u32 %v151, 7
    %v153 = vsub.s32 3, %v152
    %v154 = vrot.slane %v114, %v153
    %156 = vbcast.lane.b32.xlu0 %v154, 256
    %v157 = vpop.permute.xlu0 %156
    %v158 = vlaneseq
    %v159 = vshrl.u32 %v158, 7
    %v160 = vsub.s32 4, %v159
    %v161 = vrot.slane %v114, %v160
    %163 = vbcast.lane.b32.xlu0 %v161, 256
    %v164 = vpop.permute.xlu0 %163
    %v165 = vlaneseq
    %v166 = vshrl.u32 %v165, 7
    %v167 = vsub.s32 5, %v166
    %v168 = vrot.slane %v114, %v167
    %170 = vbcast.lane.b32.xlu0 %v168, 256
    %v171 = vpop.permute.xlu0 %170
    %v172 = vlaneseq
    %v173 = vshrl.u32 %v172, 7
    %v174 = vsub.s32 6, %v173
    %v175 = vrot.slane %v114, %v174
    %177 = vbcast.lane.b32.xlu0 %v175, 256
    %v178 = vpop.permute.xlu0 %177
    %v179 = vlaneseq
    %v180 = vshrl.u32 %v179, 7
    %v181 = vsub.s32 7, %v180
    %v182 = vrot.slane %v114, %v181
    %184 = vbcast.lane.b32.xlu0 %v182, 256
    %v185 = vpop.permute.xlu0 %184
    %v186 = vlaneseq
    %v187 = vshrl.u32 %v186, 7
    %v188 = vsub.s32 0, %v187
    %v189 = vrot.slane %v115, %v188
    %191 = vbcast.lane.b32.xlu0 %v189, 256
    %v192 = vpop.permute.xlu0 %191
    %v193 = vlaneseq
    %v194 = vshrl.u32 %v193, 7
    %v195 = vsub.s32 1, %v194
    %v196 = vrot.slane %v115, %v195
    %198 = vbcast.lane.b32.xlu0 %v196, 256
    %v199 = vpop.permute.xlu0 %198
    %v200 = vlaneseq
    %v201 = vshrl.u32 %v200, 7
    %v202 = vsub.s32 2, %v201
    %v203 = vrot.slane %v115, %v202
    %205 = vbcast.lane.b32.xlu0 %v203, 256
    %v206 = vpop.permute.xlu0 %205
    %v207 = vlaneseq
    %v208 = vshrl.u32 %v207, 7
    %v209 = vsub.s32 3, %v208
    %v210 = vrot.slane %v115, %v209
    %212 = vbcast.lane.b32.xlu0 %v210, 256
    %v213 = vpop.permute.xlu0 %212
    %v214 = vlaneseq
    %v215 = vshrl.u32 %v214, 7
    %v216 = vsub.s32 4, %v215
    %v217 = vrot.slane %v115, %v216
    %219 = vbcast.lane.b32.xlu0 %v217, 256
    %v220 = vpop.permute.xlu0 %219
    %v221 = vlaneseq
    %v222 = vshrl.u32 %v221, 7
    %v223 = vsub.s32 5, %v222
    %v224 = vrot.slane %v115, %v223
    %226 = vbcast.lane.b32.xlu0 %v224, 256
    %v227 = vpop.permute.xlu0 %226
    %v228 = vlaneseq
    %v229 = vshrl.u32 %v228, 7
    %v230 = vsub.s32 6, %v229
    %v231 = vrot.slane %v115, %v230
    %233 = vbcast.lane.b32.xlu0 %v231, 256
    %v234 = vpop.permute.xlu0 %233
    %v235 = vlaneseq
    %v236 = vshrl.u32 %v235, 7
    %v237 = vsub.s32 7, %v236
    %v238 = vrot.slane %v115, %v237
    %240 = vbcast.lane.b32.xlu0 %v238, 256
    %v241 = vpop.permute.xlu0 %240
    %v243 = vlaneseq
    %v244 = vshrl.u32 %v243, 7
    %v245 = vsub.s32 0, %v244
    %v246 = vrot.slane %v92, %v245
    %v248 = vmul.f32 %v136, %v246
    %v249 = vmul.f32 %v143, %v246
    %v250 = vmul.f32 %v150, %v246
    %v251 = vmul.f32 %v157, %v246
    %v252 = vmul.f32 %v164, %v246
    %v253 = vmul.f32 %v171, %v246
    %v254 = vmul.f32 %v178, %v246
    %v255 = vmul.f32 %v185, %v246
    %v256 = vmul.f32 %v192, %v246
    %v257 = vmul.f32 %v199, %v246
    %v258 = vmul.f32 %v206, %v246
    %v259 = vmul.f32 %v213, %v246
    %v260 = vmul.f32 %v220, %v246
    %v261 = vmul.f32 %v227, %v246
    %v262 = vmul.f32 %v234, %v246
    %v263 = vmul.f32 %v241, %v246
    %v265 = vlaneseq
    %v266 = vshrl.u32 %v265, 7
    %v267 = vsub.s32 0, %v266
    %v268 = vrot.slane %v97, %v267
    %v270 = vadd.f32 %v248, %v268
    %v271 = vadd.f32 %v249, %v268
    %v272 = vadd.f32 %v250, %v268
    %v273 = vadd.f32 %v251, %v268
    %v274 = vadd.f32 %v252, %v268
    %v275 = vadd.f32 %v253, %v268
    %v276 = vadd.f32 %v254, %v268
    %v277 = vadd.f32 %v255, %v268
    %v278 = vadd.f32 %v256, %v268
    %v279 = vadd.f32 %v257, %v268
    %v280 = vadd.f32 %v258, %v268
    %v281 = vadd.f32 %v259, %v268
    %v282 = vadd.f32 %v260, %v268
    %v283 = vadd.f32 %v261, %v268
    %v284 = vadd.f32 %v262, %v268
    %v285 = vadd.f32 %v263, %v268
    %vm286 = vcmask 261120
    %v288 = vsel %vm286, 0.0, 0
    %290 = vmatprep.subr.mxu0 0.0
    %291 = vmatpush1.msra.mxu0 %v93
    %292 = vmatprep.subr.mxu0 0.0
    %293 = vmatpush1.msra.mxu0 %v94
    %294 = vmatprep.subr.mxu0 0.0
    %295 = vmatpush1.msra.mxu0 %v95
    %296 = vmatprep.subr.mxu0 0.0
    %297 = vmatpush1.msra.mxu0 %v96
    %298 = vmatprep.subr.mxu0 0.0
    %299 = vmatpush1.msra.mxu0 0.0
    %300 = vmatprep.subr.mxu0 0.0
    %301 = vmatpush1.msra.mxu0 0.0
    %302 = vmatprep.subr.mxu0 0.0
    %303 = vmatpush1.msra.mxu0 0.0
    %304 = vmatprep.subr.mxu0 0.0
    %305 = vmatpush1.msra.mxu0 0.0
    %306 = vmatprep.subr.mxu0 0.0
    %307 = vmatpush1.msra.mxu0 0.0
    %308 = vmatprep.subr.mxu0 0.0
    %309 = vmatpush1.msra.mxu0 0.0
    %310 = vmatprep.subr.mxu0 0.0
    %311 = vmatpush1.msra.mxu0 0.0
    %312 = vmatprep.subr.mxu0 0.0
    %313 = vmatpush1.msra.mxu0 0.0
    %314 = vmatprep.subr.mxu0 0.0
    %315 = vmatpush1.msra.mxu0 0.0
    %316 = vmatprep.subr.mxu0 0.0
    %317 = vmatpush1.msra.mxu0 0.0
    %318 = vmatprep.subr.mxu0 0.0
    %319 = vmatpush1.msra.mxu0 0.0
    %320 = vmatprep.subr.mxu0 0.0
    %321 = vmatpush1.msra.mxu0 0.0
    %322 = vmatprep.subr.mxu0 0.0
    %323 = vmatpush1.msra.mxu0 0.0
    %324 = vmatprep.subr.mxu0 0.0
    %325 = vmatpush1.msra.mxu0 0.0
    %326 = vmatprep.subr.mxu0 0.0
    %327 = vmatpush1.msra.mxu0 0.0
    %328 = vmatprep.subr.mxu0 0.0
    %329 = vmatpush1.msra.mxu0 0.0
    %330 = vmatprep.subr.mxu0 0.0
    %331 = vmatpush1.msra.mxu0 0.0
    %332 = vmatprep.subr.mxu0 0.0
    %333 = vmatpush1.msra.mxu0 0.0
    %334 = vmatprep.subr.mxu0 0.0
    %335 = vmatpush1.msra.mxu0 0.0
    %336 = vmatprep.subr.mxu0 0.0
    %337 = vmatpush1.msra.mxu0 0.0
    %338 = vmatprep.subr.mxu0 0.0
    %339 = vmatpush1.msra.mxu0 0.0
    %340 = vmatprep.subr.mxu0 0.0
    %341 = vmatpush1.msra.mxu0 0.0
    %342 = vmatprep.subr.mxu0 0.0
    %343 = vmatpush1.msra.mxu0 0.0
    %344 = vmatprep.subr.mxu0 0.0
    %345 = vmatpush1.msra.mxu0 0.0
    %346 = vmatprep.subr.mxu0 0.0
    %347 = vmatpush1.msra.mxu0 0.0
    %348 = vmatprep.subr.mxu0 0.0
    %349 = vmatpush1.msra.mxu0 0.0
    %350 = vmatprep.subr.mxu0 0.0
    %351 = vmatpush1.msra.mxu0 0.0
    %352 = vmatprep.subr.mxu0 0.0
    %353 = vmatpush1.msra.mxu0 0.0
    %354 = vmatprep.mubr.f32.mxu0 0.0
    %355 = vmatmul.mubr.f32.gmra.mrb[0].mxu0 %v288
    %v356 = vpop.f32.mrb[0].mxu0
    %v357 = vadd.f32 0.0, %v356
    %v358 = vpop.f32.mrb[0].mxu0
    %359 = vdwg.mxu0
    %v360 = vadd.f32 %v270, %v357
    %v361 = vxor.u32 %v360, 2147483648
    %v362 = vmul.f32 %v361, 1.442695
    %v363 = vpow.pop %v362
    %v364 = vadd.f32 %v363, 1.0
    %v365 = vrcp.pop %v364
    %v366 = vmul.f32 1.0, %v365
    %v367 = vtanh.pop %v360
    %v368 = vmul.f32 %v366, 0.0
    %370 = vrot.lane.b32.xlu0 %v367, 64
    %v371 = vpop.permute.xlu0 %370
    %v373 = vmul.f32 %v366, %v371
    %375 = vrot.lane.b32.xlu0 %v373, 32
    %v376 = vpop.permute.xlu0 %375
    %v378 = vadd.f32 %v368, %v376
    %v379 = vtanh.pop %v378
    %381 = vrot.lane.b32.xlu0 %v379, 64
    %v382 = vpop.permute.xlu0 %381
    %v384 = vmul.f32 %v366, %v382
    %386 = vrot.lane.b32.xlu0 %v384, 32
    %v387 = vpop.permute.xlu0 %386
    %v388 = vsel %vm286, %v387, 0
    %390 = vmatprep.subr.mxu0 0.0
    %391 = vmatpush1.msra.mxu0 %v93
    %392 = vmatprep.subr.mxu0 0.0
    %393 = vmatpush1.msra.mxu0 %v94
    %394 = vmatprep.subr.mxu0 0.0
    %395 = vmatpush1.msra.mxu0 %v95
    %396 = vmatprep.subr.mxu0 0.0
    %397 = vmatpush1.msra.mxu0 %v96
    %398 = vmatprep.subr.mxu0 0.0
    %399 = vmatpush1.msra.mxu0 0.0
    %400 = vmatprep.subr.mxu0 0.0
    %401 = vmatpush1.msra.mxu0 0.0
    %402 = vmatprep.subr.mxu0 0.0
    %403 = vmatpush1.msra.mxu0 0.0
    %404 = vmatprep.subr.mxu0 0.0
    %405 = vmatpush1.msra.mxu0 0.0
    %406 = vmatprep.subr.mxu0 0.0
    %407 = vmatpush1.msra.mxu0 0.0
    %408 = vmatprep.subr.mxu0 0.0
    %409 = vmatpush1.msra.mxu0 0.0
    %410 = vmatprep.subr.mxu0 0.0
    %411 = vmatpush1.msra.mxu0 0.0
    %412 = vmatprep.subr.mxu0 0.0
    %413 = vmatpush1.msra.mxu0 0.0
    %414 = vmatprep.subr.mxu0 0.0
    %415 = vmatpush1.msra.mxu0 0.0
    %416 = vmatprep.subr.mxu0 0.0
    %417 = vmatpush1.msra.mxu0 0.0
    %418 = vmatprep.subr.mxu0 0.0
    %419 = vmatpush1.msra.mxu0 0.0
    %420 = vmatprep.subr.mxu0 0.0
    %421 = vmatpush1.msra.mxu0 0.0
    %422 = vmatprep.subr.mxu0 0.0
    %423 = vmatpush1.msra.mxu0 0.0
    %424 = vmatprep.subr.mxu0 0.0
    %425 = vmatpush1.msra.mxu0 0.0
    %426 = vmatprep.subr.mxu0 0.0
    %427 = vmatpush1.msra.mxu0 0.0
    %428 = vmatprep.subr.mxu0 0.0
    %429 = vmatpush1.msra.mxu0 0.0
    %430 = vmatprep.subr.mxu0 0.0
    %431 = vmatpush1.msra.mxu0 0.0
    %432 = vmatprep.subr.mxu0 0.0
    %433 = vmatpush1.msra.mxu0 0.0
    %434 = vmatprep.subr.mxu0 0.0
    %435 = vmatpush1.msra.mxu0 0.0
    %436 = vmatprep.subr.mxu0 0.0
    %437 = vmatpush1.msra.mxu0 0.0
    %438 = vmatprep.subr.mxu0 0.0
    %439 = vmatpush1.msra.mxu0 0.0
    %440 = vmatprep.subr.mxu0 0.0
    %441 = vmatpush1.msra.mxu0 0.0
    %442 = vmatprep.subr.mxu0 0.0
    %443 = vmatpush1.msra.mxu0 0.0
    %444 = vmatprep.subr.mxu0 0.0
    %445 = vmatpush1.msra.mxu0 0.0
    %446 = vmatprep.subr.mxu0 0.0
    %447 = vmatpush1.msra.mxu0 0.0
    %448 = vmatprep.subr.mxu0 0.0
    %449 = vmatpush1.msra.mxu0 0.0
    %450 = vmatprep.subr.mxu0 0.0
    %451 = vmatpush1.msra.mxu0 0.0
    %452 = vmatprep.subr.mxu0 0.0
    %453 = vmatpush1.msra.mxu0 0.0
    %454 = vmatprep.mubr.f32.mxu0 0.0
    %455 = vmatmul.mubr.f32.gmra.mrb[0].mxu0 %v388
    %v456 = vpop.f32.mrb[0].mxu0
    %v457 = vadd.f32 0.0, %v456
    %v458 = vpop.f32.mrb[0].mxu0
    %459 = vdwg.mxu0
    %v460 = vadd.f32 %v271, %v457
    %v461 = vxor.u32 %v460, 2147483648
    %v462 = vmul.f32 %v461, 1.442695
    %v463 = vpow.pop %v462
    %v464 = vadd.f32 %v463, 1.0
    %v465 = vrcp.pop %v464
    %v466 = vmul.f32 1.0, %v465
    %v467 = vtanh.pop %v460
    %v468 = vmul.f32 %v466, %v378
    %470 = vrot.lane.b32.xlu0 %v467, 64
    %v471 = vpop.permute.xlu0 %470
    %v473 = vmul.f32 %v466, %v471
    %475 = vrot.lane.b32.xlu0 %v473, 32
    %v476 = vpop.permute.xlu0 %475
    %v478 = vadd.f32 %v468, %v476
    %v479 = vtanh.pop %v478
    %481 = vrot.lane.b32.xlu0 %v479, 64
    %v482 = vpop.permute.xlu0 %481
    %v484 = vmul.f32 %v466, %v482
    %486 = vrot.lane.b32.xlu0 %v484, 32
    %v487 = vpop.permute.xlu0 %486
    %v488 = vsel %vm286, %v487, 0
    %490 = vmatprep.subr.mxu0 0.0
    %491 = vmatpush1.msra.mxu0 %v93
    %492 = vmatprep.subr.mxu0 0.0
    %493 = vmatpush1.msra.mxu0 %v94
    %494 = vmatprep.subr.mxu0 0.0
    %495 = vmatpush1.msra.mxu0 %v95
    %496 = vmatprep.subr.mxu0 0.0
    %497 = vmatpush1.msra.mxu0 %v96
    %498 = vmatprep.subr.mxu0 0.0
    %499 = vmatpush1.msra.mxu0 0.0
    %500 = vmatprep.subr.mxu0 0.0
    %501 = vmatpush1.msra.mxu0 0.0
    %502 = vmatprep.subr.mxu0 0.0
    %503 = vmatpush1.msra.mxu0 0.0
    %504 = vmatprep.subr.mxu0 0.0
    %505 = vmatpush1.msra.mxu0 0.0
    %506 = vmatprep.subr.mxu0 0.0
    %507 = vmatpush1.msra.mxu0 0.0
    %508 = vmatprep.subr.mxu0 0.0
    %509 = vmatpush1.msra.mxu0 0.0
    %510 = vmatprep.subr.mxu0 0.0
    %511 = vmatpush1.msra.mxu0 0.0
    %512 = vmatprep.subr.mxu0 0.0
    %513 = vmatpush1.msra.mxu0 0.0
    %514 = vmatprep.subr.mxu0 0.0
    %515 = vmatpush1.msra.mxu0 0.0
    %516 = vmatprep.subr.mxu0 0.0
    %517 = vmatpush1.msra.mxu0 0.0
    %518 = vmatprep.subr.mxu0 0.0
    %519 = vmatpush1.msra.mxu0 0.0
    %520 = vmatprep.subr.mxu0 0.0
    %521 = vmatpush1.msra.mxu0 0.0
    %522 = vmatprep.subr.mxu0 0.0
    %523 = vmatpush1.msra.mxu0 0.0
    %524 = vmatprep.subr.mxu0 0.0
    %525 = vmatpush1.msra.mxu0 0.0
    %526 = vmatprep.subr.mxu0 0.0
    %527 = vmatpush1.msra.mxu0 0.0
    %528 = vmatprep.subr.mxu0 0.0
    %529 = vmatpush1.msra.mxu0 0.0
    %530 = vmatprep.subr.mxu0 0.0
    %531 = vmatpush1.msra.mxu0 0.0
    %532 = vmatprep.subr.mxu0 0.0
    %533 = vmatpush1.msra.mxu0 0.0
    %534 = vmatprep.subr.mxu0 0.0
    %535 = vmatpush1.msra.mxu0 0.0
    %536 = vmatprep.subr.mxu0 0.0
    %537 = vmatpush1.msra.mxu0 0.0
    %538 = vmatprep.subr.mxu0 0.0
    %539 = vmatpush1.msra.mxu0 0.0
    %540 = vmatprep.subr.mxu0 0.0
    %541 = vmatpush1.msra.mxu0 0.0
    %542 = vmatprep.subr.mxu0 0.0
    %543 = vmatpush1.msra.mxu0 0.0
    %544 = vmatprep.subr.mxu0 0.0
    %545 = vmatpush1.msra.mxu0 0.0
    %546 = vmatprep.subr.mxu0 0.0
    %547 = vmatpush1.msra.mxu0 0.0
    %548 = vmatprep.subr.mxu0 0.0
    %549 = vmatpush1.msra.mxu0 0.0
    %550 = vmatprep.subr.mxu0 0.0
    %551 = vmatpush1.msra.mxu0 0.0
    %552 = vmatprep.subr.mxu0 0.0
    %553 = vmatpush1.msra.mxu0 0.0
    %554 = vmatprep.mubr.f32.mxu0 0.0
    %555 = vmatmul.mubr.f32.gmra.mrb[0].mxu0 %v488
    %v556 = vpop.f32.mrb[0].mxu0
    %v557 = vadd.f32 0.0, %v556
    %v558 = vpop.f32.mrb[0].mxu0
    %559 = vdwg.mxu0
    %v560 = vadd.f32 %v272, %v557
    %v561 = vxor.u32 %v560, 2147483648
    %v562 = vmul.f32 %v561, 1.442695
    %v563 = vpow.pop %v562
    %v564 = vadd.f32 %v563, 1.0
    %v565 = vrcp.pop %v564
    %v566 = vmul.f32 1.0, %v565
    %v567 = vtanh.pop %v560
    %v568 = vmul.f32 %v566, %v478
    %570 = vrot.lane.b32.xlu0 %v567, 64
    %v571 = vpop.permute.xlu0 %570
    %v573 = vmul.f32 %v566, %v571
    %575 = vrot.lane.b32.xlu0 %v573, 32
    %v576 = vpop.permute.xlu0 %575
    %v578 = vadd.f32 %v568, %v576
    %v579 = vtanh.pop %v578
    %581 = vrot.lane.b32.xlu0 %v579, 64
    %v582 = vpop.permute.xlu0 %581
    %v584 = vmul.f32 %v566, %v582
    %586 = vrot.lane.b32.xlu0 %v584, 32
    %v587 = vpop.permute.xlu0 %586
    %v588 = vsel %vm286, %v587, 0
    %590 = vmatprep.subr.mxu0 0.0
    %591 = vmatpush1.msra.mxu0 %v93
    %592 = vmatprep.subr.mxu0 0.0
    %593 = vmatpush1.msra.mxu0 %v94
    %594 = vmatprep.subr.mxu0 0.0
    %595 = vmatpush1.msra.mxu0 %v95
    %596 = vmatprep.subr.mxu0 0.0
    %597 = vmatpush1.msra.mxu0 %v96
    %598 = vmatprep.subr.mxu0 0.0
    %599 = vmatpush1.msra.mxu0 0.0
    %600 = vmatprep.subr.mxu0 0.0
    %601 = vmatpush1.msra.mxu0 0.0
    %602 = vmatprep.subr.mxu0 0.0
    %603 = vmatpush1.msra.mxu0 0.0
    %604 = vmatprep.subr.mxu0 0.0
    %605 = vmatpush1.msra.mxu0 0.0
    %606 = vmatprep.subr.mxu0 0.0
    %607 = vmatpush1.msra.mxu0 0.0
    %608 = vmatprep.subr.mxu0 0.0
    %609 = vmatpush1.msra.mxu0 0.0
    %610 = vmatprep.subr.mxu0 0.0
    %611 = vmatpush1.msra.mxu0 0.0
    %612 = vmatprep.subr.mxu0 0.0
    %613 = vmatpush1.msra.mxu0 0.0
    %614 = vmatprep.subr.mxu0 0.0
    %615 = vmatpush1.msra.mxu0 0.0
    %616 = vmatprep.subr.mxu0 0.0
    %617 = vmatpush1.msra.mxu0 0.0
    %618 = vmatprep.subr.mxu0 0.0
    %619 = vmatpush1.msra.mxu0 0.0
    %620 = vmatprep.subr.mxu0 0.0
    %621 = vmatpush1.msra.mxu0 0.0
    %622 = vmatprep.subr.mxu0 0.0
    %623 = vmatpush1.msra.mxu0 0.0
    %624 = vmatprep.subr.mxu0 0.0
    %625 = vmatpush1.msra.mxu0 0.0
    %626 = vmatprep.subr.mxu0 0.0
    %627 = vmatpush1.msra.mxu0 0.0
    %628 = vmatprep.subr.mxu0 0.0
    %629 = vmatpush1.msra.mxu0 0.0
    %630 = vmatprep.subr.mxu0 0.0
    %631 = vmatpush1.msra.mxu0 0.0
    %632 = vmatprep.subr.mxu0 0.0
    %633 = vmatpush1.msra.mxu0 0.0
    %634 = vmatprep.subr.mxu0 0.0
    %635 = vmatpush1.msra.mxu0 0.0
    %636 = vmatprep.subr.mxu0 0.0
    %637 = vmatpush1.msra.mxu0 0.0
    %638 = vmatprep.subr.mxu0 0.0
    %639 = vmatpush1.msra.mxu0 0.0
    %640 = vmatprep.subr.mxu0 0.0
    %641 = vmatpush1.msra.mxu0 0.0
    %642 = vmatprep.subr.mxu0 0.0
    %643 = vmatpush1.msra.mxu0 0.0
    %644 = vmatprep.subr.mxu0 0.0
    %645 = vmatpush1.msra.mxu0 0.0
    %646 = vmatprep.subr.mxu0 0.0
    %647 = vmatpush1.msra.mxu0 0.0
    %648 = vmatprep.subr.mxu0 0.0
    %649 = vmatpush1.msra.mxu0 0.0
    %650 = vmatprep.subr.mxu0 0.0
    %651 = vmatpush1.msra.mxu0 0.0
    %652 = vmatprep.subr.mxu0 0.0
    %653 = vmatpush1.msra.mxu0 0.0
    %654 = vmatprep.mubr.f32.mxu0 0.0
    %655 = vmatmul.mubr.f32.gmra.mrb[0].mxu0 %v588
    %v656 = vpop.f32.mrb[0].mxu0
    %v657 = vadd.f32 0.0, %v656
    %v658 = vpop.f32.mrb[0].mxu0
    %659 = vdwg.mxu0
    %v660 = vadd.f32 %v273, %v657
    %v661 = vxor.u32 %v660, 2147483648
    %v662 = vmul.f32 %v661, 1.442695
    %v663 = vpow.pop %v662
    %v664 = vadd.f32 %v663, 1.0
    %v665 = vrcp.pop %v664
    %v666 = vmul.f32 1.0, %v665
    %v667 = vtanh.pop %v660
    %v668 = vmul.f32 %v666, %v578
    %670 = vrot.lane.b32.xlu0 %v667, 64
    %v671 = vpop.permute.xlu0 %670
    %v673 = vmul.f32 %v666, %v671
    %675 = vrot.lane.b32.xlu0 %v673, 32
    %v676 = vpop.permute.xlu0 %675
    %v678 = vadd.f32 %v668, %v676
    %v679 = vtanh.pop %v678
    %681 = vrot.lane.b32.xlu0 %v679, 64
    %v682 = vpop.permute.xlu0 %681
    %v684 = vmul.f32 %v666, %v682
    %686 = vrot.lane.b32.xlu0 %v684, 32
    %v687 = vpop.permute.xlu0 %686
    %v688 = vsel %vm286, %v687, 0
    %690 = vmatprep.subr.mxu0 0.0
    %691 = vmatpush1.msra.mxu0 %v93
    %692 = vmatprep.subr.mxu0 0.0
    %693 = vmatpush1.msra.mxu0 %v94
    %694 = vmatprep.subr.mxu0 0.0
    %695 = vmatpush1.msra.mxu0 %v95
    %696 = vmatprep.subr.mxu0 0.0
    %697 = vmatpush1.msra.mxu0 %v96
    %698 = vmatprep.subr.mxu0 0.0
    %699 = vmatpush1.msra.mxu0 0.0
    %700 = vmatprep.subr.mxu0 0.0
    %701 = vmatpush1.msra.mxu0 0.0
    %702 = vmatprep.subr.mxu0 0.0
    %703 = vmatpush1.msra.mxu0 0.0
    %704 = vmatprep.subr.mxu0 0.0
    %705 = vmatpush1.msra.mxu0 0.0
    %706 = vmatprep.subr.mxu0 0.0
    %707 = vmatpush1.msra.mxu0 0.0
    %708 = vmatprep.subr.mxu0 0.0
    %709 = vmatpush1.msra.mxu0 0.0
    %710 = vmatprep.subr.mxu0 0.0
    %711 = vmatpush1.msra.mxu0 0.0
    %712 = vmatprep.subr.mxu0 0.0
    %713 = vmatpush1.msra.mxu0 0.0
    %714 = vmatprep.subr.mxu0 0.0
    %715 = vmatpush1.msra.mxu0 0.0
    %716 = vmatprep.subr.mxu0 0.0
    %717 = vmatpush1.msra.mxu0 0.0
    %718 = vmatprep.subr.mxu0 0.0
    %719 = vmatpush1.msra.mxu0 0.0
    %720 = vmatprep.subr.mxu0 0.0
    %721 = vmatpush1.msra.mxu0 0.0
    %722 = vmatprep.subr.mxu0 0.0
    %723 = vmatpush1.msra.mxu0 0.0
    %724 = vmatprep.subr.mxu0 0.0
    %725 = vmatpush1.msra.mxu0 0.0
    %726 = vmatprep.subr.mxu0 0.0
    %727 = vmatpush1.msra.mxu0 0.0
    %728 = vmatprep.subr.mxu0 0.0
    %729 = vmatpush1.msra.mxu0 0.0
    %730 = vmatprep.subr.mxu0 0.0
    %731 = vmatpush1.msra.mxu0 0.0
    %732 = vmatprep.subr.mxu0 0.0
    %733 = vmatpush1.msra.mxu0 0.0
    %734 = vmatprep.subr.mxu0 0.0
    %735 = vmatpush1.msra.mxu0 0.0
    %736 = vmatprep.subr.mxu0 0.0
    %737 = vmatpush1.msra.mxu0 0.0
    %738 = vmatprep.subr.mxu0 0.0
    %739 = vmatpush1.msra.mxu0 0.0
    %740 = vmatprep.subr.mxu0 0.0
    %741 = vmatpush1.msra.mxu0 0.0
    %742 = vmatprep.subr.mxu0 0.0
    %743 = vmatpush1.msra.mxu0 0.0
    %744 = vmatprep.subr.mxu0 0.0
    %745 = vmatpush1.msra.mxu0 0.0
    %746 = vmatprep.subr.mxu0 0.0
    %747 = vmatpush1.msra.mxu0 0.0
    %748 = vmatprep.subr.mxu0 0.0
    %749 = vmatpush1.msra.mxu0 0.0
    %750 = vmatprep.subr.mxu0 0.0
    %751 = vmatpush1.msra.mxu0 0.0
    %752 = vmatprep.subr.mxu0 0.0
    %753 = vmatpush1.msra.mxu0 0.0
    %754 = vmatprep.mubr.f32.mxu0 0.0
    %755 = vmatmul.mubr.f32.gmra.mrb[0].mxu0 %v688
    %v756 = vpop.f32.mrb[0].mxu0
    %v757 = vadd.f32 0.0, %v756
    %v758 = vpop.f32.mrb[0].mxu0
    %759 = vdwg.mxu0
    %v760 = vadd.f32 %v274, %v757
    %v761 = vxor.u32 %v760, 2147483648
    %v762 = vmul.f32 %v761, 1.442695
    %v763 = vpow.pop %v762
    %v764 = vadd.f32 %v763, 1.0
    %v765 = vrcp.pop %v764
    %v766 = vmul.f32 1.0, %v765
    %v767 = vtanh.pop %v760
    %v768 = vmul.f32 %v766, %v678
    %770 = vrot.lane.b32.xlu0 %v767, 64
    %v771 = vpop.permute.xlu0 %770
    %v773 = vmul.f32 %v766, %v771
    %775 = vrot.lane.b32.xlu0 %v773, 32
    %v776 = vpop.permute.xlu0 %775
    %v778 = vadd.f32 %v768, %v776
    %v779 = vtanh.pop %v778
    %781 = vrot.lane.b32.xlu0 %v779, 64
    %v782 = vpop.permute.xlu0 %781
    %v784 = vmul.f32 %v766, %v782
    %786 = vrot.lane.b32.xlu0 %v784, 32
    %v787 = vpop.permute.xlu0 %786
    %v788 = vsel %vm286, %v787, 0
    %790 = vmatprep.subr.mxu0 0.0
    %791 = vmatpush1.msra.mxu0 %v93
    %792 = vmatprep.subr.mxu0 0.0
    %793 = vmatpush1.msra.mxu0 %v94
    %794 = vmatprep.subr.mxu0 0.0
    %795 = vmatpush1.msra.mxu0 %v95
    %796 = vmatprep.subr.mxu0 0.0
    %797 = vmatpush1.msra.mxu0 %v96
    %798 = vmatprep.subr.mxu0 0.0
    %799 = vmatpush1.msra.mxu0 0.0
    %800 = vmatprep.subr.mxu0 0.0
    %801 = vmatpush1.msra.mxu0 0.0
    %802 = vmatprep.subr.mxu0 0.0
    %803 = vmatpush1.msra.mxu0 0.0
    %804 = vmatprep.subr.mxu0 0.0
    %805 = vmatpush1.msra.mxu0 0.0
    %806 = vmatprep.subr.mxu0 0.0
    %807 = vmatpush1.msra.mxu0 0.0
    %808 = vmatprep.subr.mxu0 0.0
    %809 = vmatpush1.msra.mxu0 0.0
    %810 = vmatprep.subr.mxu0 0.0
    %811 = vmatpush1.msra.mxu0 0.0
    %812 = vmatprep.subr.mxu0 0.0
    %813 = vmatpush1.msra.mxu0 0.0
    %814 = vmatprep.subr.mxu0 0.0
    %815 = vmatpush1.msra.mxu0 0.0
    %816 = vmatprep.subr.mxu0 0.0
    %817 = vmatpush1.msra.mxu0 0.0
    %818 = vmatprep.subr.mxu0 0.0
    %819 = vmatpush1.msra.mxu0 0.0
    %820 = vmatprep.subr.mxu0 0.0
    %821 = vmatpush1.msra.mxu0 0.0
    %822 = vmatprep.subr.mxu0 0.0
    %823 = vmatpush1.msra.mxu0 0.0
    %824 = vmatprep.subr.mxu0 0.0
    %825 = vmatpush1.msra.mxu0 0.0
    %826 = vmatprep.subr.mxu0 0.0
    %827 = vmatpush1.msra.mxu0 0.0
    %828 = vmatprep.subr.mxu0 0.0
    %829 = vmatpush1.msra.mxu0 0.0
    %830 = vmatprep.subr.mxu0 0.0
    %831 = vmatpush1.msra.mxu0 0.0
    %832 = vmatprep.subr.mxu0 0.0
    %833 = vmatpush1.msra.mxu0 0.0
    %834 = vmatprep.subr.mxu0 0.0
    %835 = vmatpush1.msra.mxu0 0.0
    %836 = vmatprep.subr.mxu0 0.0
    %837 = vmatpush1.msra.mxu0 0.0
    %838 = vmatprep.subr.mxu0 0.0
    %839 = vmatpush1.msra.mxu0 0.0
    %840 = vmatprep.subr.mxu0 0.0
    %841 = vmatpush1.msra.mxu0 0.0
    %842 = vmatprep.subr.mxu0 0.0
    %843 = vmatpush1.msra.mxu0 0.0
    %844 = vmatprep.subr.mxu0 0.0
    %845 = vmatpush1.msra.mxu0 0.0
    %846 = vmatprep.subr.mxu0 0.0
    %847 = vmatpush1.msra.mxu0 0.0
    %848 = vmatprep.subr.mxu0 0.0
    %849 = vmatpush1.msra.mxu0 0.0
    %850 = vmatprep.subr.mxu0 0.0
    %851 = vmatpush1.msra.mxu0 0.0
    %852 = vmatprep.subr.mxu0 0.0
    %853 = vmatpush1.msra.mxu0 0.0
    %854 = vmatprep.mubr.f32.mxu0 0.0
    %855 = vmatmul.mubr.f32.gmra.mrb[0].mxu0 %v788
    %v856 = vpop.f32.mrb[0].mxu0
    %v857 = vadd.f32 0.0, %v856
    %v858 = vpop.f32.mrb[0].mxu0
    %859 = vdwg.mxu0
    %v860 = vadd.f32 %v275, %v857
    %v861 = vxor.u32 %v860, 2147483648
    %v862 = vmul.f32 %v861, 1.442695
    %v863 = vpow.pop %v862
    %v864 = vadd.f32 %v863, 1.0
    %v865 = vrcp.pop %v864
    %v866 = vmul.f32 1.0, %v865
    %v867 = vtanh.pop %v860
    %v868 = vmul.f32 %v866, %v778
    %870 = vrot.lane.b32.xlu0 %v867, 64
    %v871 = vpop.permute.xlu0 %870
    %v873 = vmul.f32 %v866, %v871
    %875 = vrot.lane.b32.xlu0 %v873, 32
    %v876 = vpop.permute.xlu0 %875
    %v878 = vadd.f32 %v868, %v876
    %v879 = vtanh.pop %v878
    %881 = vrot.lane.b32.xlu0 %v879, 64
    %v882 = vpop.permute.xlu0 %881
    %v884 = vmul.f32 %v866, %v882
    %886 = vrot.lane.b32.xlu0 %v884, 32
    %v887 = vpop.permute.xlu0 %886
    %v888 = vsel %vm286, %v887, 0
    %890 = vmatprep.subr.mxu0 0.0
    %891 = vmatpush1.msra.mxu0 %v93
    %892 = vmatprep.subr.mxu0 0.0
    %893 = vmatpush1.msra.mxu0 %v94
    %894 = vmatprep.subr.mxu0 0.0
    %895 = vmatpush1.msra.mxu0 %v95
    %896 = vmatprep.subr.mxu0 0.0
    %897 = vmatpush1.msra.mxu0 %v96
    %898 = vmatprep.subr.mxu0 0.0
    %899 = vmatpush1.msra.mxu0 0.0
    %900 = vmatprep.subr.mxu0 0.0
    %901 = vmatpush1.msra.mxu0 0.0
    %902 = vmatprep.subr.mxu0 0.0
    %903 = vmatpush1.msra.mxu0 0.0
    %904 = vmatprep.subr.mxu0 0.0
    %905 = vmatpush1.msra.mxu0 0.0
    %906 = vmatprep.subr.mxu0 0.0
    %907 = vmatpush1.msra.mxu0 0.0
    %908 = vmatprep.subr.mxu0 0.0
    %909 = vmatpush1.msra.mxu0 0.0
    %910 = vmatprep.subr.mxu0 0.0
    %911 = vmatpush1.msra.mxu0 0.0
    %912 = vmatprep.subr.mxu0 0.0
    %913 = vmatpush1.msra.mxu0 0.0
    %914 = vmatprep.subr.mxu0 0.0
    %915 = vmatpush1.msra.mxu0 0.0
    %916 = vmatprep.subr.mxu0 0.0
    %917 = vmatpush1.msra.mxu0 0.0
    %918 = vmatprep.subr.mxu0 0.0
    %919 = vmatpush1.msra.mxu0 0.0
    %920 = vmatprep.subr.mxu0 0.0
    %921 = vmatpush1.msra.mxu0 0.0
    %922 = vmatprep.subr.mxu0 0.0
    %923 = vmatpush1.msra.mxu0 0.0
    %924 = vmatprep.subr.mxu0 0.0
    %925 = vmatpush1.msra.mxu0 0.0
    %926 = vmatprep.subr.mxu0 0.0
    %927 = vmatpush1.msra.mxu0 0.0
    %928 = vmatprep.subr.mxu0 0.0
    %929 = vmatpush1.msra.mxu0 0.0
    %930 = vmatprep.subr.mxu0 0.0
    %931 = vmatpush1.msra.mxu0 0.0
    %932 = vmatprep.subr.mxu0 0.0
    %933 = vmatpush1.msra.mxu0 0.0
    %934 = vmatprep.subr.mxu0 0.0
    %935 = vmatpush1.msra.mxu0 0.0
    %936 = vmatprep.subr.mxu0 0.0
    %937 = vmatpush1.msra.mxu0 0.0
    %938 = vmatprep.subr.mxu0 0.0
    %939 = vmatpush1.msra.mxu0 0.0
    %940 = vmatprep.subr.mxu0 0.0
    %941 = vmatpush1.msra.mxu0 0.0
    %942 = vmatprep.subr.mxu0 0.0
    %943 = vmatpush1.msra.mxu0 0.0
    %944 = vmatprep.subr.mxu0 0.0
    %945 = vmatpush1.msra.mxu0 0.0
    %946 = vmatprep.subr.mxu0 0.0
    %947 = vmatpush1.msra.mxu0 0.0
    %948 = vmatprep.subr.mxu0 0.0
    %949 = vmatpush1.msra.mxu0 0.0
    %950 = vmatprep.subr.mxu0 0.0
    %951 = vmatpush1.msra.mxu0 0.0
    %952 = vmatprep.subr.mxu0 0.0
    %953 = vmatpush1.msra.mxu0 0.0
    %954 = vmatprep.mubr.f32.mxu0 0.0
    %955 = vmatmul.mubr.f32.gmra.mrb[0].mxu0 %v888
    %v956 = vpop.f32.mrb[0].mxu0
    %v957 = vadd.f32 0.0, %v956
    %v958 = vpop.f32.mrb[0].mxu0
    %959 = vdwg.mxu0
    %v960 = vadd.f32 %v276, %v957
    %v961 = vxor.u32 %v960, 2147483648
    %v962 = vmul.f32 %v961, 1.442695
    %v963 = vpow.pop %v962
    %v964 = vadd.f32 %v963, 1.0
    %v965 = vrcp.pop %v964
    %v966 = vmul.f32 1.0, %v965
    %v967 = vtanh.pop %v960
    %v968 = vmul.f32 %v966, %v878
    %970 = vrot.lane.b32.xlu0 %v967, 64
    %v971 = vpop.permute.xlu0 %970
    %v973 = vmul.f32 %v966, %v971
    %975 = vrot.lane.b32.xlu0 %v973, 32
    %v976 = vpop.permute.xlu0 %975
    %v978 = vadd.f32 %v968, %v976
    %v979 = vtanh.pop %v978
    %981 = vrot.lane.b32.xlu0 %v979, 64
    %v982 = vpop.permute.xlu0 %981
    %v984 = vmul.f32 %v966, %v982
    %986 = vrot.lane.b32.xlu0 %v984, 32
    %v987 = vpop.permute.xlu0 %986
    %v988 = vsel %vm286, %v987, 0
    %990 = vmatprep.subr.mxu0 0.0
    %991 = vmatpush1.msra.mxu0 %v93
    %992 = vmatprep.subr.mxu0 0.0
    %993 = vmatpush1.msra.mxu0 %v94
    %994 = vmatprep.subr.mxu0 0.0
    %995 = vmatpush1.msra.mxu0 %v95
    %996 = vmatprep.subr.mxu0 0.0
    %997 = vmatpush1.msra.mxu0 %v96
    %998 = vmatprep.subr.mxu0 0.0
    %999 = vmatpush1.msra.mxu0 0.0
    %1000 = vmatprep.subr.mxu0 0.0
    %1001 = vmatpush1.msra.mxu0 0.0
    %1002 = vmatprep.subr.mxu0 0.0
    %1003 = vmatpush1.msra.mxu0 0.0
    %1004 = vmatprep.subr.mxu0 0.0
    %1005 = vmatpush1.msra.mxu0 0.0
    %1006 = vmatprep.subr.mxu0 0.0
    %1007 = vmatpush1.msra.mxu0 0.0
    %1008 = vmatprep.subr.mxu0 0.0
    %1009 = vmatpush1.msra.mxu0 0.0
    %1010 = vmatprep.subr.mxu0 0.0
    %1011 = vmatpush1.msra.mxu0 0.0
    %1012 = vmatprep.subr.mxu0 0.0
    %1013 = vmatpush1.msra.mxu0 0.0
    %1014 = vmatprep.subr.mxu0 0.0
    %1015 = vmatpush1.msra.mxu0 0.0
    %1016 = vmatprep.subr.mxu0 0.0
    %1017 = vmatpush1.msra.mxu0 0.0
    %1018 = vmatprep.subr.mxu0 0.0
    %1019 = vmatpush1.msra.mxu0 0.0
    %1020 = vmatprep.subr.mxu0 0.0
    %1021 = vmatpush1.msra.mxu0 0.0
    %1022 = vmatprep.subr.mxu0 0.0
    %1023 = vmatpush1.msra.mxu0 0.0
    %1024 = vmatprep.subr.mxu0 0.0
    %1025 = vmatpush1.msra.mxu0 0.0
    %1026 = vmatprep.subr.mxu0 0.0
    %1027 = vmatpush1.msra.mxu0 0.0
    %1028 = vmatprep.subr.mxu0 0.0
    %1029 = vmatpush1.msra.mxu0 0.0
    %1030 = vmatprep.subr.mxu0 0.0
    %1031 = vmatpush1.msra.mxu0 0.0
    %1032 = vmatprep.subr.mxu0 0.0
    %1033 = vmatpush1.msra.mxu0 0.0
    %1034 = vmatprep.subr.mxu0 0.0
    %1035 = vmatpush1.msra.mxu0 0.0
    %1036 = vmatprep.subr.mxu0 0.0
    %1037 = vmatpush1.msra.mxu0 0.0
    %1038 = vmatprep.subr.mxu0 0.0
    %1039 = vmatpush1.msra.mxu0 0.0
    %1040 = vmatprep.subr.mxu0 0.0
    %1041 = vmatpush1.msra.mxu0 0.0
    %1042 = vmatprep.subr.mxu0 0.0
    %1043 = vmatpush1.msra.mxu0 0.0
    %1044 = vmatprep.subr.mxu0 0.0
    %1045 = vmatpush1.msra.mxu0 0.0
    %1046 = vmatprep.subr.mxu0 0.0
    %1047 = vmatpush1.msra.mxu0 0.0
    %1048 = vmatprep.subr.mxu0 0.0
    %1049 = vmatpush1.msra.mxu0 0.0
    %1050 = vmatprep.subr.mxu0 0.0
    %1051 = vmatpush1.msra.mxu0 0.0
    %1052 = vmatprep.subr.mxu0 0.0
    %1053 = vmatpush1.msra.mxu0 0.0
    %1054 = vmatprep.mubr.f32.mxu0 0.0
    %1055 = vmatmul.mubr.f32.gmra.mrb[0].mxu0 %v988
    %v1056 = vpop.f32.mrb[0].mxu0
    %v1057 = vadd.f32 0.0, %v1056
    %v1058 = vpop.f32.mrb[0].mxu0
    %1059 = vdwg.mxu0
    %v1060 = vadd.f32 %v277, %v1057
    %v1061 = vxor.u32 %v1060, 2147483648
    %v1062 = vmul.f32 %v1061, 1.442695
    %v1063 = vpow.pop %v1062
    %v1064 = vadd.f32 %v1063, 1.0
    %v1065 = vrcp.pop %v1064
    %v1066 = vmul.f32 1.0, %v1065
    %v1067 = vtanh.pop %v1060
    %v1068 = vmul.f32 %v1066, %v978
    %1070 = vrot.lane.b32.xlu0 %v1067, 64
    %v1071 = vpop.permute.xlu0 %1070
    %v1073 = vmul.f32 %v1066, %v1071
    %1075 = vrot.lane.b32.xlu0 %v1073, 32
    %v1076 = vpop.permute.xlu0 %1075
    %v1078 = vadd.f32 %v1068, %v1076
    %v1079 = vtanh.pop %v1078
    %1081 = vrot.lane.b32.xlu0 %v1079, 64
    %v1082 = vpop.permute.xlu0 %1081
    %v1084 = vmul.f32 %v1066, %v1082
    %1086 = vrot.lane.b32.xlu0 %v1084, 32
    %v1087 = vpop.permute.xlu0 %1086
    %v1088 = vsel %vm286, %v1087, 0
    %1090 = vmatprep.subr.mxu0 0.0
    %1091 = vmatpush1.msra.mxu0 %v93
    %1092 = vmatprep.subr.mxu0 0.0
    %1093 = vmatpush1.msra.mxu0 %v94
    %1094 = vmatprep.subr.mxu0 0.0
    %1095 = vmatpush1.msra.mxu0 %v95
    %1096 = vmatprep.subr.mxu0 0.0
    %1097 = vmatpush1.msra.mxu0 %v96
    %1098 = vmatprep.subr.mxu0 0.0
    %1099 = vmatpush1.msra.mxu0 0.0
    %1100 = vmatprep.subr.mxu0 0.0
    %1101 = vmatpush1.msra.mxu0 0.0
    %1102 = vmatprep.subr.mxu0 0.0
    %1103 = vmatpush1.msra.mxu0 0.0
    %1104 = vmatprep.subr.mxu0 0.0
    %1105 = vmatpush1.msra.mxu0 0.0
    %1106 = vmatprep.subr.mxu0 0.0
    %1107 = vmatpush1.msra.mxu0 0.0
    %1108 = vmatprep.subr.mxu0 0.0
    %1109 = vmatpush1.msra.mxu0 0.0
    %1110 = vmatprep.subr.mxu0 0.0
    %1111 = vmatpush1.msra.mxu0 0.0
    %1112 = vmatprep.subr.mxu0 0.0
    %1113 = vmatpush1.msra.mxu0 0.0
    %1114 = vmatprep.subr.mxu0 0.0
    %1115 = vmatpush1.msra.mxu0 0.0
    %1116 = vmatprep.subr.mxu0 0.0
    %1117 = vmatpush1.msra.mxu0 0.0
    %1118 = vmatprep.subr.mxu0 0.0
    %1119 = vmatpush1.msra.mxu0 0.0
    %1120 = vmatprep.subr.mxu0 0.0
    %1121 = vmatpush1.msra.mxu0 0.0
    %1122 = vmatprep.subr.mxu0 0.0
    %1123 = vmatpush1.msra.mxu0 0.0
    %1124 = vmatprep.subr.mxu0 0.0
    %1125 = vmatpush1.msra.mxu0 0.0
    %1126 = vmatprep.subr.mxu0 0.0
    %1127 = vmatpush1.msra.mxu0 0.0
    %1128 = vmatprep.subr.mxu0 0.0
    %1129 = vmatpush1.msra.mxu0 0.0
    %1130 = vmatprep.subr.mxu0 0.0
    %1131 = vmatpush1.msra.mxu0 0.0
    %1132 = vmatprep.subr.mxu0 0.0
    %1133 = vmatpush1.msra.mxu0 0.0
    %1134 = vmatprep.subr.mxu0 0.0
    %1135 = vmatpush1.msra.mxu0 0.0
    %1136 = vmatprep.subr.mxu0 0.0
    %1137 = vmatpush1.msra.mxu0 0.0
    %1138 = vmatprep.subr.mxu0 0.0
    %1139 = vmatpush1.msra.mxu0 0.0
    %1140 = vmatprep.subr.mxu0 0.0
    %1141 = vmatpush1.msra.mxu0 0.0
    %1142 = vmatprep.subr.mxu0 0.0
    %1143 = vmatpush1.msra.mxu0 0.0
    %1144 = vmatprep.subr.mxu0 0.0
    %1145 = vmatpush1.msra.mxu0 0.0
    %1146 = vmatprep.subr.mxu0 0.0
    %1147 = vmatpush1.msra.mxu0 0.0
    %1148 = vmatprep.subr.mxu0 0.0
    %1149 = vmatpush1.msra.mxu0 0.0
    %1150 = vmatprep.subr.mxu0 0.0
    %1151 = vmatpush1.msra.mxu0 0.0
    %1152 = vmatprep.subr.mxu0 0.0
    %1153 = vmatpush1.msra.mxu0 0.0
    %1154 = vmatprep.mubr.f32.mxu0 0.0
    %1155 = vmatmul.mubr.f32.gmra.mrb[0].mxu0 %v1088
    %v1156 = vpop.f32.mrb[0].mxu0
    %v1157 = vadd.f32 0.0, %v1156
    %v1158 = vpop.f32.mrb[0].mxu0
    %1159 = vdwg.mxu0
    %v1160 = vadd.f32 %v278, %v1157
    %v1161 = vxor.u32 %v1160, 2147483648
    %v1162 = vmul.f32 %v1161, 1.442695
    %v1163 = vpow.pop %v1162
    %v1164 = vadd.f32 %v1163, 1.0
    %v1165 = vrcp.pop %v1164
    %v1166 = vmul.f32 1.0, %v1165
    %v1167 = vtanh.pop %v1160
    %v1168 = vmul.f32 %v1166, %v1078
    %1170 = vrot.lane.b32.xlu0 %v1167, 64
    %v1171 = vpop.permute.xlu0 %1170
    %v1173 = vmul.f32 %v1166, %v1171
    %1175 = vrot.lane.b32.xlu0 %v1173, 32
    %v1176 = vpop.permute.xlu0 %1175
    %v1178 = vadd.f32 %v1168, %v1176
    %v1179 = vtanh.pop %v1178
    %1181 = vrot.lane.b32.xlu0 %v1179, 64
    %v1182 = vpop.permute.xlu0 %1181
    %v1184 = vmul.f32 %v1166, %v1182
    %1186 = vrot.lane.b32.xlu0 %v1184, 32
    %v1187 = vpop.permute.xlu0 %1186
    %v1188 = vsel %vm286, %v1187, 0
    %1190 = vmatprep.subr.mxu0 0.0
    %1191 = vmatpush1.msra.mxu0 %v93
    %1192 = vmatprep.subr.mxu0 0.0
    %1193 = vmatpush1.msra.mxu0 %v94
    %1194 = vmatprep.subr.mxu0 0.0
    %1195 = vmatpush1.msra.mxu0 %v95
    %1196 = vmatprep.subr.mxu0 0.0
    %1197 = vmatpush1.msra.mxu0 %v96
    %1198 = vmatprep.subr.mxu0 0.0
    %1199 = vmatpush1.msra.mxu0 0.0
    %1200 = vmatprep.subr.mxu0 0.0
    %1201 = vmatpush1.msra.mxu0 0.0
    %1202 = vmatprep.subr.mxu0 0.0
    %1203 = vmatpush1.msra.mxu0 0.0
    %1204 = vmatprep.subr.mxu0 0.0
    %1205 = vmatpush1.msra.mxu0 0.0
    %1206 = vmatprep.subr.mxu0 0.0
    %1207 = vmatpush1.msra.mxu0 0.0
    %1208 = vmatprep.subr.mxu0 0.0
    %1209 = vmatpush1.msra.mxu0 0.0
    %1210 = vmatprep.subr.mxu0 0.0
    %1211 = vmatpush1.msra.mxu0 0.0
    %1212 = vmatprep.subr.mxu0 0.0
    %1213 = vmatpush1.msra.mxu0 0.0
    %1214 = vmatprep.subr.mxu0 0.0
    %1215 = vmatpush1.msra.mxu0 0.0
    %1216 = vmatprep.subr.mxu0 0.0
    %1217 = vmatpush1.msra.mxu0 0.0
    %1218 = vmatprep.subr.mxu0 0.0
    %1219 = vmatpush1.msra.mxu0 0.0
    %1220 = vmatprep.subr.mxu0 0.0
    %1221 = vmatpush1.msra.mxu0 0.0
    %1222 = vmatprep.subr.mxu0 0.0
    %1223 = vmatpush1.msra.mxu0 0.0
    %1224 = vmatprep.subr.mxu0 0.0
    %1225 = vmatpush1.msra.mxu0 0.0
    %1226 = vmatprep.subr.mxu0 0.0
    %1227 = vmatpush1.msra.mxu0 0.0
    %1228 = vmatprep.subr.mxu0 0.0
    %1229 = vmatpush1.msra.mxu0 0.0
    %1230 = vmatprep.subr.mxu0 0.0
    %1231 = vmatpush1.msra.mxu0 0.0
    %1232 = vmatprep.subr.mxu0 0.0
    %1233 = vmatpush1.msra.mxu0 0.0
    %1234 = vmatprep.subr.mxu0 0.0
    %1235 = vmatpush1.msra.mxu0 0.0
    %1236 = vmatprep.subr.mxu0 0.0
    %1237 = vmatpush1.msra.mxu0 0.0
    %1238 = vmatprep.subr.mxu0 0.0
    %1239 = vmatpush1.msra.mxu0 0.0
    %1240 = vmatprep.subr.mxu0 0.0
    %1241 = vmatpush1.msra.mxu0 0.0
    %1242 = vmatprep.subr.mxu0 0.0
    %1243 = vmatpush1.msra.mxu0 0.0
    %1244 = vmatprep.subr.mxu0 0.0
    %1245 = vmatpush1.msra.mxu0 0.0
    %1246 = vmatprep.subr.mxu0 0.0
    %1247 = vmatpush1.msra.mxu0 0.0
    %1248 = vmatprep.subr.mxu0 0.0
    %1249 = vmatpush1.msra.mxu0 0.0
    %1250 = vmatprep.subr.mxu0 0.0
    %1251 = vmatpush1.msra.mxu0 0.0
    %1252 = vmatprep.subr.mxu0 0.0
    %1253 = vmatpush1.msra.mxu0 0.0
    %1254 = vmatprep.mubr.f32.mxu0 0.0
    %1255 = vmatmul.mubr.f32.gmra.mrb[0].mxu0 %v1188
    %v1256 = vpop.f32.mrb[0].mxu0
    %v1257 = vadd.f32 0.0, %v1256
    %v1258 = vpop.f32.mrb[0].mxu0
    %1259 = vdwg.mxu0
    %v1260 = vadd.f32 %v279, %v1257
    %v1261 = vxor.u32 %v1260, 2147483648
    %v1262 = vmul.f32 %v1261, 1.442695
    %v1263 = vpow.pop %v1262
    %v1264 = vadd.f32 %v1263, 1.0
    %v1265 = vrcp.pop %v1264
    %v1266 = vmul.f32 1.0, %v1265
    %v1267 = vtanh.pop %v1260
    %v1268 = vmul.f32 %v1266, %v1178
    %1270 = vrot.lane.b32.xlu0 %v1267, 64
    %v1271 = vpop.permute.xlu0 %1270
    %v1273 = vmul.f32 %v1266, %v1271
    %1275 = vrot.lane.b32.xlu0 %v1273, 32
    %v1276 = vpop.permute.xlu0 %1275
    %v1278 = vadd.f32 %v1268, %v1276
    %v1279 = vtanh.pop %v1278
    %1281 = vrot.lane.b32.xlu0 %v1279, 64
    %v1282 = vpop.permute.xlu0 %1281
    %v1284 = vmul.f32 %v1266, %v1282
    %1286 = vrot.lane.b32.xlu0 %v1284, 32
    %v1287 = vpop.permute.xlu0 %1286
    %v1288 = vsel %vm286, %v1287, 0
    %1290 = vmatprep.subr.mxu0 0.0
    %1291 = vmatpush1.msra.mxu0 %v93
    %1292 = vmatprep.subr.mxu0 0.0
    %1293 = vmatpush1.msra.mxu0 %v94
    %1294 = vmatprep.subr.mxu0 0.0
    %1295 = vmatpush1.msra.mxu0 %v95
    %1296 = vmatprep.subr.mxu0 0.0
    %1297 = vmatpush1.msra.mxu0 %v96
    %1298 = vmatprep.subr.mxu0 0.0
    %1299 = vmatpush1.msra.mxu0 0.0
    %1300 = vmatprep.subr.mxu0 0.0
    %1301 = vmatpush1.msra.mxu0 0.0
    %1302 = vmatprep.subr.mxu0 0.0
    %1303 = vmatpush1.msra.mxu0 0.0
    %1304 = vmatprep.subr.mxu0 0.0
    %1305 = vmatpush1.msra.mxu0 0.0
    %1306 = vmatprep.subr.mxu0 0.0
    %1307 = vmatpush1.msra.mxu0 0.0
    %1308 = vmatprep.subr.mxu0 0.0
    %1309 = vmatpush1.msra.mxu0 0.0
    %1310 = vmatprep.subr.mxu0 0.0
    %1311 = vmatpush1.msra.mxu0 0.0
    %1312 = vmatprep.subr.mxu0 0.0
    %1313 = vmatpush1.msra.mxu0 0.0
    %1314 = vmatprep.subr.mxu0 0.0
    %1315 = vmatpush1.msra.mxu0 0.0
    %1316 = vmatprep.subr.mxu0 0.0
    %1317 = vmatpush1.msra.mxu0 0.0
    %1318 = vmatprep.subr.mxu0 0.0
    %1319 = vmatpush1.msra.mxu0 0.0
    %1320 = vmatprep.subr.mxu0 0.0
    %1321 = vmatpush1.msra.mxu0 0.0
    %1322 = vmatprep.subr.mxu0 0.0
    %1323 = vmatpush1.msra.mxu0 0.0
    %1324 = vmatprep.subr.mxu0 0.0
    %1325 = vmatpush1.msra.mxu0 0.0
    %1326 = vmatprep.subr.mxu0 0.0
    %1327 = vmatpush1.msra.mxu0 0.0
    %1328 = vmatprep.subr.mxu0 0.0
    %1329 = vmatpush1.msra.mxu0 0.0
    %1330 = vmatprep.subr.mxu0 0.0
    %1331 = vmatpush1.msra.mxu0 0.0
    %1332 = vmatprep.subr.mxu0 0.0
    %1333 = vmatpush1.msra.mxu0 0.0
    %1334 = vmatprep.subr.mxu0 0.0
    %1335 = vmatpush1.msra.mxu0 0.0
    %1336 = vmatprep.subr.mxu0 0.0
    %1337 = vmatpush1.msra.mxu0 0.0
    %1338 = vmatprep.subr.mxu0 0.0
    %1339 = vmatpush1.msra.mxu0 0.0
    %1340 = vmatprep.subr.mxu0 0.0
    %1341 = vmatpush1.msra.mxu0 0.0
    %1342 = vmatprep.subr.mxu0 0.0
    %1343 = vmatpush1.msra.mxu0 0.0
    %1344 = vmatprep.subr.mxu0 0.0
    %1345 = vmatpush1.msra.mxu0 0.0
    %1346 = vmatprep.subr.mxu0 0.0
    %1347 = vmatpush1.msra.mxu0 0.0
    %1348 = vmatprep.subr.mxu0 0.0
    %1349 = vmatpush1.msra.mxu0 0.0
    %1350 = vmatprep.subr.mxu0 0.0
    %1351 = vmatpush1.msra.mxu0 0.0
    %1352 = vmatprep.subr.mxu0 0.0
    %1353 = vmatpush1.msra.mxu0 0.0
    %1354 = vmatprep.mubr.f32.mxu0 0.0
    %1355 = vmatmul.mubr.f32.gmra.mrb[0].mxu0 %v1288
    %v1356 = vpop.f32.mrb[0].mxu0
    %v1357 = vadd.f32 0.0, %v1356
    %v1358 = vpop.f32.mrb[0].mxu0
    %1359 = vdwg.mxu0
    %v1360 = vadd.f32 %v280, %v1357
    %v1361 = vxor.u32 %v1360, 2147483648
    %v1362 = vmul.f32 %v1361, 1.442695
    %v1363 = vpow.pop %v1362
    %v1364 = vadd.f32 %v1363, 1.0
    %v1365 = vrcp.pop %v1364
    %v1366 = vmul.f32 1.0, %v1365
    %v1367 = vtanh.pop %v1360
    %v1368 = vmul.f32 %v1366, %v1278
    %1370 = vrot.lane.b32.xlu0 %v1367, 64
    %v1371 = vpop.permute.xlu0 %1370
    %v1373 = vmul.f32 %v1366, %v1371
    %1375 = vrot.lane.b32.xlu0 %v1373, 32
    %v1376 = vpop.permute.xlu0 %1375
    %v1378 = vadd.f32 %v1368, %v1376
    %v1379 = vtanh.pop %v1378
    %1381 = vrot.lane.b32.xlu0 %v1379, 64
    %v1382 = vpop.permute.xlu0 %1381
    %v1384 = vmul.f32 %v1366, %v1382
    %1386 = vrot.lane.b32.xlu0 %v1384, 32
    %v1387 = vpop.permute.xlu0 %1386
    %v1388 = vsel %vm286, %v1387, 0
    %1390 = vmatprep.subr.mxu0 0.0
    %1391 = vmatpush1.msra.mxu0 %v93
    %1392 = vmatprep.subr.mxu0 0.0
    %1393 = vmatpush1.msra.mxu0 %v94
    %1394 = vmatprep.subr.mxu0 0.0
    %1395 = vmatpush1.msra.mxu0 %v95
    %1396 = vmatprep.subr.mxu0 0.0
    %1397 = vmatpush1.msra.mxu0 %v96
    %1398 = vmatprep.subr.mxu0 0.0
    %1399 = vmatpush1.msra.mxu0 0.0
    %1400 = vmatprep.subr.mxu0 0.0
    %1401 = vmatpush1.msra.mxu0 0.0
    %1402 = vmatprep.subr.mxu0 0.0
    %1403 = vmatpush1.msra.mxu0 0.0
    %1404 = vmatprep.subr.mxu0 0.0
    %1405 = vmatpush1.msra.mxu0 0.0
    %1406 = vmatprep.subr.mxu0 0.0
    %1407 = vmatpush1.msra.mxu0 0.0
    %1408 = vmatprep.subr.mxu0 0.0
    %1409 = vmatpush1.msra.mxu0 0.0
    %1410 = vmatprep.subr.mxu0 0.0
    %1411 = vmatpush1.msra.mxu0 0.0
    %1412 = vmatprep.subr.mxu0 0.0
    %1413 = vmatpush1.msra.mxu0 0.0
    %1414 = vmatprep.subr.mxu0 0.0
    %1415 = vmatpush1.msra.mxu0 0.0
    %1416 = vmatprep.subr.mxu0 0.0
    %1417 = vmatpush1.msra.mxu0 0.0
    %1418 = vmatprep.subr.mxu0 0.0
    %1419 = vmatpush1.msra.mxu0 0.0
    %1420 = vmatprep.subr.mxu0 0.0
    %1421 = vmatpush1.msra.mxu0 0.0
    %1422 = vmatprep.subr.mxu0 0.0
    %1423 = vmatpush1.msra.mxu0 0.0
    %1424 = vmatprep.subr.mxu0 0.0
    %1425 = vmatpush1.msra.mxu0 0.0
    %1426 = vmatprep.subr.mxu0 0.0
    %1427 = vmatpush1.msra.mxu0 0.0
    %1428 = vmatprep.subr.mxu0 0.0
    %1429 = vmatpush1.msra.mxu0 0.0
    %1430 = vmatprep.subr.mxu0 0.0
    %1431 = vmatpush1.msra.mxu0 0.0
    %1432 = vmatprep.subr.mxu0 0.0
    %1433 = vmatpush1.msra.mxu0 0.0
    %1434 = vmatprep.subr.mxu0 0.0
    %1435 = vmatpush1.msra.mxu0 0.0
    %1436 = vmatprep.subr.mxu0 0.0
    %1437 = vmatpush1.msra.mxu0 0.0
    %1438 = vmatprep.subr.mxu0 0.0
    %1439 = vmatpush1.msra.mxu0 0.0
    %1440 = vmatprep.subr.mxu0 0.0
    %1441 = vmatpush1.msra.mxu0 0.0
    %1442 = vmatprep.subr.mxu0 0.0
    %1443 = vmatpush1.msra.mxu0 0.0
    %1444 = vmatprep.subr.mxu0 0.0
    %1445 = vmatpush1.msra.mxu0 0.0
    %1446 = vmatprep.subr.mxu0 0.0
    %1447 = vmatpush1.msra.mxu0 0.0
    %1448 = vmatprep.subr.mxu0 0.0
    %1449 = vmatpush1.msra.mxu0 0.0
    %1450 = vmatprep.subr.mxu0 0.0
    %1451 = vmatpush1.msra.mxu0 0.0
    %1452 = vmatprep.subr.mxu0 0.0
    %1453 = vmatpush1.msra.mxu0 0.0
    %1454 = vmatprep.mubr.f32.mxu0 0.0
    %1455 = vmatmul.mubr.f32.gmra.mrb[0].mxu0 %v1388
    %v1456 = vpop.f32.mrb[0].mxu0
    %v1457 = vadd.f32 0.0, %v1456
    %v1458 = vpop.f32.mrb[0].mxu0
    %1459 = vdwg.mxu0
    %v1460 = vadd.f32 %v281, %v1457
    %v1461 = vxor.u32 %v1460, 2147483648
    %v1462 = vmul.f32 %v1461, 1.442695
    %v1463 = vpow.pop %v1462
    %v1464 = vadd.f32 %v1463, 1.0
    %v1465 = vrcp.pop %v1464
    %v1466 = vmul.f32 1.0, %v1465
    %v1467 = vtanh.pop %v1460
    %v1468 = vmul.f32 %v1466, %v1378
    %1470 = vrot.lane.b32.xlu0 %v1467, 64
    %v1471 = vpop.permute.xlu0 %1470
    %v1473 = vmul.f32 %v1466, %v1471
    %1475 = vrot.lane.b32.xlu0 %v1473, 32
    %v1476 = vpop.permute.xlu0 %1475
    %v1478 = vadd.f32 %v1468, %v1476
    %v1479 = vtanh.pop %v1478
    %1481 = vrot.lane.b32.xlu0 %v1479, 64
    %v1482 = vpop.permute.xlu0 %1481
    %v1484 = vmul.f32 %v1466, %v1482
    %1486 = vrot.lane.b32.xlu0 %v1484, 32
    %v1487 = vpop.permute.xlu0 %1486
    %v1488 = vsel %vm286, %v1487, 0
    %1490 = vmatprep.subr.mxu0 0.0
    %1491 = vmatpush1.msra.mxu0 %v93
    %1492 = vmatprep.subr.mxu0 0.0
    %1493 = vmatpush1.msra.mxu0 %v94
    %1494 = vmatprep.subr.mxu0 0.0
    %1495 = vmatpush1.msra.mxu0 %v95
    %1496 = vmatprep.subr.mxu0 0.0
    %1497 = vmatpush1.msra.mxu0 %v96
    %1498 = vmatprep.subr.mxu0 0.0
    %1499 = vmatpush1.msra.mxu0 0.0
    %1500 = vmatprep.subr.mxu0 0.0
    %1501 = vmatpush1.msra.mxu0 0.0
    %1502 = vmatprep.subr.mxu0 0.0
    %1503 = vmatpush1.msra.mxu0 0.0
    %1504 = vmatprep.subr.mxu0 0.0
    %1505 = vmatpush1.msra.mxu0 0.0
    %1506 = vmatprep.subr.mxu0 0.0
    %1507 = vmatpush1.msra.mxu0 0.0
    %1508 = vmatprep.subr.mxu0 0.0
    %1509 = vmatpush1.msra.mxu0 0.0
    %1510 = vmatprep.subr.mxu0 0.0
    %1511 = vmatpush1.msra.mxu0 0.0
    %1512 = vmatprep.subr.mxu0 0.0
    %1513 = vmatpush1.msra.mxu0 0.0
    %1514 = vmatprep.subr.mxu0 0.0
    %1515 = vmatpush1.msra.mxu0 0.0
    %1516 = vmatprep.subr.mxu0 0.0
    %1517 = vmatpush1.msra.mxu0 0.0
    %1518 = vmatprep.subr.mxu0 0.0
    %1519 = vmatpush1.msra.mxu0 0.0
    %1520 = vmatprep.subr.mxu0 0.0
    %1521 = vmatpush1.msra.mxu0 0.0
    %1522 = vmatprep.subr.mxu0 0.0
    %1523 = vmatpush1.msra.mxu0 0.0
    %1524 = vmatprep.subr.mxu0 0.0
    %1525 = vmatpush1.msra.mxu0 0.0
    %1526 = vmatprep.subr.mxu0 0.0
    %1527 = vmatpush1.msra.mxu0 0.0
    %1528 = vmatprep.subr.mxu0 0.0
    %1529 = vmatpush1.msra.mxu0 0.0
    %1530 = vmatprep.subr.mxu0 0.0
    %1531 = vmatpush1.msra.mxu0 0.0
    %1532 = vmatprep.subr.mxu0 0.0
    %1533 = vmatpush1.msra.mxu0 0.0
    %1534 = vmatprep.subr.mxu0 0.0
    %1535 = vmatpush1.msra.mxu0 0.0
    %1536 = vmatprep.subr.mxu0 0.0
    %1537 = vmatpush1.msra.mxu0 0.0
    %1538 = vmatprep.subr.mxu0 0.0
    %1539 = vmatpush1.msra.mxu0 0.0
    %1540 = vmatprep.subr.mxu0 0.0
    %1541 = vmatpush1.msra.mxu0 0.0
    %1542 = vmatprep.subr.mxu0 0.0
    %1543 = vmatpush1.msra.mxu0 0.0
    %1544 = vmatprep.subr.mxu0 0.0
    %1545 = vmatpush1.msra.mxu0 0.0
    %1546 = vmatprep.subr.mxu0 0.0
    %1547 = vmatpush1.msra.mxu0 0.0
    %1548 = vmatprep.subr.mxu0 0.0
    %1549 = vmatpush1.msra.mxu0 0.0
    %1550 = vmatprep.subr.mxu0 0.0
    %1551 = vmatpush1.msra.mxu0 0.0
    %1552 = vmatprep.subr.mxu0 0.0
    %1553 = vmatpush1.msra.mxu0 0.0
    %1554 = vmatprep.mubr.f32.mxu0 0.0
    %1555 = vmatmul.mubr.f32.gmra.mrb[0].mxu0 %v1488
    %v1556 = vpop.f32.mrb[0].mxu0
    %v1557 = vadd.f32 0.0, %v1556
    %v1558 = vpop.f32.mrb[0].mxu0
    %1559 = vdwg.mxu0
    %v1560 = vadd.f32 %v282, %v1557
    %v1561 = vxor.u32 %v1560, 2147483648
    %v1562 = vmul.f32 %v1561, 1.442695
    %v1563 = vpow.pop %v1562
    %v1564 = vadd.f32 %v1563, 1.0
    %v1565 = vrcp.pop %v1564
    %v1566 = vmul.f32 1.0, %v1565
    %v1567 = vtanh.pop %v1560
    %v1568 = vmul.f32 %v1566, %v1478
    %1570 = vrot.lane.b32.xlu0 %v1567, 64
    %v1571 = vpop.permute.xlu0 %1570
    %v1573 = vmul.f32 %v1566, %v1571
    %1575 = vrot.lane.b32.xlu0 %v1573, 32
    %v1576 = vpop.permute.xlu0 %1575
    %v1578 = vadd.f32 %v1568, %v1576
    %v1579 = vtanh.pop %v1578
    %1581 = vrot.lane.b32.xlu0 %v1579, 64
    %v1582 = vpop.permute.xlu0 %1581
    %v1584 = vmul.f32 %v1566, %v1582
    %1586 = vrot.lane.b32.xlu0 %v1584, 32
    %v1587 = vpop.permute.xlu0 %1586
    %v1588 = vsel %vm286, %v1587, 0
    %1590 = vmatprep.subr.mxu0 0.0
    %1591 = vmatpush1.msra.mxu0 %v93
    %1592 = vmatprep.subr.mxu0 0.0
    %1593 = vmatpush1.msra.mxu0 %v94
    %1594 = vmatprep.subr.mxu0 0.0
    %1595 = vmatpush1.msra.mxu0 %v95
    %1596 = vmatprep.subr.mxu0 0.0
    %1597 = vmatpush1.msra.mxu0 %v96
    %1598 = vmatprep.subr.mxu0 0.0
    %1599 = vmatpush1.msra.mxu0 0.0
    %1600 = vmatprep.subr.mxu0 0.0
    %1601 = vmatpush1.msra.mxu0 0.0
    %1602 = vmatprep.subr.mxu0 0.0
    %1603 = vmatpush1.msra.mxu0 0.0
    %1604 = vmatprep.subr.mxu0 0.0
    %1605 = vmatpush1.msra.mxu0 0.0
    %1606 = vmatprep.subr.mxu0 0.0
    %1607 = vmatpush1.msra.mxu0 0.0
    %1608 = vmatprep.subr.mxu0 0.0
    %1609 = vmatpush1.msra.mxu0 0.0
    %1610 = vmatprep.subr.mxu0 0.0
    %1611 = vmatpush1.msra.mxu0 0.0
    %1612 = vmatprep.subr.mxu0 0.0
    %1613 = vmatpush1.msra.mxu0 0.0
    %1614 = vmatprep.subr.mxu0 0.0
    %1615 = vmatpush1.msra.mxu0 0.0
    %1616 = vmatprep.subr.mxu0 0.0
    %1617 = vmatpush1.msra.mxu0 0.0
    %1618 = vmatprep.subr.mxu0 0.0
    %1619 = vmatpush1.msra.mxu0 0.0
    %1620 = vmatprep.subr.mxu0 0.0
    %1621 = vmatpush1.msra.mxu0 0.0
    %1622 = vmatprep.subr.mxu0 0.0
    %1623 = vmatpush1.msra.mxu0 0.0
    %1624 = vmatprep.subr.mxu0 0.0
    %1625 = vmatpush1.msra.mxu0 0.0
    %1626 = vmatprep.subr.mxu0 0.0
    %1627 = vmatpush1.msra.mxu0 0.0
    %1628 = vmatprep.subr.mxu0 0.0
    %1629 = vmatpush1.msra.mxu0 0.0
    %1630 = vmatprep.subr.mxu0 0.0
    %1631 = vmatpush1.msra.mxu0 0.0
    %1632 = vmatprep.subr.mxu0 0.0
    %1633 = vmatpush1.msra.mxu0 0.0
    %1634 = vmatprep.subr.mxu0 0.0
    %1635 = vmatpush1.msra.mxu0 0.0
    %1636 = vmatprep.subr.mxu0 0.0
    %1637 = vmatpush1.msra.mxu0 0.0
    %1638 = vmatprep.subr.mxu0 0.0
    %1639 = vmatpush1.msra.mxu0 0.0
    %1640 = vmatprep.subr.mxu0 0.0
    %1641 = vmatpush1.msra.mxu0 0.0
    %1642 = vmatprep.subr.mxu0 0.0
    %1643 = vmatpush1.msra.mxu0 0.0
    %1644 = vmatprep.subr.mxu0 0.0
    %1645 = vmatpush1.msra.mxu0 0.0
    %1646 = vmatprep.subr.mxu0 0.0
    %1647 = vmatpush1.msra.mxu0 0.0
    %1648 = vmatprep.subr.mxu0 0.0
    %1649 = vmatpush1.msra.mxu0 0.0
    %1650 = vmatprep.subr.mxu0 0.0
    %1651 = vmatpush1.msra.mxu0 0.0
    %1652 = vmatprep.subr.mxu0 0.0
    %1653 = vmatpush1.msra.mxu0 0.0
    %1654 = vmatprep.mubr.f32.mxu0 0.0
    %1655 = vmatmul.mubr.f32.gmra.mrb[0].mxu0 %v1588
    %v1656 = vpop.f32.mrb[0].mxu0
    %v1657 = vadd.f32 0.0, %v1656
    %v1658 = vpop.f32.mrb[0].mxu0
    %1659 = vdwg.mxu0
    %v1660 = vadd.f32 %v283, %v1657
    %v1661 = vxor.u32 %v1660, 2147483648
    %v1662 = vmul.f32 %v1661, 1.442695
    %v1663 = vpow.pop %v1662
    %v1664 = vadd.f32 %v1663, 1.0
    %v1665 = vrcp.pop %v1664
    %v1666 = vmul.f32 1.0, %v1665
    %v1667 = vtanh.pop %v1660
    %v1668 = vmul.f32 %v1666, %v1578
    %1670 = vrot.lane.b32.xlu0 %v1667, 64
    %v1671 = vpop.permute.xlu0 %1670
    %v1673 = vmul.f32 %v1666, %v1671
    %1675 = vrot.lane.b32.xlu0 %v1673, 32
    %v1676 = vpop.permute.xlu0 %1675
    %v1678 = vadd.f32 %v1668, %v1676
    %v1679 = vtanh.pop %v1678
    %1681 = vrot.lane.b32.xlu0 %v1679, 64
    %v1682 = vpop.permute.xlu0 %1681
    %v1684 = vmul.f32 %v1666, %v1682
    %1686 = vrot.lane.b32.xlu0 %v1684, 32
    %v1687 = vpop.permute.xlu0 %1686
    %v1688 = vsel %vm286, %v1687, 0
    %1690 = vmatprep.subr.mxu0 0.0
    %1691 = vmatpush1.msra.mxu0 %v93
    %1692 = vmatprep.subr.mxu0 0.0
    %1693 = vmatpush1.msra.mxu0 %v94
    %1694 = vmatprep.subr.mxu0 0.0
    %1695 = vmatpush1.msra.mxu0 %v95
    %1696 = vmatprep.subr.mxu0 0.0
    %1697 = vmatpush1.msra.mxu0 %v96
    %1698 = vmatprep.subr.mxu0 0.0
    %1699 = vmatpush1.msra.mxu0 0.0
    %1700 = vmatprep.subr.mxu0 0.0
    %1701 = vmatpush1.msra.mxu0 0.0
    %1702 = vmatprep.subr.mxu0 0.0
    %1703 = vmatpush1.msra.mxu0 0.0
    %1704 = vmatprep.subr.mxu0 0.0
    %1705 = vmatpush1.msra.mxu0 0.0
    %1706 = vmatprep.subr.mxu0 0.0
    %1707 = vmatpush1.msra.mxu0 0.0
    %1708 = vmatprep.subr.mxu0 0.0
    %1709 = vmatpush1.msra.mxu0 0.0
    %1710 = vmatprep.subr.mxu0 0.0
    %1711 = vmatpush1.msra.mxu0 0.0
    %1712 = vmatprep.subr.mxu0 0.0
    %1713 = vmatpush1.msra.mxu0 0.0
    %1714 = vmatprep.subr.mxu0 0.0
    %1715 = vmatpush1.msra.mxu0 0.0
    %1716 = vmatprep.subr.mxu0 0.0
    %1717 = vmatpush1.msra.mxu0 0.0
    %1718 = vmatprep.subr.mxu0 0.0
    %1719 = vmatpush1.msra.mxu0 0.0
    %1720 = vmatprep.subr.mxu0 0.0
    %1721 = vmatpush1.msra.mxu0 0.0
    %1722 = vmatprep.subr.mxu0 0.0
    %1723 = vmatpush1.msra.mxu0 0.0
    %1724 = vmatprep.subr.mxu0 0.0
    %1725 = vmatpush1.msra.mxu0 0.0
    %1726 = vmatprep.subr.mxu0 0.0
    %1727 = vmatpush1.msra.mxu0 0.0
    %1728 = vmatprep.subr.mxu0 0.0
    %1729 = vmatpush1.msra.mxu0 0.0
    %1730 = vmatprep.subr.mxu0 0.0
    %1731 = vmatpush1.msra.mxu0 0.0
    %1732 = vmatprep.subr.mxu0 0.0
    %1733 = vmatpush1.msra.mxu0 0.0
    %1734 = vmatprep.subr.mxu0 0.0
    %1735 = vmatpush1.msra.mxu0 0.0
    %1736 = vmatprep.subr.mxu0 0.0
    %1737 = vmatpush1.msra.mxu0 0.0
    %1738 = vmatprep.subr.mxu0 0.0
    %1739 = vmatpush1.msra.mxu0 0.0
    %1740 = vmatprep.subr.mxu0 0.0
    %1741 = vmatpush1.msra.mxu0 0.0
    %1742 = vmatprep.subr.mxu0 0.0
    %1743 = vmatpush1.msra.mxu0 0.0
    %1744 = vmatprep.subr.mxu0 0.0
    %1745 = vmatpush1.msra.mxu0 0.0
    %1746 = vmatprep.subr.mxu0 0.0
    %1747 = vmatpush1.msra.mxu0 0.0
    %1748 = vmatprep.subr.mxu0 0.0
    %1749 = vmatpush1.msra.mxu0 0.0
    %1750 = vmatprep.subr.mxu0 0.0
    %1751 = vmatpush1.msra.mxu0 0.0
    %1752 = vmatprep.subr.mxu0 0.0
    %1753 = vmatpush1.msra.mxu0 0.0
    %1754 = vmatprep.mubr.f32.mxu0 0.0
    %1755 = vmatmul.mubr.f32.gmra.mrb[0].mxu0 %v1688
    %v1756 = vpop.f32.mrb[0].mxu0
    %v1757 = vadd.f32 0.0, %v1756
    %v1758 = vpop.f32.mrb[0].mxu0
    %1759 = vdwg.mxu0
    %v1760 = vadd.f32 %v284, %v1757
    %v1761 = vxor.u32 %v1760, 2147483648
    %v1762 = vmul.f32 %v1761, 1.442695
    %v1763 = vpow.pop %v1762
    %v1764 = vadd.f32 %v1763, 1.0
    %v1765 = vrcp.pop %v1764
    %v1766 = vmul.f32 1.0, %v1765
    %v1767 = vtanh.pop %v1760
    %v1768 = vmul.f32 %v1766, %v1678
    %1770 = vrot.lane.b32.xlu0 %v1767, 64
    %v1771 = vpop.permute.xlu0 %1770
    %v1773 = vmul.f32 %v1766, %v1771
    %1775 = vrot.lane.b32.xlu0 %v1773, 32
    %v1776 = vpop.permute.xlu0 %1775
    %v1778 = vadd.f32 %v1768, %v1776
    %v1779 = vtanh.pop %v1778
    %1781 = vrot.lane.b32.xlu0 %v1779, 64
    %v1782 = vpop.permute.xlu0 %1781
    %v1784 = vmul.f32 %v1766, %v1782
    %1786 = vrot.lane.b32.xlu0 %v1784, 32
    %v1787 = vpop.permute.xlu0 %1786
    %v1788 = vsel %vm286, %v1787, 0
    %1790 = vmatprep.subr.mxu0 0.0
    %1791 = vmatpush1.msra.mxu0 %v93
    %1792 = vmatprep.subr.mxu0 0.0
    %1793 = vmatpush1.msra.mxu0 %v94
    %1794 = vmatprep.subr.mxu0 0.0
    %1795 = vmatpush1.msra.mxu0 %v95
    %1796 = vmatprep.subr.mxu0 0.0
    %1797 = vmatpush1.msra.mxu0 %v96
    %1798 = vmatprep.subr.mxu0 0.0
    %1799 = vmatpush1.msra.mxu0 0.0
    %1800 = vmatprep.subr.mxu0 0.0
    %1801 = vmatpush1.msra.mxu0 0.0
    %1802 = vmatprep.subr.mxu0 0.0
    %1803 = vmatpush1.msra.mxu0 0.0
    %1804 = vmatprep.subr.mxu0 0.0
    %1805 = vmatpush1.msra.mxu0 0.0
    %1806 = vmatprep.subr.mxu0 0.0
    %1807 = vmatpush1.msra.mxu0 0.0
    %1808 = vmatprep.subr.mxu0 0.0
    %1809 = vmatpush1.msra.mxu0 0.0
    %1810 = vmatprep.subr.mxu0 0.0
    %1811 = vmatpush1.msra.mxu0 0.0
    %1812 = vmatprep.subr.mxu0 0.0
    %1813 = vmatpush1.msra.mxu0 0.0
    %1814 = vmatprep.subr.mxu0 0.0
    %1815 = vmatpush1.msra.mxu0 0.0
    %1816 = vmatprep.subr.mxu0 0.0
    %1817 = vmatpush1.msra.mxu0 0.0
    %1818 = vmatprep.subr.mxu0 0.0
    %1819 = vmatpush1.msra.mxu0 0.0
    %1820 = vmatprep.subr.mxu0 0.0
    %1821 = vmatpush1.msra.mxu0 0.0
    %1822 = vmatprep.subr.mxu0 0.0
    %1823 = vmatpush1.msra.mxu0 0.0
    %1824 = vmatprep.subr.mxu0 0.0
    %1825 = vmatpush1.msra.mxu0 0.0
    %1826 = vmatprep.subr.mxu0 0.0
    %1827 = vmatpush1.msra.mxu0 0.0
    %1828 = vmatprep.subr.mxu0 0.0
    %1829 = vmatpush1.msra.mxu0 0.0
    %1830 = vmatprep.subr.mxu0 0.0
    %1831 = vmatpush1.msra.mxu0 0.0
    %1832 = vmatprep.subr.mxu0 0.0
    %1833 = vmatpush1.msra.mxu0 0.0
    %1834 = vmatprep.subr.mxu0 0.0
    %1835 = vmatpush1.msra.mxu0 0.0
    %1836 = vmatprep.subr.mxu0 0.0
    %1837 = vmatpush1.msra.mxu0 0.0
    %1838 = vmatprep.subr.mxu0 0.0
    %1839 = vmatpush1.msra.mxu0 0.0
    %1840 = vmatprep.subr.mxu0 0.0
    %1841 = vmatpush1.msra.mxu0 0.0
    %1842 = vmatprep.subr.mxu0 0.0
    %1843 = vmatpush1.msra.mxu0 0.0
    %1844 = vmatprep.subr.mxu0 0.0
    %1845 = vmatpush1.msra.mxu0 0.0
    %1846 = vmatprep.subr.mxu0 0.0
    %1847 = vmatpush1.msra.mxu0 0.0
    %1848 = vmatprep.subr.mxu0 0.0
    %1849 = vmatpush1.msra.mxu0 0.0
    %1850 = vmatprep.subr.mxu0 0.0
    %1851 = vmatpush1.msra.mxu0 0.0
    %1852 = vmatprep.subr.mxu0 0.0
    %1853 = vmatpush1.msra.mxu0 0.0
    %1854 = vmatprep.mubr.f32.mxu0 0.0
    %1855 = vmatmul.mubr.f32.gmra.mrb[0].mxu0 %v1788
    %v1856 = vpop.f32.mrb[0].mxu0
    %v1857 = vadd.f32 0.0, %v1856
    %v1858 = vpop.f32.mrb[0].mxu0
    %1859 = vdwg.mxu0
    %v1860 = vadd.f32 %v285, %v1857
    %v1861 = vxor.u32 %v1860, 2147483648
    %v1862 = vmul.f32 %v1861, 1.442695
    %v1863 = vpow.pop %v1862
    %v1864 = vadd.f32 %v1863, 1.0
    %v1865 = vrcp.pop %v1864
    %v1866 = vmul.f32 1.0, %v1865
    %v1867 = vtanh.pop %v1860
    %v1868 = vmul.f32 %v1866, %v1778
    %1870 = vrot.lane.b32.xlu0 %v1867, 64
    %v1871 = vpop.permute.xlu0 %1870
    %v1873 = vmul.f32 %v1866, %v1871
    %1875 = vrot.lane.b32.xlu0 %v1873, 32
    %v1876 = vpop.permute.xlu0 %1875
    %v1878 = vadd.f32 %v1868, %v1876
    %v1879 = vtanh.pop %v1878
    %1881 = vrot.lane.b32.xlu0 %v1879, 64
    %v1882 = vpop.permute.xlu0 %1881
    %v1884 = vmul.f32 %v1866, %v1882
    %v1885 = vld [vmem:[#allocation5] sm:$0x1]
    %v1886 = vld [vmem:[#allocation5 + $0x1] sm:$0x1]
    %v1887 = vld [vmem:[#allocation5 + $0x2] sm:$0x1]
    %v1888 = vlaneseq
    %v1889 = vshrl.u32 %v1888, 7
    %v1890 = vsub.s32 0, %v1889
    %v1891 = vrot.slane %v91, %v1890
    %1893 = vbcast.lane.b32.xlu0 %v1891, 256
    %v1894 = vpop.permute.xlu0 %1893
    %s1896 = sor.u32 256, 8
    %1897 = vbcast.lane.b32.xlu0 %v1891, %s1896
    %v1898 = vpop.permute.xlu0 %1897
    %v1899 = vlaneseq
    %v1900 = vshrl.u32 %v1899, 7
    %v1901 = vsub.s32 1, %v1900
    %v1902 = vrot.slane %v91, %v1901
    %1904 = vbcast.lane.b32.xlu0 %v1902, 256
    %v1905 = vpop.permute.xlu0 %1904
    %s1907 = sor.u32 256, 8
    %1908 = vbcast.lane.b32.xlu0 %v1902, %s1907
    %v1909 = vpop.permute.xlu0 %1908
    %v1910 = vlaneseq
    %v1911 = vshrl.u32 %v1910, 7
    %v1912 = vsub.s32 2, %v1911
    %v1913 = vrot.slane %v91, %v1912
    %1915 = vbcast.lane.b32.xlu0 %v1913, 256
    %v1916 = vpop.permute.xlu0 %1915
    %s1918 = sor.u32 256, 8
    %1919 = vbcast.lane.b32.xlu0 %v1913, %s1918
    %v1920 = vpop.permute.xlu0 %1919
    %v1921 = vlaneseq
    %v1922 = vshrl.u32 %v1921, 7
    %v1923 = vsub.s32 3, %v1922
    %v1924 = vrot.slane %v91, %v1923
    %1926 = vbcast.lane.b32.xlu0 %v1924, 256
    %v1927 = vpop.permute.xlu0 %1926
    %s1929 = sor.u32 256, 8
    %1930 = vbcast.lane.b32.xlu0 %v1924, %s1929
    %v1931 = vpop.permute.xlu0 %1930
    %v1932 = vlaneseq
    %v1933 = vshrl.u32 %v1932, 7
    %v1934 = vsub.s32 4, %v1933
    %v1935 = vrot.slane %v91, %v1934
    %1937 = vbcast.lane.b32.xlu0 %v1935, 256
    %v1938 = vpop.permute.xlu0 %1937
    %s1940 = sor.u32 256, 8
    %1941 = vbcast.lane.b32.xlu0 %v1935, %s1940
    %v1942 = vpop.permute.xlu0 %1941
    %v1943 = vlaneseq
    %v1944 = vshrl.u32 %v1943, 7
    %v1945 = vsub.s32 5, %v1944
    %v1946 = vrot.slane %v91, %v1945
    %1948 = vbcast.lane.b32.xlu0 %v1946, 256
    %v1949 = vpop.permute.xlu0 %1948
    %s1951 = sor.u32 256, 8
    %1952 = vbcast.lane.b32.xlu0 %v1946, %s1951
    %v1953 = vpop.permute.xlu0 %1952
    %v1954 = vlaneseq
    %v1955 = vshrl.u32 %v1954, 7
    %v1956 = vsub.s32 6, %v1955
    %v1957 = vrot.slane %v91, %v1956
    %1959 = vbcast.lane.b32.xlu0 %v1957, 256
    %v1960 = vpop.permute.xlu0 %1959
    %s1962 = sor.u32 256, 8
    %1963 = vbcast.lane.b32.xlu0 %v1957, %s1962
    %v1964 = vpop.permute.xlu0 %1963
    %v1965 = vlaneseq
    %v1966 = vshrl.u32 %v1965, 7
    %v1967 = vsub.s32 7, %v1966
    %v1968 = vrot.slane %v91, %v1967
    %1970 = vbcast.lane.b32.xlu0 %v1968, 256
    %v1971 = vpop.permute.xlu0 %1970
    %s1973 = sor.u32 256, 8
    %1974 = vbcast.lane.b32.xlu0 %v1968, %s1973
    %v1975 = vpop.permute.xlu0 %1974
    %vm1992 = vcmask 1040384
    %v1993 = vrot.slane %v1894, 7
    %v1994 = vrot.slane %v1898, 7
    %v1995 = vsel %vm1992, %v1993, %v1994
    %v1996 = vrot.slane %v1905, 7
    %v1997 = vrot.slane %v1909, 7
    %v1998 = vsel %vm1992, %v1996, %v1997
    %v1999 = vrot.slane %v1916, 7
    %v2000 = vrot.slane %v1920, 7
    %v2001 = vsel %vm1992, %v1999, %v2000
    %v2002 = vrot.slane %v1927, 7
    %v2003 = vrot.slane %v1931, 7
    %v2004 = vsel %vm1992, %v2002, %v2003
    %v2005 = vrot.slane %v1938, 7
    %v2006 = vrot.slane %v1942, 7
    %v2007 = vsel %vm1992, %v2005, %v2006
    %v2008 = vrot.slane %v1949, 7
    %v2009 = vrot.slane %v1953, 7
    %v2010 = vsel %vm1992, %v2008, %v2009
    %v2011 = vrot.slane %v1960, 7
    %v2012 = vrot.slane %v1964, 7
    %v2013 = vsel %vm1992, %v2011, %v2012
    %v2014 = vrot.slane %v1971, 7
    %v2015 = vrot.slane %v1975, 7
    %v2016 = vsel %vm1992, %v2014, %v2015
    %v2033 = vsel %vm1992, 0.0, %v1993
    %v2034 = vsel %vm1992, 0.0, %v1996
    %v2035 = vsel %vm1992, 0.0, %v1999
    %v2036 = vsel %vm1992, 0.0, %v2002
    %v2037 = vsel %vm1992, 0.0, %v2005
    %v2038 = vsel %vm1992, 0.0, %v2008
    %v2039 = vsel %vm1992, 0.0, %v2011
    %v2040 = vsel %vm1992, 0.0, %v2014
    %v2041 = vsel %vm1992, %v1994, 0.0
    %v2042 = vsel %vm1992, %v1997, 0.0
    %v2043 = vsel %vm1992, %v2000, 0.0
    %v2044 = vsel %vm1992, %v2003, 0.0
    %v2045 = vsel %vm1992, %v2006, 0.0
    %v2046 = vsel %vm1992, %v2009, 0.0
    %v2047 = vsel %vm1992, %v2012, 0.0
    %v2048 = vsel %vm1992, %v2015, 0.0
    %2050 = vset.pattern.permute.xlu0 0
    %2051 = vperm.xlu0 %2050, %v2033
    %v2052 = vpop.permute.xlu0 %2051
    %2054 = vset.pattern.permute.xlu0 0
    %2055 = vperm.xlu0 %2054, %v1995
    %v2056 = vpop.permute.xlu0 %2055
    %2059 = vset.pattern.permute.xlu0 0
    %2060 = vperm.xlu0 %2059, %v2034
    %v2061 = vpop.permute.xlu0 %2060
    %2063 = vset.pattern.permute.xlu0 0
    %2064 = vperm.xlu0 %2063, %v1998
    %v2065 = vpop.permute.xlu0 %2064
    %2068 = vset.pattern.permute.xlu0 0
    %2069 = vperm.xlu0 %2068, %v2035
    %v2070 = vpop.permute.xlu0 %2069
    %2072 = vset.pattern.permute.xlu0 0
    %2073 = vperm.xlu0 %2072, %v2001
    %v2074 = vpop.permute.xlu0 %2073
    %2077 = vset.pattern.permute.xlu0 0
    %2078 = vperm.xlu0 %2077, %v2036
    %v2079 = vpop.permute.xlu0 %2078
    %2081 = vset.pattern.permute.xlu0 0
    %2082 = vperm.xlu0 %2081, %v2004
    %v2083 = vpop.permute.xlu0 %2082
    %2086 = vset.pattern.permute.xlu0 0
    %2087 = vperm.xlu0 %2086, %v2037
    %v2088 = vpop.permute.xlu0 %2087
    %2090 = vset.pattern.permute.xlu0 0
    %2091 = vperm.xlu0 %2090, %v2007
    %v2092 = vpop.permute.xlu0 %2091
    %2095 = vset.pattern.permute.xlu0 0
    %2096 = vperm.xlu0 %2095, %v2038
    %v2097 = vpop.permute.xlu0 %2096
    %2099 = vset.pattern.permute.xlu0 0
    %2100 = vperm.xlu0 %2099, %v2010
    %v2101 = vpop.permute.xlu0 %2100
    %2104 = vset.pattern.permute.xlu0 0
    %2105 = vperm.xlu0 %2104, %v2039
    %v2106 = vpop.permute.xlu0 %2105
    %2108 = vset.pattern.permute.xlu0 0
    %2109 = vperm.xlu0 %2108, %v2013
    %v2110 = vpop.permute.xlu0 %2109
    %2113 = vset.pattern.permute.xlu0 0
    %2114 = vperm.xlu0 %2113, %v2040
    %v2115 = vpop.permute.xlu0 %2114
    %2117 = vset.pattern.permute.xlu0 0
    %2118 = vperm.xlu0 %2117, %v2016
    %v2119 = vpop.permute.xlu0 %2118
    %v2122 = vlaneseq
    %v2123 = vshrl.u32 %v2122, 7
    %v2124 = vsub.s32 0, %v2123
    %v2125 = vrot.slane %v1885, %v2124
    %v2127 = vmul.f32 %v2052, %v2125
    %v2128 = vmul.f32 %v2056, %v2125
    %v2129 = vmul.f32 %v2061, %v2125
    %v2130 = vmul.f32 %v2065, %v2125
    %v2131 = vmul.f32 %v2070, %v2125
    %v2132 = vmul.f32 %v2074, %v2125
    %v2133 = vmul.f32 %v2079, %v2125
    %v2134 = vmul.f32 %v2083, %v2125
    %v2135 = vmul.f32 %v2088, %v2125
    %v2136 = vmul.f32 %v2092, %v2125
    %v2137 = vmul.f32 %v2097, %v2125
    %v2138 = vmul.f32 %v2101, %v2125
    %v2139 = vmul.f32 %v2106, %v2125
    %v2140 = vmul.f32 %v2110, %v2125
    %v2141 = vmul.f32 %v2115, %v2125
    %v2142 = vmul.f32 %v2119, %v2125
    %2144 = vset.pattern.permute.xlu0 0
    %2145 = vperm.xlu0 %2144, %v2041
    %v2146 = vpop.permute.xlu0 %2145
    %2149 = vset.pattern.permute.xlu0 0
    %2150 = vperm.xlu0 %2149, %v2042
    %v2151 = vpop.permute.xlu0 %2150
    %2154 = vset.pattern.permute.xlu0 0
    %2155 = vperm.xlu0 %2154, %v2043
    %v2156 = vpop.permute.xlu0 %2155
    %2159 = vset.pattern.permute.xlu0 0
    %2160 = vperm.xlu0 %2159, %v2044
    %v2161 = vpop.permute.xlu0 %2160
    %2164 = vset.pattern.permute.xlu0 0
    %2165 = vperm.xlu0 %2164, %v2045
    %v2166 = vpop.permute.xlu0 %2165
    %2169 = vset.pattern.permute.xlu0 0
    %2170 = vperm.xlu0 %2169, %v2046
    %v2171 = vpop.permute.xlu0 %2170
    %2174 = vset.pattern.permute.xlu0 0
    %2175 = vperm.xlu0 %2174, %v2047
    %v2176 = vpop.permute.xlu0 %2175
    %2179 = vset.pattern.permute.xlu0 0
    %2180 = vperm.xlu0 %2179, %v2048
    %v2181 = vpop.permute.xlu0 %2180
    %v2184 = vlaneseq
    %v2185 = vshrl.u32 %v2184, 7
    %v2186 = vsub.s32 0, %v2185
    %v2187 = vrot.slane %v1886, %v2186
    %v2189 = vmul.f32 %v2052, %v2187
    %v2190 = vmul.f32 %v2056, %v2187
    %v2191 = vmul.f32 %v2146, %v2187
    %v2192 = vmul.f32 %v2061, %v2187
    %v2193 = vmul.f32 %v2065, %v2187
    %v2194 = vmul.f32 %v2151, %v2187
    %v2195 = vmul.f32 %v2070, %v2187
    %v2196 = vmul.f32 %v2074, %v2187
    %v2197 = vmul.f32 %v2156, %v2187
    %v2198 = vmul.f32 %v2079, %v2187
    %v2199 = vmul.f32 %v2083, %v2187
    %v2200 = vmul.f32 %v2161, %v2187
    %v2201 = vmul.f32 %v2088, %v2187
    %v2202 = vmul.f32 %v2092, %v2187
    %v2203 = vmul.f32 %v2166, %v2187
    %v2204 = vmul.f32 %v2097, %v2187
    %v2205 = vmul.f32 %v2101, %v2187
    %v2206 = vmul.f32 %v2171, %v2187
    %v2207 = vmul.f32 %v2106, %v2187
    %v2208 = vmul.f32 %v2110, %v2187
    %v2209 = vmul.f32 %v2176, %v2187
    %v2210 = vmul.f32 %v2115, %v2187
    %v2211 = vmul.f32 %v2119, %v2187
    %v2212 = vmul.f32 %v2181, %v2187
    %vm2237 = vcmask 1046528
    %v2238 = vrot.slane %v2189, 1
    %v2239 = vrot.slane %v2190, 1
    %v2240 = vsel %vm2237, %v2238, %v2239
    %v2241 = vrot.slane %v2191, 1
    %v2242 = vsel %vm2237, %v2239, %v2241
    %v2243 = vrot.slane %v2192, 1
    %v2244 = vrot.slane %v2193, 1
    %v2245 = vsel %vm2237, %v2243, %v2244
    %v2246 = vrot.slane %v2194, 1
    %v2247 = vsel %vm2237, %v2244, %v2246
    %v2248 = vrot.slane %v2195, 1
    %v2249 = vrot.slane %v2196, 1
    %v2250 = vsel %vm2237, %v2248, %v2249
    %v2251 = vrot.slane %v2197, 1
    %v2252 = vsel %vm2237, %v2249, %v2251
    %v2253 = vrot.slane %v2198, 1
    %v2254 = vrot.slane %v2199, 1
    %v2255 = vsel %vm2237, %v2253, %v2254
    %v2256 = vrot.slane %v2200, 1
    %v2257 = vsel %vm2237, %v2254, %v2256
    %v2258 = vrot.slane %v2201, 1
    %v2259 = vrot.slane %v2202, 1
    %v2260 = vsel %vm2237, %v2258, %v2259
    %v2261 = vrot.slane %v2203, 1
    %v2262 = vsel %vm2237, %v2259, %v2261
    %v2263 = vrot.slane %v2204, 1
    %v2264 = vrot.slane %v2205, 1
    %v2265 = vsel %vm2237, %v2263, %v2264
    %v2266 = vrot.slane %v2206, 1
    %v2267 = vsel %vm2237, %v2264, %v2266
    %v2268 = vrot.slane %v2207, 1
    %v2269 = vrot.slane %v2208, 1
    %v2270 = vsel %vm2237, %v2268, %v2269
    %v2271 = vrot.slane %v2209, 1
    %v2272 = vsel %vm2237, %v2269, %v2271
    %v2273 = vrot.slane %v2210, 1
    %v2274 = vrot.slane %v2211, 1
    %v2275 = vsel %vm2237, %v2273, %v2274
    %v2276 = vrot.slane %v2212, 1
    %v2277 = vsel %vm2237, %v2274, %v2276
    %v2294 = vadd.f32 %v2127, %v2240
    %v2295 = vadd.f32 %v2128, %v2242
    %v2296 = vadd.f32 %v2129, %v2245
    %v2297 = vadd.f32 %v2130, %v2247
    %v2298 = vadd.f32 %v2131, %v2250
    %v2299 = vadd.f32 %v2132, %v2252
    %v2300 = vadd.f32 %v2133, %v2255
    %v2301 = vadd.f32 %v2134, %v2257
    %v2302 = vadd.f32 %v2135, %v2260
    %v2303 = vadd.f32 %v2136, %v2262
    %v2304 = vadd.f32 %v2137, %v2265
    %v2305 = vadd.f32 %v2138, %v2267
    %v2306 = vadd.f32 %v2139, %v2270
    %v2307 = vadd.f32 %v2140, %v2272
    %v2308 = vadd.f32 %v2141, %v2275
    %v2309 = vadd.f32 %v2142, %v2277
    %v2311 = vlaneseq
    %v2312 = vshrl.u32 %v2311, 7
    %v2313 = vsub.s32 0, %v2312
    %v2314 = vrot.slane %v1887, %v2313
    %v2316 = vmul.f32 %v2052, %v2314
    %v2317 = vmul.f32 %v2056, %v2314
    %v2318 = vmul.f32 %v2146, %v2314
    %v2319 = vmul.f32 %v2061, %v2314
    %v2320 = vmul.f32 %v2065, %v2314
    %v2321 = vmul.f32 %v2151, %v2314
    %v2322 = vmul.f32 %v2070, %v2314
    %v2323 = vmul.f32 %v2074, %v2314
    %v2324 = vmul.f32 %v2156, %v2314
    %v2325 = vmul.f32 %v2079, %v2314
    %v2326 = vmul.f32 %v2083, %v2314
    %v2327 = vmul.f32 %v2161, %v2314
    %v2328 = vmul.f32 %v2088, %v2314
    %v2329 = vmul.f32 %v2092, %v2314
    %v2330 = vmul.f32 %v2166, %v2314
    %v2331 = vmul.f32 %v2097, %v2314
    %v2332 = vmul.f32 %v2101, %v2314
    %v2333 = vmul.f32 %v2171, %v2314
    %v2334 = vmul.f32 %v2106, %v2314
    %v2335 = vmul.f32 %v2110, %v2314
    %v2336 = vmul.f32 %v2176, %v2314
    %v2337 = vmul.f32 %v2115, %v2314
    %v2338 = vmul.f32 %v2119, %v2314
    %v2339 = vmul.f32 %v2181, %v2314
    %vm2364 = vcmask 1045504
    %v2365 = vrot.slane %v2316, 2
    %v2366 = vrot.slane %v2317, 2
    %v2367 = vsel %vm2364, %v2365, %v2366
    %v2368 = vrot.slane %v2318, 2
    %v2369 = vsel %vm2364, %v2366, %v2368
    %v2370 = vrot.slane %v2319, 2
    %v2371 = vrot.slane %v2320, 2
    %v2372 = vsel %vm2364, %v2370, %v2371
    %v2373 = vrot.slane %v2321, 2
    %v2374 = vsel %vm2364, %v2371, %v2373
    %v2375 = vrot.slane %v2322, 2
    %v2376 = vrot.slane %v2323, 2
    %v2377 = vsel %vm2364, %v2375, %v2376
    %v2378 = vrot.slane %v2324, 2
    %v2379 = vsel %vm2364, %v2376, %v2378
    %v2380 = vrot.slane %v2325, 2
    %v2381 = vrot.slane %v2326, 2
    %v2382 = vsel %vm2364, %v2380, %v2381
    %v2383 = vrot.slane %v2327, 2
    %v2384 = vsel %vm2364, %v2381, %v2383
    %v2385 = vrot.slane %v2328, 2
    %v2386 = vrot.slane %v2329, 2
    %v2387 = vsel %vm2364, %v2385, %v2386
    %v2388 = vrot.slane %v2330, 2
    %v2389 = vsel %vm2364, %v2386, %v2388
    %v2390 = vrot.slane %v2331, 2
    %v2391 = vrot.slane %v2332, 2
    %v2392 = vsel %vm2364, %v2390, %v2391
    %v2393 = vrot.slane %v2333, 2
    %v2394 = vsel %vm2364, %v2391, %v2393
    %v2395 = vrot.slane %v2334, 2
    %v2396 = vrot.slane %v2335, 2
    %v2397 = vsel %vm2364, %v2395, %v2396
    %v2398 = vrot.slane %v2336, 2
    %v2399 = vsel %vm2364, %v2396, %v2398
    %v2400 = vrot.slane %v2337, 2
    %v2401 = vrot.slane %v2338, 2
    %v2402 = vsel %vm2364, %v2400, %v2401
    %v2403 = vrot.slane %v2339, 2
    %v2404 = vsel %vm2364, %v2401, %v2403
    %v2421 = vadd.f32 %v2294, %v2367
    %v2422 = vadd.f32 %v2295, %v2369
    %v2423 = vadd.f32 %v2296, %v2372
    %v2424 = vadd.f32 %v2297, %v2374
    %v2425 = vadd.f32 %v2298, %v2377
    %v2426 = vadd.f32 %v2299, %v2379
    %v2427 = vadd.f32 %v2300, %v2382
    %v2428 = vadd.f32 %v2301, %v2384
    %v2429 = vadd.f32 %v2302, %v2387
    %v2430 = vadd.f32 %v2303, %v2389
    %v2431 = vadd.f32 %v2304, %v2392
    %v2432 = vadd.f32 %v2305, %v2394
    %v2433 = vadd.f32 %v2306, %v2397
    %v2434 = vadd.f32 %v2307, %v2399
    %v2435 = vadd.f32 %v2308, %v2402
    %v2436 = vadd.f32 %v2309, %v2404
    %v2437 = vld [vmem:[#allocation7] sm:$0x1]
    %v2439 = vlaneseq
    %v2440 = vshrl.u32 %v2439, 7
    %v2441 = vsub.s32 0, %v2440
    %v2442 = vrot.slane %v2437, %v2441
    %v2444 = vmul.f32 %v2421, %v2442
    %v2445 = vmul.f32 %v2422, %v2442
    %v2446 = vmul.f32 %v2423, %v2442
    %v2447 = vmul.f32 %v2424, %v2442
    %v2448 = vmul.f32 %v2425, %v2442
    %v2449 = vmul.f32 %v2426, %v2442
    %v2450 = vmul.f32 %v2427, %v2442
    %v2451 = vmul.f32 %v2428, %v2442
    %v2452 = vmul.f32 %v2429, %v2442
    %v2453 = vmul.f32 %v2430, %v2442
    %v2454 = vmul.f32 %v2431, %v2442
    %v2455 = vmul.f32 %v2432, %v2442
    %v2456 = vmul.f32 %v2433, %v2442
    %v2457 = vmul.f32 %v2434, %v2442
    %v2458 = vmul.f32 %v2435, %v2442
    %v2459 = vmul.f32 %v2436, %v2442
    %v2460 = vld [vmem:[%s6] sm:$0x1]
    %v2462 = vlaneseq
    %v2463 = vshrl.u32 %v2462, 7
    %v2464 = vsub.s32 0, %v2463
    %v2465 = vrot.slane %v2460, %v2464
    %v2467 = vadd.f32 %v2444, %v2465
    %v2468 = vadd.f32 %v2445, %v2465
    %v2469 = vadd.f32 %v2446, %v2465
    %v2470 = vadd.f32 %v2447, %v2465
    %v2471 = vadd.f32 %v2448, %v2465
    %v2472 = vadd.f32 %v2449, %v2465
    %v2473 = vadd.f32 %v2450, %v2465
    %v2474 = vadd.f32 %v2451, %v2465
    %v2475 = vadd.f32 %v2452, %v2465
    %v2476 = vadd.f32 %v2453, %v2465
    %v2477 = vadd.f32 %v2454, %v2465
    %v2478 = vadd.f32 %v2455, %v2465
    %v2479 = vadd.f32 %v2456, %v2465
    %v2480 = vadd.f32 %v2457, %v2465
    %v2481 = vadd.f32 %v2458, %v2465
    %v2482 = vadd.f32 %v2459, %v2465
    %v2483 = vmax.f32 %v2467, 0.0
    %v2484 = vmax.f32 %v2468, 0.0
    %v2485 = vmax.f32 %v2469, 0.0
    %v2486 = vmax.f32 %v2470, 0.0
    %v2487 = vmax.f32 %v2471, 0.0
    %v2488 = vmax.f32 %v2472, 0.0
    %v2489 = vmax.f32 %v2473, 0.0
    %v2490 = vmax.f32 %v2474, 0.0
    %v2491 = vmax.f32 %v2475, 0.0
    %v2492 = vmax.f32 %v2476, 0.0
    %v2493 = vmax.f32 %v2477, 0.0
    %v2494 = vmax.f32 %v2478, 0.0
    %v2495 = vmax.f32 %v2479, 0.0
    %v2496 = vmax.f32 %v2480, 0.0
    %v2497 = vmax.f32 %v2481, 0.0
    %v2498 = vmax.f32 %v2482, 0.0
    %v2499 = vld [vmem:[%s7] sm:$0xff]
    %v2500 = vld [vmem:[%s7 + $0x8] sm:$0xff]
    %v2501 = vld [vmem:[%s7 + $0x10] sm:$0xff]
    %v2502 = vld [vmem:[%s7 + $0x18] sm:$0xff]
    %v2503 = vld [vmem:[%s7 + $0x20] sm:$0xff]
    %v2504 = vld [vmem:[%s7 + $0x28] sm:$0xff]
    %v2521 = vrot.slane %v2483, 7
    %v2522 = vrot.slane %v2484, 7
    %v2523 = vsel %vm1992, %v2521, %v2522
    %v2524 = vrot.slane %v2485, 7
    %v2525 = vrot.slane %v2486, 7
    %v2526 = vsel %vm1992, %v2524, %v2525
    %v2527 = vrot.slane %v2487, 7
    %v2528 = vrot.slane %v2488, 7
    %v2529 = vsel %vm1992, %v2527, %v2528
    %v2530 = vrot.slane %v2489, 7
    %v2531 = vrot.slane %v2490, 7
    %v2532 = vsel %vm1992, %v2530, %v2531
    %v2533 = vrot.slane %v2491, 7
    %v2534 = vrot.slane %v2492, 7
    %v2535 = vsel %vm1992, %v2533, %v2534
    %v2536 = vrot.slane %v2493, 7
    %v2537 = vrot.slane %v2494, 7
    %v2538 = vsel %vm1992, %v2536, %v2537
    %v2539 = vrot.slane %v2495, 7
    %v2540 = vrot.slane %v2496, 7
    %v2541 = vsel %vm1992, %v2539, %v2540
    %v2542 = vrot.slane %v2497, 7
    %v2543 = vrot.slane %v2498, 7
    %v2544 = vsel %vm1992, %v2542, %v2543
    %v2561 = vsel %vm1992, 0.0, %v2521
    %v2562 = vsel %vm1992, 0.0, %v2524
    %v2563 = vsel %vm1992, 0.0, %v2527
    %v2564 = vsel %vm1992, 0.0, %v2530
    %v2565 = vsel %vm1992, 0.0, %v2533
    %v2566 = vsel %vm1992, 0.0, %v2536
    %v2567 = vsel %vm1992, 0.0, %v2539
    %v2568 = vsel %vm1992, 0.0, %v2542
    %v2569 = vsel %vm1992, %v2522, 0.0
    %v2570 = vsel %vm1992, %v2525, 0.0
    %v2571 = vsel %vm1992, %v2528, 0.0
    %v2572 = vsel %vm1992, %v2531, 0.0
    %v2573 = vsel %vm1992, %v2534, 0.0
    %v2574 = vsel %vm1992, %v2537, 0.0
    %v2575 = vsel %vm1992, %v2540, 0.0
    %v2576 = vsel %vm1992, %v2543, 0.0
    %v2593 = vrot.slane %v2561, 1
    %v2594 = vrot.slane %v2523, 1
    %v2595 = vsel %vm2237, %v2593, %v2594
    %v2596 = vrot.slane %v2569, 1
    %v2597 = vsel %vm2237, %v2594, %v2596
    %v2598 = vrot.slane %v2562, 1
    %v2599 = vrot.slane %v2526, 1
    %v2600 = vsel %vm2237, %v2598, %v2599
    %v2601 = vrot.slane %v2570, 1
    %v2602 = vsel %vm2237, %v2599, %v2601
    %v2603 = vrot.slane %v2563, 1
    %v2604 = vrot.slane %v2529, 1
    %v2605 = vsel %vm2237, %v2603, %v2604
    %v2606 = vrot.slane %v2571, 1
    %v2607 = vsel %vm2237, %v2604, %v2606
    %v2608 = vrot.slane %v2564, 1
    %v2609 = vrot.slane %v2532, 1
    %v2610 = vsel %vm2237, %v2608, %v2609
    %v2611 = vrot.slane %v2572, 1
    %v2612 = vsel %vm2237, %v2609, %v2611
    %v2613 = vrot.slane %v2565, 1
    %v2614 = vrot.slane %v2535, 1
    %v2615 = vsel %vm2237, %v2613, %v2614
    %v2616 = vrot.slane %v2573, 1
    %v2617 = vsel %vm2237, %v2614, %v2616
    %v2618 = vrot.slane %v2566, 1
    %v2619 = vrot.slane %v2538, 1
    %v2620 = vsel %vm2237, %v2618, %v2619
    %v2621 = vrot.slane %v2574, 1
    %v2622 = vsel %vm2237, %v2619, %v2621
    %v2623 = vrot.slane %v2567, 1
    %v2624 = vrot.slane %v2541, 1
    %v2625 = vsel %vm2237, %v2623, %v2624
    %v2626 = vrot.slane %v2575, 1
    %v2627 = vsel %vm2237, %v2624, %v2626
    %v2628 = vrot.slane %v2568, 1
    %v2629 = vrot.slane %v2544, 1
    %v2630 = vsel %vm2237, %v2628, %v2629
    %v2631 = vrot.slane %v2576, 1
    %v2632 = vsel %vm2237, %v2629, %v2631
    %vm2633 = vcmask 130048
    %v2634 = vsel %vm2633, %v2595, 0
    %v2636 = vsel %vm2633, %v2597, 0
    %v2638 = vsel %vm2633, %v2600, 0
    %v2640 = vsel %vm2633, %v2602, 0
    %v2642 = vsel %vm2633, %v2605, 0
    %v2644 = vsel %vm2633, %v2607, 0
    %v2646 = vsel %vm2633, %v2610, 0
    %v2648 = vsel %vm2633, %v2612, 0
    %v2650 = vsel %vm2633, %v2615, 0
    %v2652 = vsel %vm2633, %v2617, 0
    %v2654 = vsel %vm2633, %v2620, 0
    %v2656 = vsel %vm2633, %v2622, 0
    %v2658 = vsel %vm2633, %v2625, 0
    %v2660 = vsel %vm2633, %v2627, 0
    %v2662 = vsel %vm2633, %v2630, 0
    %v2664 = vsel %vm2633, %v2632, 0
    %2666 = vmatprep.subr.mxu0 0.0
    %2667 = vmatpush1.msra.mxu0 %v2501
    %2668 = vmatprep.subr.mxu0 0.0
    %2669 = vmatpush1.msra.mxu0 %v2502
    %2670 = vmatprep.subr.mxu0 0.0
    %2671 = vmatpush1.msra.mxu0 0.0
    %2672 = vmatprep.subr.mxu0 0.0
    %2673 = vmatpush1.msra.mxu0 0.0
    %2674 = vmatprep.subr.mxu0 0.0
    %2675 = vmatpush1.msra.mxu0 0.0
    %2676 = vmatprep.subr.mxu0 0.0
    %2677 = vmatpush1.msra.mxu0 0.0
    %2678 = vmatprep.subr.mxu0 0.0
    %2679 = vmatpush1.msra.mxu0 0.0
    %2680 = vmatprep.subr.mxu0 0.0
    %2681 = vmatpush1.msra.mxu0 0.0
    %2682 = vmatprep.subr.mxu0 0.0
    %2683 = vmatpush1.msra.mxu0 0.0
    %2684 = vmatprep.subr.mxu0 0.0
    %2685 = vmatpush1.msra.mxu0 0.0
    %2686 = vmatprep.subr.mxu0 0.0
    %2687 = vmatpush1.msra.mxu0 0.0
    %2688 = vmatprep.subr.mxu0 0.0
    %2689 = vmatpush1.msra.mxu0 0.0
    %2690 = vmatprep.subr.mxu0 0.0
    %2691 = vmatpush1.msra.mxu0 0.0
    %2692 = vmatprep.subr.mxu0 0.0
    %2693 = vmatpush1.msra.mxu0 0.0
    %2694 = vmatprep.subr.mxu0 0.0
    %2695 = vmatpush1.msra.mxu0 0.0
    %2696 = vmatprep.subr.mxu0 0.0
    %2697 = vmatpush1.msra.mxu0 0.0
    %2698 = vmatprep.subr.mxu0 0.0
    %2699 = vmatpush1.msra.mxu0 0.0
    %2700 = vmatprep.subr.mxu0 0.0
    %2701 = vmatpush1.msra.mxu0 0.0
    %2702 = vmatprep.subr.mxu0 0.0
    %2703 = vmatpush1.msra.mxu0 0.0
    %2704 = vmatprep.subr.mxu0 0.0
    %2705 = vmatpush1.msra.mxu0 0.0
    %2706 = vmatprep.subr.mxu0 0.0
    %2707 = vmatpush1.msra.mxu0 0.0
    %2708 = vmatprep.subr.mxu0 0.0
    %2709 = vmatpush1.msra.mxu0 0.0
    %2710 = vmatprep.subr.mxu0 0.0
    %2711 = vmatpush1.msra.mxu0 0.0
    %2712 = vmatprep.subr.mxu0 0.0
    %2713 = vmatpush1.msra.mxu0 0.0
    %2714 = vmatprep.subr.mxu0 0.0
    %2715 = vmatpush1.msra.mxu0 0.0
    %2716 = vmatprep.subr.mxu0 0.0
    %2717 = vmatpush1.msra.mxu0 0.0
    %2718 = vmatprep.subr.mxu0 0.0
    %2719 = vmatpush1.msra.mxu0 0.0
    %2720 = vmatprep.subr.mxu0 0.0
    %2721 = vmatpush1.msra.mxu0 0.0
    %2722 = vmatprep.subr.mxu0 0.0
    %2723 = vmatpush1.msra.mxu0 0.0
    %2724 = vmatprep.subr.mxu0 0.0
    %2725 = vmatpush1.msra.mxu0 0.0
    %2726 = vmatprep.subr.mxu0 0.0
    %2727 = vmatpush1.msra.mxu0 0.0
    %2728 = vmatprep.subr.mxu0 0.0
    %2729 = vmatpush1.msra.mxu0 0.0
    %2730 = vmatprep.mubr.f32.mxu0 0.0
    %2731 = vmatmul.mubr.f32.gmra.mrb[0].mxu0 %v2634
    %v2732 = vpop.f32.mrb[0].mxu0
    %v2733 = vadd.f32 0.0, %v2732
    %v2734 = vpop.f32.mrb[0].mxu0
    %2735 = vmatprep.mubr.f32.mxu0 0.0
    %2736 = vmatmul.mubr.f32.gmra.mrb[0].mxu0 %v2636
    %v2737 = vpop.f32.mrb[0].mxu0
    %v2738 = vadd.f32 0.0, %v2737
    %v2739 = vpop.f32.mrb[0].mxu0
    %2740 = vmatprep.mubr.f32.mxu0 0.0
    %2741 = vmatmul.mubr.f32.gmra.mrb[0].mxu0 %v2638
    %v2742 = vpop.f32.mrb[0].mxu0
    %v2743 = vadd.f32 0.0, %v2742
    %v2744 = vpop.f32.mrb[0].mxu0
    %2745 = vmatprep.mubr.f32.mxu0 0.0
    %2746 = vmatmul.mubr.f32.gmra.mrb[0].mxu0 %v2640
    %v2747 = vpop.f32.mrb[0].mxu0
    %v2748 = vadd.f32 0.0, %v2747
    %v2749 = vpop.f32.mrb[0].mxu0
    %2750 = vmatprep.mubr.f32.mxu0 0.0
    %2751 = vmatmul.mubr.f32.gmra.mrb[0].mxu0 %v2642
    %v2752 = vpop.f32.mrb[0].mxu0
    %v2753 = vadd.f32 0.0, %v2752
    %v2754 = vpop.f32.mrb[0].mxu0
    %2755 = vmatprep.mubr.f32.mxu0 0.0
    %2756 = vmatmul.mubr.f32.gmra.mrb[0].mxu0 %v2644
    %v2757 = vpop.f32.mrb[0].mxu0
    %v2758 = vadd.f32 0.0, %v2757
    %v2759 = vpop.f32.mrb[0].mxu0
    %2760 = vmatprep.mubr.f32.mxu0 0.0
    %2761 = vmatmul.mubr.f32.gmra.mrb[0].mxu0 %v2646
    %v2762 = vpop.f32.mrb[0].mxu0
    %v2763 = vadd.f32 0.0, %v2762
    %v2764 = vpop.f32.mrb[0].mxu0
    %2765 = vmatprep.mubr.f32.mxu0 0.0
    %2766 = vmatmul.mubr.f32.gmra.mrb[0].mxu0 %v2648
    %v2767 = vpop.f32.mrb[0].mxu0
    %v2768 = vadd.f32 0.0, %v2767
    %v2769 = vpop.f32.mrb[0].mxu0
    %2770 = vmatprep.mubr.f32.mxu0 0.0
    %2771 = vmatmul.mubr.f32.gmra.mrb[0].mxu0 %v2650
    %v2772 = vpop.f32.mrb[0].mxu0
    %v2773 = vadd.f32 0.0, %v2772
    %v2774 = vpop.f32.mrb[0].mxu0
    %2775 = vmatprep.mubr.f32.mxu0 0.0
    %2776 = vmatmul.mubr.f32.gmra.mrb[0].mxu0 %v2652
    %v2777 = vpop.f32.mrb[0].mxu0
    %v2778 = vadd.f32 0.0, %v2777
    %v2779 = vpop.f32.mrb[0].mxu0
    %2780 = vmatprep.mubr.f32.mxu0 0.0
    %2781 = vmatmul.mubr.f32.gmra.mrb[0].mxu0 %v2654
    %v2782 = vpop.f32.mrb[0].mxu0
    %v2783 = vadd.f32 0.0, %v2782
    %v2784 = vpop.f32.mrb[0].mxu0
    %2785 = vmatprep.mubr.f32.mxu0 0.0
    %2786 = vmatmul.mubr.f32.gmra.mrb[0].mxu0 %v2656
    %v2787 = vpop.f32.mrb[0].mxu0
    %v2788 = vadd.f32 0.0, %v2787
    %v2789 = vpop.f32.mrb[0].mxu0
    %2790 = vmatprep.mubr.f32.mxu0 0.0
    %2791 = vmatmul.mubr.f32.gmra.mrb[0].mxu0 %v2658
    %v2792 = vpop.f32.mrb[0].mxu0
    %v2793 = vadd.f32 0.0, %v2792
    %v2794 = vpop.f32.mrb[0].mxu0
    %2795 = vmatprep.mubr.f32.mxu0 0.0
    %2796 = vmatmul.mubr.f32.gmra.mrb[0].mxu0 %v2660
    %v2797 = vpop.f32.mrb[0].mxu0
    %v2798 = vadd.f32 0.0, %v2797
    %v2799 = vpop.f32.mrb[0].mxu0
    %2800 = vmatprep.mubr.f32.mxu0 0.0
    %2801 = vmatmul.mubr.f32.gmra.mrb[0].mxu0 %v2662
    %v2802 = vpop.f32.mrb[0].mxu0
    %v2803 = vadd.f32 0.0, %v2802
    %v2804 = vpop.f32.mrb[0].mxu0
    %2805 = vmatprep.mubr.f32.mxu0 0.0
    %2806 = vmatmul.mubr.f32.gmra.mrb[0].mxu0 %v2664
    %v2807 = vpop.f32.mrb[0].mxu0
    %v2808 = vadd.f32 0.0, %v2807
    %v2809 = vpop.f32.mrb[0].mxu0
    %2810 = vdwg.mxu0
    %v2811 = vsel %vm2633, %v2561, 0
    %v2813 = vsel %vm2633, %v2523, 0
    %v2815 = vsel %vm2633, %v2562, 0
    %v2817 = vsel %vm2633, %v2526, 0
    %v2819 = vsel %vm2633, %v2563, 0
    %v2821 = vsel %vm2633, %v2529, 0
    %v2823 = vsel %vm2633, %v2564, 0
    %v2825 = vsel %vm2633, %v2532, 0
    %v2827 = vsel %vm2633, %v2565, 0
    %v2829 = vsel %vm2633, %v2535, 0
    %v2831 = vsel %vm2633, %v2566, 0
    %v2833 = vsel %vm2633, %v2538, 0
    %v2835 = vsel %vm2633, %v2567, 0
    %v2837 = vsel %vm2633, %v2541, 0
    %v2839 = vsel %vm2633, %v2568, 0
    %v2841 = vsel %vm2633, %v2544, 0
    %2843 = vmatprep.subr.mxu0 0.0
    %2844 = vmatpush1.msra.mxu0 %v2499
    %2845 = vmatprep.subr.mxu0 0.0
    %2846 = vmatpush1.msra.mxu0 %v2500
    %2847 = vmatprep.subr.mxu0 0.0
    %2848 = vmatpush1.msra.mxu0 0.0
    %2849 = vmatprep.subr.mxu0 0.0
    %2850 = vmatpush1.msra.mxu0 0.0
    %2851 = vmatprep.subr.mxu0 0.0
    %2852 = vmatpush1.msra.mxu0 0.0
    %2853 = vmatprep.subr.mxu0 0.0
    %2854 = vmatpush1.msra.mxu0 0.0
    %2855 = vmatprep.subr.mxu0 0.0
    %2856 = vmatpush1.msra.mxu0 0.0
    %2857 = vmatprep.subr.mxu0 0.0
    %2858 = vmatpush1.msra.mxu0 0.0
    %2859 = vmatprep.subr.mxu0 0.0
    %2860 = vmatpush1.msra.mxu0 0.0
    %2861 = vmatprep.subr.mxu0 0.0
    %2862 = vmatpush1.msra.mxu0 0.0
    %2863 = vmatprep.subr.mxu0 0.0
    %2864 = vmatpush1.msra.mxu0 0.0
    %2865 = vmatprep.subr.mxu0 0.0
    %2866 = vmatpush1.msra.mxu0 0.0
    %2867 = vmatprep.subr.mxu0 0.0
    %2868 = vmatpush1.msra.mxu0 0.0
    %2869 = vmatprep.subr.mxu0 0.0
    %2870 = vmatpush1.msra.mxu0 0.0
    %2871 = vmatprep.subr.mxu0 0.0
    %2872 = vmatpush1.msra.mxu0 0.0
    %2873 = vmatprep.subr.mxu0 0.0
    %2874 = vmatpush1.msra.mxu0 0.0
    %2875 = vmatprep.subr.mxu0 0.0
    %2876 = vmatpush1.msra.mxu0 0.0
    %2877 = vmatprep.subr.mxu0 0.0
    %2878 = vmatpush1.msra.mxu0 0.0
    %2879 = vmatprep.subr.mxu0 0.0
    %2880 = vmatpush1.msra.mxu0 0.0
    %2881 = vmatprep.subr.mxu0 0.0
    %2882 = vmatpush1.msra.mxu0 0.0
    %2883 = vmatprep.subr.mxu0 0.0
    %2884 = vmatpush1.msra.mxu0 0.0
    %2885 = vmatprep.subr.mxu0 0.0
    %2886 = vmatpush1.msra.mxu0 0.0
    %2887 = vmatprep.subr.mxu0 0.0
    %2888 = vmatpush1.msra.mxu0 0.0
    %2889 = vmatprep.subr.mxu0 0.0
    %2890 = vmatpush1.msra.mxu0 0.0
    %2891 = vmatprep.subr.mxu0 0.0
    %2892 = vmatpush1.msra.mxu0 0.0
    %2893 = vmatprep.subr.mxu0 0.0
    %2894 = vmatpush1.msra.mxu0 0.0
    %2895 = vmatprep.subr.mxu0 0.0
    %2896 = vmatpush1.msra.mxu0 0.0
    %2897 = vmatprep.subr.mxu0 0.0
    %2898 = vmatpush1.msra.mxu0 0.0
    %2899 = vmatprep.subr.mxu0 0.0
    %2900 = vmatpush1.msra.mxu0 0.0
    %2901 = vmatprep.subr.mxu0 0.0
    %2902 = vmatpush1.msra.mxu0 0.0
    %2903 = vmatprep.subr.mxu0 0.0
    %2904 = vmatpush1.msra.mxu0 0.0
    %2905 = vmatprep.subr.mxu0 0.0
    %2906 = vmatpush1.msra.mxu0 0.0
    %2907 = vmatprep.mubr.f32.mxu0 0.0
    %2908 = vmatmul.mubr.f32.gmra.mrb[0].mxu0 %v2811
    %v2909 = vpop.f32.mrb[0].mxu0
    %v2910 = vadd.f32 %v2733, %v2909
    %v2911 = vpop.f32.mrb[0].mxu0
    %2912 = vmatprep.mubr.f32.mxu0 0.0
    %2913 = vmatmul.mubr.f32.gmra.mrb[0].mxu0 %v2813
    %v2914 = vpop.f32.mrb[0].mxu0
    %v2915 = vadd.f32 %v2738, %v2914
    %v2916 = vpop.f32.mrb[0].mxu0
    %2917 = vmatprep.mubr.f32.mxu0 0.0
    %2918 = vmatmul.mubr.f32.gmra.mrb[0].mxu0 %v2815
    %v2919 = vpop.f32.mrb[0].mxu0
    %v2920 = vadd.f32 %v2743, %v2919
    %v2921 = vpop.f32.mrb[0].mxu0
    %2922 = vmatprep.mubr.f32.mxu0 0.0
    %2923 = vmatmul.mubr.f32.gmra.mrb[0].mxu0 %v2817
    %v2924 = vpop.f32.mrb[0].mxu0
    %v2925 = vadd.f32 %v2748, %v2924
    %v2926 = vpop.f32.mrb[0].mxu0
    %2927 = vmatprep.mubr.f32.mxu0 0.0
    %2928 = vmatmul.mubr.f32.gmra.mrb[0].mxu0 %v2819
    %v2929 = vpop.f32.mrb[0].mxu0
    %v2930 = vadd.f32 %v2753, %v2929
    %v2931 = vpop.f32.mrb[0].mxu0
    %2932 = vmatprep.mubr.f32.mxu0 0.0
    %2933 = vmatmul.mubr.f32.gmra.mrb[0].mxu0 %v2821
    %v2934 = vpop.f32.mrb[0].mxu0
    %v2935 = vadd.f32 %v2758, %v2934
    %v2936 = vpop.f32.mrb[0].mxu0
    %2937 = vmatprep.mubr.f32.mxu0 0.0
    %2938 = vmatmul.mubr.f32.gmra.mrb[0].mxu0 %v2823
    %v2939 = vpop.f32.mrb[0].mxu0
    %v2940 = vadd.f32 %v2763, %v2939
    %v2941 = vpop.f32.mrb[0].mxu0
    %2942 = vmatprep.mubr.f32.mxu0 0.0
    %2943 = vmatmul.mubr.f32.gmra.mrb[0].mxu0 %v2825
    %v2944 = vpop.f32.mrb[0].mxu0
    %v2945 = vadd.f32 %v2768, %v2944
    %v2946 = vpop.f32.mrb[0].mxu0
    %2947 = vmatprep.mubr.f32.mxu0 0.0
    %2948 = vmatmul.mubr.f32.gmra.mrb[0].mxu0 %v2827
    %v2949 = vpop.f32.mrb[0].mxu0
    %v2950 = vadd.f32 %v2773, %v2949
    %v2951 = vpop.f32.mrb[0].mxu0
    %2952 = vmatprep.mubr.f32.mxu0 0.0
    %2953 = vmatmul.mubr.f32.gmra.mrb[0].mxu0 %v2829
    %v2954 = vpop.f32.mrb[0].mxu0
    %v2955 = vadd.f32 %v2778, %v2954
    %v2956 = vpop.f32.mrb[0].mxu0
    %2957 = vmatprep.mubr.f32.mxu0 0.0
    %2958 = vmatmul.mubr.f32.gmra.mrb[0].mxu0 %v2831
    %v2959 = vpop.f32.mrb[0].mxu0
    %v2960 = vadd.f32 %v2783, %v2959
    %v2961 = vpop.f32.mrb[0].mxu0
    %2962 = vmatprep.mubr.f32.mxu0 0.0
    %2963 = vmatmul.mubr.f32.gmra.mrb[0].mxu0 %v2833
    %v2964 = vpop.f32.mrb[0].mxu0
    %v2965 = vadd.f32 %v2788, %v2964
    %v2966 = vpop.f32.mrb[0].mxu0
    %2967 = vmatprep.mubr.f32.mxu0 0.0
    %2968 = vmatmul.mubr.f32.gmra.mrb[0].mxu0 %v2835
    %v2969 = vpop.f32.mrb[0].mxu0
    %v2970 = vadd.f32 %v2793, %v2969
    %v2971 = vpop.f32.mrb[0].mxu0
    %2972 = vmatprep.mubr.f32.mxu0 0.0
    %2973 = vmatmul.mubr.f32.gmra.mrb[0].mxu0 %v2837
    %v2974 = vpop.f32.mrb[0].mxu0
    %v2975 = vadd.f32 %v2798, %v2974
    %v2976 = vpop.f32.mrb[0].mxu0
    %2977 = vmatprep.mubr.f32.mxu0 0.0
    %2978 = vmatmul.mubr.f32.gmra.mrb[0].mxu0 %v2839
    %v2979 = vpop.f32.mrb[0].mxu0
    %v2980 = vadd.f32 %v2803, %v2979
    %v2981 = vpop.f32.mrb[0].mxu0
    %2982 = vmatprep.mubr.f32.mxu0 0.0
    %2983 = vmatmul.mubr.f32.gmra.mrb[0].mxu0 %v2841
    %v2984 = vpop.f32.mrb[0].mxu0
    %v2985 = vadd.f32 %v2808, %v2984
    %v2986 = vpop.f32.mrb[0].mxu0
    %2987 = vdwg.mxu0
    %v2988 = vrot.slane %v2561, 2
    %v2989 = vrot.slane %v2523, 2
    %v2990 = vsel %vm2364, %v2988, %v2989
    %v2991 = vrot.slane %v2569, 2
    %v2992 = vsel %vm2364, %v2989, %v2991
    %v2993 = vrot.slane %v2562, 2
    %v2994 = vrot.slane %v2526, 2
    %v2995 = vsel %vm2364, %v2993, %v2994
    %v2996 = vrot.slane %v2570, 2
    %v2997 = vsel %vm2364, %v2994, %v2996
    %v2998 = vrot.slane %v2563, 2
    %v2999 = vrot.slane %v2529, 2
    %v3000 = vsel %vm2364, %v2998, %v2999
    %v3001 = vrot.slane %v2571, 2
    %v3002 = vsel %vm2364, %v2999, %v3001
    %v3003 = vrot.slane %v2564, 2
    %v3004 = vrot.slane %v2532, 2
    %v3005 = vsel %vm2364, %v3003, %v3004
    %v3006 = vrot.slane %v2572, 2
    %v3007 = vsel %vm2364, %v3004, %v3006
    %v3008 = vrot.slane %v2565, 2
    %v3009 = vrot.slane %v2535, 2
    %v3010 = vsel %vm2364, %v3008, %v3009
    %v3011 = vrot.slane %v2573, 2
    %v3012 = vsel %vm2364, %v3009, %v3011
    %v3013 = vrot.slane %v2566, 2
    %v3014 = vrot.slane %v2538, 2
    %v3015 = vsel %vm2364, %v3013, %v3014
    %v3016 = vrot.slane %v2574, 2
    %v3017 = vsel %vm2364, %v3014, %v3016
    %v3018 = vrot.slane %v2567, 2
    %v3019 = vrot.slane %v2541, 2
    %v3020 = vsel %vm2364, %v3018, %v3019
    %v3021 = vrot.slane %v2575, 2
    %v3022 = vsel %vm2364, %v3019, %v3021
    %v3023 = vrot.slane %v2568, 2
    %v3024 = vrot.slane %v2544, 2
    %v3025 = vsel %vm2364, %v3023, %v3024
    %v3026 = vrot.slane %v2576, 2
    %v3027 = vsel %vm2364, %v3024, %v3026
    %v3028 = vsel %vm2633, %v2990, 0
    %v3030 = vsel %vm2633, %v2992, 0
    %v3032 = vsel %vm2633, %v2995, 0
    %v3034 = vsel %vm2633, %v2997, 0
    %v3036 = vsel %vm2633, %v3000, 0
    %v3038 = vsel %vm2633, %v3002, 0
    %v3040 = vsel %vm2633, %v3005, 0
    %v3042 = vsel %vm2633, %v3007, 0
    %v3044 = vsel %vm2633, %v3010, 0
    %v3046 = vsel %vm2633, %v3012, 0
    %v3048 = vsel %vm2633, %v3015, 0
    %v3050 = vsel %vm2633, %v3017, 0
    %v3052 = vsel %vm2633, %v3020, 0
    %v3054 = vsel %vm2633, %v3022, 0
    %v3056 = vsel %vm2633, %v3025, 0
    %v3058 = vsel %vm2633, %v3027, 0
    %3060 = vmatprep.subr.mxu0 0.0
    %3061 = vmatpush1.msra.mxu0 %v2503
    %3062 = vmatprep.subr.mxu0 0.0
    %3063 = vmatpush1.msra.mxu0 %v2504
    %3064 = vmatprep.subr.mxu0 0.0
    %3065 = vmatpush1.msra.mxu0 0.0
    %3066 = vmatprep.subr.mxu0 0.0
    %3067 = vmatpush1.msra.mxu0 0.0
    %3068 = vmatprep.subr.mxu0 0.0
    %3069 = vmatpush1.msra.mxu0 0.0
    %3070 = vmatprep.subr.mxu0 0.0
    %3071 = vmatpush1.msra.mxu0 0.0
    %3072 = vmatprep.subr.mxu0 0.0
    %3073 = vmatpush1.msra.mxu0 0.0
    %3074 = vmatprep.subr.mxu0 0.0
    %3075 = vmatpush1.msra.mxu0 0.0
    %3076 = vmatprep.subr.mxu0 0.0
    %3077 = vmatpush1.msra.mxu0 0.0
    %3078 = vmatprep.subr.mxu0 0.0
    %3079 = vmatpush1.msra.mxu0 0.0
    %3080 = vmatprep.subr.mxu0 0.0
    %3081 = vmatpush1.msra.mxu0 0.0
    %3082 = vmatprep.subr.mxu0 0.0
    %3083 = vmatpush1.msra.mxu0 0.0
    %3084 = vmatprep.subr.mxu0 0.0
    %3085 = vmatpush1.msra.mxu0 0.0
    %3086 = vmatprep.subr.mxu0 0.0
    %3087 = vmatpush1.msra.mxu0 0.0
    %3088 = vmatprep.subr.mxu0 0.0
    %3089 = vmatpush1.msra.mxu0 0.0
    %3090 = vmatprep.subr.mxu0 0.0
    %3091 = vmatpush1.msra.mxu0 0.0
    %3092 = vmatprep.subr.mxu0 0.0
    %3093 = vmatpush1.msra.mxu0 0.0
    %3094 = vmatprep.subr.mxu0 0.0
    %3095 = vmatpush1.msra.mxu0 0.0
    %3096 = vmatprep.subr.mxu0 0.0
    %3097 = vmatpush1.msra.mxu0 0.0
    %3098 = vmatprep.subr.mxu0 0.0
    %3099 = vmatpush1.msra.mxu0 0.0
    %3100 = vmatprep.subr.mxu0 0.0
    %3101 = vmatpush1.msra.mxu0 0.0
    %3102 = vmatprep.subr.mxu0 0.0
    %3103 = vmatpush1.msra.mxu0 0.0
    %3104 = vmatprep.subr.mxu0 0.0
    %3105 = vmatpush1.msra.mxu0 0.0
    %3106 = vmatprep.subr.mxu0 0.0
    %3107 = vmatpush1.msra.mxu0 0.0
    %3108 = vmatprep.subr.mxu0 0.0
    %3109 = vmatpush1.msra.mxu0 0.0
    %3110 = vmatprep.subr.mxu0 0.0
    %3111 = vmatpush1.msra.mxu0 0.0
    %3112 = vmatprep.subr.mxu0 0.0
    %3113 = vmatpush1.msra.mxu0 0.0
    %3114 = vmatprep.subr.mxu0 0.0
    %3115 = vmatpush1.msra.mxu0 0.0
    %3116 = vmatprep.subr.mxu0 0.0
    %3117 = vmatpush1.msra.mxu0 0.0
    %3118 = vmatprep.subr.mxu0 0.0
    %3119 = vmatpush1.msra.mxu0 0.0
    %3120 = vmatprep.subr.mxu0 0.0
    %3121 = vmatpush1.msra.mxu0 0.0
    %3122 = vmatprep.subr.mxu0 0.0
    %3123 = vmatpush1.msra.mxu0 0.0
    %3124 = vmatprep.mubr.f32.mxu0 0.0
    %3125 = vmatmul.mubr.f32.gmra.mrb[0].mxu0 %v3028
    %v3126 = vpop.f32.mrb[0].mxu0
    %v3127 = vadd.f32 0.0, %v3126
    %v3128 = vpop.f32.mrb[0].mxu0
    %3129 = vmatprep.mubr.f32.mxu0 0.0
    %3130 = vmatmul.mubr.f32.gmra.mrb[0].mxu0 %v3030
    %v3131 = vpop.f32.mrb[0].mxu0
    %v3132 = vadd.f32 0.0, %v3131
    %v3133 = vpop.f32.mrb[0].mxu0
    %3134 = vmatprep.mubr.f32.mxu0 0.0
    %3135 = vmatmul.mubr.f32.gmra.mrb[0].mxu0 %v3032
    %v3136 = vpop.f32.mrb[0].mxu0
    %v3137 = vadd.f32 0.0, %v3136
    %v3138 = vpop.f32.mrb[0].mxu0
    %3139 = vmatprep.mubr.f32.mxu0 0.0
    %3140 = vmatmul.mubr.f32.gmra.mrb[0].mxu0 %v3034
    %v3141 = vpop.f32.mrb[0].mxu0
    %v3142 = vadd.f32 0.0, %v3141
    %v3143 = vpop.f32.mrb[0].mxu0
    %3144 = vmatprep.mubr.f32.mxu0 0.0
    %3145 = vmatmul.mubr.f32.gmra.mrb[0].mxu0 %v3036
    %v3146 = vpop.f32.mrb[0].mxu0
    %v3147 = vadd.f32 0.0, %v3146
    %v3148 = vpop.f32.mrb[0].mxu0
    %3149 = vmatprep.mubr.f32.mxu0 0.0
    %3150 = vmatmul.mubr.f32.gmra.mrb[0].mxu0 %v3038
    %v3151 = vpop.f32.mrb[0].mxu0
    %v3152 = vadd.f32 0.0, %v3151
    %v3153 = vpop.f32.mrb[0].mxu0
    %3154 = vmatprep.mubr.f32.mxu0 0.0
    %3155 = vmatmul.mubr.f32.gmra.mrb[0].mxu0 %v3040
    %v3156 = vpop.f32.mrb[0].mxu0
    %v3157 = vadd.f32 0.0, %v3156
    %v3158 = vpop.f32.mrb[0].mxu0
    %3159 = vmatprep.mubr.f32.mxu0 0.0
    %3160 = vmatmul.mubr.f32.gmra.mrb[0].mxu0 %v3042
    %v3161 = vpop.f32.mrb[0].mxu0
    %v3162 = vadd.f32 0.0, %v3161
    %v3163 = vpop.f32.mrb[0].mxu0
    %3164 = vmatprep.mubr.f32.mxu0 0.0
    %3165 = vmatmul.mubr.f32.gmra.mrb[0].mxu0 %v3044
    %v3166 = vpop.f32.mrb[0].mxu0
    %v3167 = vadd.f32 0.0, %v3166
    %v3168 = vpop.f32.mrb[0].mxu0
    %3169 = vmatprep.mubr.f32.mxu0 0.0
    %3170 = vmatmul.mubr.f32.gmra.mrb[0].mxu0 %v3046
    %v3171 = vpop.f32.mrb[0].mxu0
    %v3172 = vadd.f32 0.0, %v3171
    %v3173 = vpop.f32.mrb[0].mxu0
    %3174 = vmatprep.mubr.f32.mxu0 0.0
    %3175 = vmatmul.mubr.f32.gmra.mrb[0].mxu0 %v3048
    %v3176 = vpop.f32.mrb[0].mxu0
    %v3177 = vadd.f32 0.0, %v3176
    %v3178 = vpop.f32.mrb[0].mxu0
    %3179 = vmatprep.mubr.f32.mxu0 0.0
    %3180 = vmatmul.mubr.f32.gmra.mrb[0].mxu0 %v3050
    %v3181 = vpop.f32.mrb[0].mxu0
    %v3182 = vadd.f32 0.0, %v3181
    %v3183 = vpop.f32.mrb[0].mxu0
    %3184 = vmatprep.mubr.f32.mxu0 0.0
    %3185 = vmatmul.mubr.f32.gmra.mrb[0].mxu0 %v3052
    %v3186 = vpop.f32.mrb[0].mxu0
    %v3187 = vadd.f32 0.0, %v3186
    %v3188 = vpop.f32.mrb[0].mxu0
    %3189 = vmatprep.mubr.f32.mxu0 0.0
    %3190 = vmatmul.mubr.f32.gmra.mrb[0].mxu0 %v3054
    %v3191 = vpop.f32.mrb[0].mxu0
    %v3192 = vadd.f32 0.0, %v3191
    %v3193 = vpop.f32.mrb[0].mxu0
    %3194 = vmatprep.mubr.f32.mxu0 0.0
    %3195 = vmatmul.mubr.f32.gmra.mrb[0].mxu0 %v3056
    %v3196 = vpop.f32.mrb[0].mxu0
    %v3197 = vadd.f32 0.0, %v3196
    %v3198 = vpop.f32.mrb[0].mxu0
    %3199 = vmatprep.mubr.f32.mxu0 0.0
    %3200 = vmatmul.mubr.f32.gmra.mrb[0].mxu0 %v3058
    %v3201 = vpop.f32.mrb[0].mxu0
    %v3202 = vadd.f32 0.0, %v3201
    %v3203 = vpop.f32.mrb[0].mxu0
    %3204 = vdwg.mxu0
    %v3205 = vadd.f32 %v2910, %v3127
    %v3206 = vadd.f32 %v2915, %v3132
    %v3207 = vadd.f32 %v2920, %v3137
    %v3208 = vadd.f32 %v2925, %v3142
    %v3209 = vadd.f32 %v2930, %v3147
    %v3210 = vadd.f32 %v2935, %v3152
    %v3211 = vadd.f32 %v2940, %v3157
    %v3212 = vadd.f32 %v2945, %v3162
    %v3213 = vadd.f32 %v2950, %v3167
    %v3214 = vadd.f32 %v2955, %v3172
    %v3215 = vadd.f32 %v2960, %v3177
    %v3216 = vadd.f32 %v2965, %v3182
    %v3217 = vadd.f32 %v2970, %v3187
    %v3218 = vadd.f32 %v2975, %v3192
    %v3219 = vadd.f32 %v2980, %v3197
    %v3220 = vadd.f32 %v2985, %v3202
    %v3221 = vld [vmem:[%s8] sm:$0x1]
    %v3223 = vlaneseq
    %v3224 = vshrl.u32 %v3223, 7
    %v3225 = vsub.s32 0, %v3224
    %v3226 = vrot.slane %v3221, %v3225
    %v3228 = vmul.f32 %v3205, %v3226
    %v3229 = vmul.f32 %v3206, %v3226
    %v3230 = vmul.f32 %v3207, %v3226
    %v3231 = vmul.f32 %v3208, %v3226
    %v3232 = vmul.f32 %v3209, %v3226
    %v3233 = vmul.f32 %v3210, %v3226
    %v3234 = vmul.f32 %v3211, %v3226
    %v3235 = vmul.f32 %v3212, %v3226
    %v3236 = vmul.f32 %v3213, %v3226
    %v3237 = vmul.f32 %v3214, %v3226
    %v3238 = vmul.f32 %v3215, %v3226
    %v3239 = vmul.f32 %v3216, %v3226
    %v3240 = vmul.f32 %v3217, %v3226
    %v3241 = vmul.f32 %v3218, %v3226
    %v3242 = vmul.f32 %v3219, %v3226
    %v3243 = vmul.f32 %v3220, %v3226
    %v3244 = vld [vmem:[%s9] sm:$0x1]
    %v3246 = vlaneseq
    %v3247 = vshrl.u32 %v3246, 7
    %v3248 = vsub.s32 0, %v3247
    %v3249 = vrot.slane %v3244, %v3248
    %v3251 = vadd.f32 %v3228, %v3249
    %v3252 = vadd.f32 %v3229, %v3249
    %v3253 = vadd.f32 %v3230, %v3249
    %v3254 = vadd.f32 %v3231, %v3249
    %v3255 = vadd.f32 %v3232, %v3249
    %v3256 = vadd.f32 %v3233, %v3249
    %v3257 = vadd.f32 %v3234, %v3249
    %v3258 = vadd.f32 %v3235, %v3249
    %v3259 = vadd.f32 %v3236, %v3249
    %v3260 = vadd.f32 %v3237, %v3249
    %v3261 = vadd.f32 %v3238, %v3249
    %v3262 = vadd.f32 %v3239, %v3249
    %v3263 = vadd.f32 %v3240, %v3249
    %v3264 = vadd.f32 %v3241, %v3249
    %v3265 = vadd.f32 %v3242, %v3249
    %v3266 = vadd.f32 %v3243, %v3249
    %v3267 = vmax.f32 %v3251, 0.0
    %v3268 = vmax.f32 %v3252, 0.0
    %v3269 = vmax.f32 %v3253, 0.0
    %v3270 = vmax.f32 %v3254, 0.0
    %v3271 = vmax.f32 %v3255, 0.0
    %v3272 = vmax.f32 %v3256, 0.0
    %v3273 = vmax.f32 %v3257, 0.0
    %v3274 = vmax.f32 %v3258, 0.0
    %v3275 = vmax.f32 %v3259, 0.0
    %v3276 = vmax.f32 %v3260, 0.0
    %v3277 = vmax.f32 %v3261, 0.0
    %v3278 = vmax.f32 %v3262, 0.0
    %v3279 = vmax.f32 %v3263, 0.0
    %v3280 = vmax.f32 %v3264, 0.0
    %v3281 = vmax.f32 %v3265, 0.0
    %v3282 = vmax.f32 %v3266, 0.0
    %v3283 = vld [vmem:[%s10] sm:$0xff]
    %v3284 = vld [vmem:[%s10 + $0x8] sm:$0xff]
    %v3285 = vld [vmem:[%s10 + $0x10] sm:$0xff]
    %v3286 = vld [vmem:[%s10 + $0x18] sm:$0xff]
    %v3287 = vld [vmem:[%s10 + $0x20] sm:$0xff]
    %v3288 = vld [vmem:[%s10 + $0x28] sm:$0xff]
    %v3289 = vld [vmem:[%s10 + $0x30] sm:$0xff]
    %v3290 = vld [vmem:[%s10 + $0x38] sm:$0xff]
    %v3291 = vld [vmem:[%s10 + $0x40] sm:$0xff]
    %v3292 = vld [vmem:[%s10 + $0x48] sm:$0xff]
    %v3293 = vld [vmem:[%s10 + $0x50] sm:$0xff]
    %v3294 = vld [vmem:[%s10 + $0x58] sm:$0xff]
    %v3311 = vrot.slane %v3267, 7
    %v3312 = vrot.slane %v3268, 7
    %v3313 = vsel %vm1992, %v3311, %v3312
    %v3314 = vrot.slane %v3269, 7
    %v3315 = vrot.slane %v3270, 7
    %v3316 = vsel %vm1992, %v3314, %v3315
    %v3317 = vrot.slane %v3271, 7
    %v3318 = vrot.slane %v3272, 7
    %v3319 = vsel %vm1992, %v3317, %v3318
    %v3320 = vrot.slane %v3273, 7
    %v3321 = vrot.slane %v3274, 7
    %v3322 = vsel %vm1992, %v3320, %v3321
    %v3323 = vrot.slane %v3275, 7
    %v3324 = vrot.slane %v3276, 7
    %v3325 = vsel %vm1992, %v3323, %v3324
    %v3326 = vrot.slane %v3277, 7
    %v3327 = vrot.slane %v3278, 7
    %v3328 = vsel %vm1992, %v3326, %v3327
    %v3329 = vrot.slane %v3279, 7
    %v3330 = vrot.slane %v3280, 7
    %v3331 = vsel %vm1992, %v3329, %v3330
    %v3332 = vrot.slane %v3281, 7
    %v3333 = vrot.slane %v3282, 7
    %v3334 = vsel %vm1992, %v3332, %v3333
    %v3351 = vsel %vm1992, 0.0, %v3311
    %v3352 = vsel %vm1992, 0.0, %v3314
    %v3353 = vsel %vm1992, 0.0, %v3317
    %v3354 = vsel %vm1992, 0.0, %v3320
    %v3355 = vsel %vm1992, 0.0, %v3323
    %v3356 = vsel %vm1992, 0.0, %v3326
    %v3357 = vsel %vm1992, 0.0, %v3329
    %v3358 = vsel %vm1992, 0.0, %v3332
    %v3359 = vsel %vm1992, %v3312, 0.0
    %v3360 = vsel %vm1992, %v3315, 0.0
    %v3361 = vsel %vm1992, %v3318, 0.0
    %v3362 = vsel %vm1992, %v3321, 0.0
    %v3363 = vsel %vm1992, %v3324, 0.0
    %v3364 = vsel %vm1992, %v3327, 0.0
    %v3365 = vsel %vm1992, %v3330, 0.0
    %v3366 = vsel %vm1992, %v3333, 0.0
    %v3383 = vrot.slane %v3351, 1
    %v3384 = vrot.slane %v3313, 1
    %v3385 = vsel %vm2237, %v3383, %v3384
    %v3386 = vrot.slane %v3359, 1
    %v3387 = vsel %vm2237, %v3384, %v3386
    %v3388 = vrot.slane %v3352, 1
    %v3389 = vrot.slane %v3316, 1
    %v3390 = vsel %vm2237, %v3388, %v3389
    %v3391 = vrot.slane %v3360, 1
    %v3392 = vsel %vm2237, %v3389, %v3391
    %v3393 = vrot.slane %v3353, 1
    %v3394 = vrot.slane %v3319, 1
    %v3395 = vsel %vm2237, %v3393, %v3394
    %v3396 = vrot.slane %v3361, 1
    %v3397 = vsel %vm2237, %v3394, %v3396
    %v3398 = vrot.slane %v3354, 1
    %v3399 = vrot.slane %v3322, 1
    %v3400 = vsel %vm2237, %v3398, %v3399
    %v3401 = vrot.slane %v3362, 1
    %v3402 = vsel %vm2237, %v3399, %v3401
    %v3403 = vrot.slane %v3355, 1
    %v3404 = vrot.slane %v3325, 1
    %v3405 = vsel %vm2237, %v3403, %v3404
    %v3406 = vrot.slane %v3363, 1
    %v3407 = vsel %vm2237, %v3404, %v3406
    %v3408 = vrot.slane %v3356, 1
    %v3409 = vrot.slane %v3328, 1
    %v3410 = vsel %vm2237, %v3408, %v3409
    %v3411 = vrot.slane %v3364, 1
    %v3412 = vsel %vm2237, %v3409, %v3411
    %v3413 = vrot.slane %v3357, 1
    %v3414 = vrot.slane %v3331, 1
    %v3415 = vsel %vm2237, %v3413, %v3414
    %v3416 = vrot.slane %v3365, 1
    %v3417 = vsel %vm2237, %v3414, %v3416
    %v3418 = vrot.slane %v3358, 1
    %v3419 = vrot.slane %v3334, 1
    %v3420 = vsel %vm2237, %v3418, %v3419
    %v3421 = vrot.slane %v3366, 1
    %v3422 = vsel %vm2237, %v3419, %v3421
    %v3423 = vsel %vm286, %v3385, 0
    %v3425 = vsel %vm286, %v3387, 0
    %v3427 = vsel %vm286, %v3390, 0
    %v3429 = vsel %vm286, %v3392, 0
    %v3431 = vsel %vm286, %v3395, 0
    %v3433 = vsel %vm286, %v3397, 0
    %v3435 = vsel %vm286, %v3400, 0
    %v3437 = vsel %vm286, %v3402, 0
    %v3439 = vsel %vm286, %v3405, 0
    %v3441 = vsel %vm286, %v3407, 0
    %v3443 = vsel %vm286, %v3410, 0
    %v3445 = vsel %vm286, %v3412, 0
    %v3447 = vsel %vm286, %v3415, 0
    %v3449 = vsel %vm286, %v3417, 0
    %v3451 = vsel %vm286, %v3420, 0
    %v3453 = vsel %vm286, %v3422, 0
    %3455 = vmatprep.subr.mxu0 0.0
    %3456 = vmatpush1.msra.mxu0 %v3287
    %3457 = vmatprep.subr.mxu0 0.0
    %3458 = vmatpush1.msra.mxu0 %v3288
    %3459 = vmatprep.subr.mxu0 0.0
    %3460 = vmatpush1.msra.mxu0 %v3289
    %3461 = vmatprep.subr.mxu0 0.0
    %3462 = vmatpush1.msra.mxu0 %v3290
    %3463 = vmatprep.subr.mxu0 0.0
    %3464 = vmatpush1.msra.mxu0 0.0
    %3465 = vmatprep.subr.mxu0 0.0
    %3466 = vmatpush1.msra.mxu0 0.0
    %3467 = vmatprep.subr.mxu0 0.0
    %3468 = vmatpush1.msra.mxu0 0.0
    %3469 = vmatprep.subr.mxu0 0.0
    %3470 = vmatpush1.msra.mxu0 0.0
    %3471 = vmatprep.subr.mxu0 0.0
    %3472 = vmatpush1.msra.mxu0 0.0
    %3473 = vmatprep.subr.mxu0 0.0
    %3474 = vmatpush1.msra.mxu0 0.0
    %3475 = vmatprep.subr.mxu0 0.0
    %3476 = vmatpush1.msra.mxu0 0.0
    %3477 = vmatprep.subr.mxu0 0.0
    %3478 = vmatpush1.msra.mxu0 0.0
    %3479 = vmatprep.subr.mxu0 0.0
    %3480 = vmatpush1.msra.mxu0 0.0
    %3481 = vmatprep.subr.mxu0 0.0
    %3482 = vmatpush1.msra.mxu0 0.0
    %3483 = vmatprep.subr.mxu0 0.0
    %3484 = vmatpush1.msra.mxu0 0.0
    %3485 = vmatprep.subr.mxu0 0.0
    %3486 = vmatpush1.msra.mxu0 0.0
    %3487 = vmatprep.subr.mxu0 0.0
    %3488 = vmatpush1.msra.mxu0 0.0
    %3489 = vmatprep.subr.mxu0 0.0
    %3490 = vmatpush1.msra.mxu0 0.0
    %3491 = vmatprep.subr.mxu0 0.0
    %3492 = vmatpush1.msra.mxu0 0.0
    %3493 = vmatprep.subr.mxu0 0.0
    %3494 = vmatpush1.msra.mxu0 0.0
    %3495 = vmatprep.subr.mxu0 0.0
    %3496 = vmatpush1.msra.mxu0 0.0
    %3497 = vmatprep.subr.mxu0 0.0
    %3498 = vmatpush1.msra.mxu0 0.0
    %3499 = vmatprep.subr.mxu0 0.0
    %3500 = vmatpush1.msra.mxu0 0.0
    %3501 = vmatprep.subr.mxu0 0.0
    %3502 = vmatpush1.msra.mxu0 0.0
    %3503 = vmatprep.subr.mxu0 0.0
    %3504 = vmatpush1.msra.mxu0 0.0
    %3505 = vmatprep.subr.mxu0 0.0
    %3506 = vmatpush1.msra.mxu0 0.0
    %3507 = vmatprep.subr.mxu0 0.0
    %3508 = vmatpush1.msra.mxu0 0.0
    %3509 = vmatprep.subr.mxu0 0.0
    %3510 = vmatpush1.msra.mxu0 0.0
    %3511 = vmatprep.subr.mxu0 0.0
    %3512 = vmatpush1.msra.mxu0 0.0
    %3513 = vmatprep.subr.mxu0 0.0
    %3514 = vmatpush1.msra.mxu0 0.0
    %3515 = vmatprep.subr.mxu0 0.0
    %3516 = vmatpush1.msra.mxu0 0.0
    %3517 = vmatprep.subr.mxu0 0.0
    %3518 = vmatpush1.msra.mxu0 0.0
    %3519 = vmatprep.mubr.f32.mxu0 0.0
    %3520 = vmatmul.mubr.f32.gmra.mrb[0].mxu0 %v3423
    %v3521 = vpop.f32.mrb[0].mxu0
    %v3522 = vadd.f32 0.0, %v3521
    %v3523 = vpop.f32.mrb[0].mxu0
    %3524 = vmatprep.mubr.f32.mxu0 0.0
    %3525 = vmatmul.mubr.f32.gmra.mrb[0].mxu0 %v3425
    %v3526 = vpop.f32.mrb[0].mxu0
    %v3527 = vadd.f32 0.0, %v3526
    %v3528 = vpop.f32.mrb[0].mxu0
    %3529 = vmatprep.mubr.f32.mxu0 0.0
    %3530 = vmatmul.mubr.f32.gmra.mrb[0].mxu0 %v3427
    %v3531 = vpop.f32.mrb[0].mxu0
    %v3532 = vadd.f32 0.0, %v3531
    %v3533 = vpop.f32.mrb[0].mxu0
    %3534 = vmatprep.mubr.f32.mxu0 0.0
    %3535 = vmatmul.mubr.f32.gmra.mrb[0].mxu0 %v3429
    %v3536 = vpop.f32.mrb[0].mxu0
    %v3537 = vadd.f32 0.0, %v3536
    %v3538 = vpop.f32.mrb[0].mxu0
    %3539 = vmatprep.mubr.f32.mxu0 0.0
    %3540 = vmatmul.mubr.f32.gmra.mrb[0].mxu0 %v3431
    %v3541 = vpop.f32.mrb[0].mxu0
    %v3542 = vadd.f32 0.0, %v3541
    %v3543 = vpop.f32.mrb[0].mxu0
    %3544 = vmatprep.mubr.f32.mxu0 0.0
    %3545 = vmatmul.mubr.f32.gmra.mrb[0].mxu0 %v3433
    %v3546 = vpop.f32.mrb[0].mxu0
    %v3547 = vadd.f32 0.0, %v3546
    %v3548 = vpop.f32.mrb[0].mxu0
    %3549 = vmatprep.mubr.f32.mxu0 0.0
    %3550 = vmatmul.mubr.f32.gmra.mrb[0].mxu0 %v3435
    %v3551 = vpop.f32.mrb[0].mxu0
    %v3552 = vadd.f32 0.0, %v3551
    %v3553 = vpop.f32.mrb[0].mxu0
    %3554 = vmatprep.mubr.f32.mxu0 0.0
    %3555 = vmatmul.mubr.f32.gmra.mrb[0].mxu0 %v3437
    %v3556 = vpop.f32.mrb[0].mxu0
    %v3557 = vadd.f32 0.0, %v3556
    %v3558 = vpop.f32.mrb[0].mxu0
    %3559 = vmatprep.mubr.f32.mxu0 0.0
    %3560 = vmatmul.mubr.f32.gmra.mrb[0].mxu0 %v3439
    %v3561 = vpop.f32.mrb[0].mxu0
    %v3562 = vadd.f32 0.0, %v3561
    %v3563 = vpop.f32.mrb[0].mxu0
    %3564 = vmatprep.mubr.f32.mxu0 0.0
    %3565 = vmatmul.mubr.f32.gmra.mrb[0].mxu0 %v3441
    %v3566 = vpop.f32.mrb[0].mxu0
    %v3567 = vadd.f32 0.0, %v3566
    %v3568 = vpop.f32.mrb[0].mxu0
    %3569 = vmatprep.mubr.f32.mxu0 0.0
    %3570 = vmatmul.mubr.f32.gmra.mrb[0].mxu0 %v3443
    %v3571 = vpop.f32.mrb[0].mxu0
    %v3572 = vadd.f32 0.0, %v3571
    %v3573 = vpop.f32.mrb[0].mxu0
    %3574 = vmatprep.mubr.f32.mxu0 0.0
    %3575 = vmatmul.mubr.f32.gmra.mrb[0].mxu0 %v3445
    %v3576 = vpop.f32.mrb[0].mxu0
    %v3577 = vadd.f32 0.0, %v3576
    %v3578 = vpop.f32.mrb[0].mxu0
    %3579 = vmatprep.mubr.f32.mxu0 0.0
    %3580 = vmatmul.mubr.f32.gmra.mrb[0].mxu0 %v3447
    %v3581 = vpop.f32.mrb[0].mxu0
    %v3582 = vadd.f32 0.0, %v3581
    %v3583 = vpop.f32.mrb[0].mxu0
    %3584 = vmatprep.mubr.f32.mxu0 0.0
    %3585 = vmatmul.mubr.f32.gmra.mrb[0].mxu0 %v3449
    %v3586 = vpop.f32.mrb[0].mxu0
    %v3587 = vadd.f32 0.0, %v3586
    %v3588 = vpop.f32.mrb[0].mxu0
    %3589 = vmatprep.mubr.f32.mxu0 0.0
    %3590 = vmatmul.mubr.f32.gmra.mrb[0].mxu0 %v3451
    %v3591 = vpop.f32.mrb[0].mxu0
    %v3592 = vadd.f32 0.0, %v3591
    %v3593 = vpop.f32.mrb[0].mxu0
    %3594 = vmatprep.mubr.f32.mxu0 0.0
    %3595 = vmatmul.mubr.f32.gmra.mrb[0].mxu0 %v3453
    %v3596 = vpop.f32.mrb[0].mxu0
    %v3597 = vadd.f32 0.0, %v3596
    %v3598 = vpop.f32.mrb[0].mxu0
    %3599 = vdwg.mxu0
    %v3600 = vsel %vm286, %v3351, 0
    %v3602 = vsel %vm286, %v3313, 0
    %v3604 = vsel %vm286, %v3352, 0
    %v3606 = vsel %vm286, %v3316, 0
    %v3608 = vsel %vm286, %v3353, 0
    %v3610 = vsel %vm286, %v3319, 0
    %v3612 = vsel %vm286, %v3354, 0
    %v3614 = vsel %vm286, %v3322, 0
    %v3616 = vsel %vm286, %v3355, 0
    %v3618 = vsel %vm286, %v3325, 0
    %v3620 = vsel %vm286, %v3356, 0
    %v3622 = vsel %vm286, %v3328, 0
    %v3624 = vsel %vm286, %v3357, 0
    %v3626 = vsel %vm286, %v3331, 0
    %v3628 = vsel %vm286, %v3358, 0
    %v3630 = vsel %vm286, %v3334, 0
    %3632 = vmatprep.subr.mxu0 0.0
    %3633 = vmatpush1.msra.mxu0 %v3283
    %3634 = vmatprep.subr.mxu0 0.0
    %3635 = vmatpush1.msra.mxu0 %v3284
    %3636 = vmatprep.subr.mxu0 0.0
    %3637 = vmatpush1.msra.mxu0 %v3285
    %3638 = vmatprep.subr.mxu0 0.0
    %3639 = vmatpush1.msra.mxu0 %v3286
    %3640 = vmatprep.subr.mxu0 0.0
    %3641 = vmatpush1.msra.mxu0 0.0
    %3642 = vmatprep.subr.mxu0 0.0
    %3643 = vmatpush1.msra.mxu0 0.0
    %3644 = vmatprep.subr.mxu0 0.0
    %3645 = vmatpush1.msra.mxu0 0.0
    %3646 = vmatprep.subr.mxu0 0.0
    %3647 = vmatpush1.msra.mxu0 0.0
    %3648 = vmatprep.subr.mxu0 0.0
    %3649 = vmatpush1.msra.mxu0 0.0
    %3650 = vmatprep.subr.mxu0 0.0
    %3651 = vmatpush1.msra.mxu0 0.0
    %3652 = vmatprep.subr.mxu0 0.0
    %3653 = vmatpush1.msra.mxu0 0.0
    %3654 = vmatprep.subr.mxu0 0.0
    %3655 = vmatpush1.msra.mxu0 0.0
    %3656 = vmatprep.subr.mxu0 0.0
    %3657 = vmatpush1.msra.mxu0 0.0
    %3658 = vmatprep.subr.mxu0 0.0
    %3659 = vmatpush1.msra.mxu0 0.0
    %3660 = vmatprep.subr.mxu0 0.0
    %3661 = vmatpush1.msra.mxu0 0.0
    %3662 = vmatprep.subr.mxu0 0.0
    %3663 = vmatpush1.msra.mxu0 0.0
    %3664 = vmatprep.subr.mxu0 0.0
    %3665 = vmatpush1.msra.mxu0 0.0
    %3666 = vmatprep.subr.mxu0 0.0
    %3667 = vmatpush1.msra.mxu0 0.0
    %3668 = vmatprep.subr.mxu0 0.0
    %3669 = vmatpush1.msra.mxu0 0.0
    %3670 = vmatprep.subr.mxu0 0.0
    %3671 = vmatpush1.msra.mxu0 0.0
    %3672 = vmatprep.subr.mxu0 0.0
    %3673 = vmatpush1.msra.mxu0 0.0
    %3674 = vmatprep.subr.mxu0 0.0
    %3675 = vmatpush1.msra.mxu0 0.0
    %3676 = vmatprep.subr.mxu0 0.0
    %3677 = vmatpush1.msra.mxu0 0.0
    %3678 = vmatprep.subr.mxu0 0.0
    %3679 = vmatpush1.msra.mxu0 0.0
    %3680 = vmatprep.subr.mxu0 0.0
    %3681 = vmatpush1.msra.mxu0 0.0
    %3682 = vmatprep.subr.mxu0 0.0
    %3683 = vmatpush1.msra.mxu0 0.0
    %3684 = vmatprep.subr.mxu0 0.0
    %3685 = vmatpush1.msra.mxu0 0.0
    %3686 = vmatprep.subr.mxu0 0.0
    %3687 = vmatpush1.msra.mxu0 0.0
    %3688 = vmatprep.subr.mxu0 0.0
    %3689 = vmatpush1.msra.mxu0 0.0
    %3690 = vmatprep.subr.mxu0 0.0
    %3691 = vmatpush1.msra.mxu0 0.0
    %3692 = vmatprep.subr.mxu0 0.0
    %3693 = vmatpush1.msra.mxu0 0.0
    %3694 = vmatprep.subr.mxu0 0.0
    %3695 = vmatpush1.msra.mxu0 0.0
    %3696 = vmatprep.mubr.f32.mxu0 0.0
    %3697 = vmatmul.mubr.f32.gmra.mrb[0].mxu0 %v3600
    %v3698 = vpop.f32.mrb[0].mxu0
    %v3699 = vadd.f32 %v3522, %v3698
    %v3700 = vpop.f32.mrb[0].mxu0
    %3701 = vmatprep.mubr.f32.mxu0 0.0
    %3702 = vmatmul.mubr.f32.gmra.mrb[0].mxu0 %v3602
    %v3703 = vpop.f32.mrb[0].mxu0
    %v3704 = vadd.f32 %v3527, %v3703
    %v3705 = vpop.f32.mrb[0].mxu0
    %3706 = vmatprep.mubr.f32.mxu0 0.0
    %3707 = vmatmul.mubr.f32.gmra.mrb[0].mxu0 %v3604
    %v3708 = vpop.f32.mrb[0].mxu0
    %v3709 = vadd.f32 %v3532, %v3708
    %v3710 = vpop.f32.mrb[0].mxu0
    %3711 = vmatprep.mubr.f32.mxu0 0.0
    %3712 = vmatmul.mubr.f32.gmra.mrb[0].mxu0 %v3606
    %v3713 = vpop.f32.mrb[0].mxu0
    %v3714 = vadd.f32 %v3537, %v3713
    %v3715 = vpop.f32.mrb[0].mxu0
    %3716 = vmatprep.mubr.f32.mxu0 0.0
    %3717 = vmatmul.mubr.f32.gmra.mrb[0].mxu0 %v3608
    %v3718 = vpop.f32.mrb[0].mxu0
    %v3719 = vadd.f32 %v3542, %v3718
    %v3720 = vpop.f32.mrb[0].mxu0
    %3721 = vmatprep.mubr.f32.mxu0 0.0
    %3722 = vmatmul.mubr.f32.gmra.mrb[0].mxu0 %v3610
    %v3723 = vpop.f32.mrb[0].mxu0
    %v3724 = vadd.f32 %v3547, %v3723
    %v3725 = vpop.f32.mrb[0].mxu0
    %3726 = vmatprep.mubr.f32.mxu0 0.0
    %3727 = vmatmul.mubr.f32.gmra.mrb[0].mxu0 %v3612
    %v3728 = vpop.f32.mrb[0].mxu0
    %v3729 = vadd.f32 %v3552, %v3728
    %v3730 = vpop.f32.mrb[0].mxu0
    %3731 = vmatprep.mubr.f32.mxu0 0.0
    %3732 = vmatmul.mubr.f32.gmra.mrb[0].mxu0 %v3614
    %v3733 = vpop.f32.mrb[0].mxu0
    %v3734 = vadd.f32 %v3557, %v3733
    %v3735 = vpop.f32.mrb[0].mxu0
    %3736 = vmatprep.mubr.f32.mxu0 0.0
    %3737 = vmatmul.mubr.f32.gmra.mrb[0].mxu0 %v3616
    %v3738 = vpop.f32.mrb[0].mxu0
    %v3739 = vadd.f32 %v3562, %v3738
    %v3740 = vpop.f32.mrb[0].mxu0
    %3741 = vmatprep.mubr.f32.mxu0 0.0
    %3742 = vmatmul.mubr.f32.gmra.mrb[0].mxu0 %v3618
    %v3743 = vpop.f32.mrb[0].mxu0
    %v3744 = vadd.f32 %v3567, %v3743
    %v3745 = vpop.f32.mrb[0].mxu0
    %3746 = vmatprep.mubr.f32.mxu0 0.0
    %3747 = vmatmul.mubr.f32.gmra.mrb[0].mxu0 %v3620
    %v3748 = vpop.f32.mrb[0].mxu0
    %v3749 = vadd.f32 %v3572, %v3748
    %v3750 = vpop.f32.mrb[0].mxu0
    %3751 = vmatprep.mubr.f32.mxu0 0.0
    %3752 = vmatmul.mubr.f32.gmra.mrb[0].mxu0 %v3622
    %v3753 = vpop.f32.mrb[0].mxu0
    %v3754 = vadd.f32 %v3577, %v3753
    %v3755 = vpop.f32.mrb[0].mxu0
    %3756 = vmatprep.mubr.f32.mxu0 0.0
    %3757 = vmatmul.mubr.f32.gmra.mrb[0].mxu0 %v3624
    %v3758 = vpop.f32.mrb[0].mxu0
    %v3759 = vadd.f32 %v3582, %v3758
    %v3760 = vpop.f32.mrb[0].mxu0
    %3761 = vmatprep.mubr.f32.mxu0 0.0
    %3762 = vmatmul.mubr.f32.gmra.mrb[0].mxu0 %v3626
    %v3763 = vpop.f32.mrb[0].mxu0
    %v3764 = vadd.f32 %v3587, %v3763
    %v3765 = vpop.f32.mrb[0].mxu0
    %3766 = vmatprep.mubr.f32.mxu0 0.0
    %3767 = vmatmul.mubr.f32.gmra.mrb[0].mxu0 %v3628
    %v3768 = vpop.f32.mrb[0].mxu0
    %v3769 = vadd.f32 %v3592, %v3768
    %v3770 = vpop.f32.mrb[0].mxu0
    %3771 = vmatprep.mubr.f32.mxu0 0.0
    %3772 = vmatmul.mubr.f32.gmra.mrb[0].mxu0 %v3630
    %v3773 = vpop.f32.mrb[0].mxu0
    %v3774 = vadd.f32 %v3597, %v3773
    %v3775 = vpop.f32.mrb[0].mxu0
    %3776 = vdwg.mxu0
    %v3777 = vrot.slane %v3351, 2
    %v3778 = vrot.slane %v3313, 2
    %v3779 = vsel %vm2364, %v3777, %v3778
    %v3780 = vrot.slane %v3359, 2
    %v3781 = vsel %vm2364, %v3778, %v3780
    %v3782 = vrot.slane %v3352, 2
    %v3783 = vrot.slane %v3316, 2
    %v3784 = vsel %vm2364, %v3782, %v3783
    %v3785 = vrot.slane %v3360, 2
    %v3786 = vsel %vm2364, %v3783, %v3785
    %v3787 = vrot.slane %v3353, 2
    %v3788 = vrot.slane %v3319, 2
    %v3789 = vsel %vm2364, %v3787, %v3788
    %v3790 = vrot.slane %v3361, 2
    %v3791 = vsel %vm2364, %v3788, %v3790
    %v3792 = vrot.slane %v3354, 2
    %v3793 = vrot.slane %v3322, 2
    %v3794 = vsel %vm2364, %v3792, %v3793
    %v3795 = vrot.slane %v3362, 2
    %v3796 = vsel %vm2364, %v3793, %v3795
    %v3797 = vrot.slane %v3355, 2
    %v3798 = vrot.slane %v3325, 2
    %v3799 = vsel %vm2364, %v3797, %v3798
    %v3800 = vrot.slane %v3363, 2
    %v3801 = vsel %vm2364, %v3798, %v3800
    %v3802 = vrot.slane %v3356, 2
    %v3803 = vrot.slane %v3328, 2
    %v3804 = vsel %vm2364, %v3802, %v3803
    %v3805 = vrot.slane %v3364, 2
    %v3806 = vsel %vm2364, %v3803, %v3805
    %v3807 = vrot.slane %v3357, 2
    %v3808 = vrot.slane %v3331, 2
    %v3809 = vsel %vm2364, %v3807, %v3808
    %v3810 = vrot.slane %v3365, 2
    %v3811 = vsel %vm2364, %v3808, %v3810
    %v3812 = vrot.slane %v3358, 2
    %v3813 = vrot.slane %v3334, 2
    %v3814 = vsel %vm2364, %v3812, %v3813
    %v3815 = vrot.slane %v3366, 2
    %v3816 = vsel %vm2364, %v3813, %v3815
    %v3817 = vsel %vm286, %v3779, 0
    %v3819 = vsel %vm286, %v3781, 0
    %v3821 = vsel %vm286, %v3784, 0
    %v3823 = vsel %vm286, %v3786, 0
    %v3825 = vsel %vm286, %v3789, 0
    %v3827 = vsel %vm286, %v3791, 0
    %v3829 = vsel %vm286, %v3794, 0
    %v3831 = vsel %vm286, %v3796, 0
    %v3833 = vsel %vm286, %v3799, 0
    %v3835 = vsel %vm286, %v3801, 0
    %v3837 = vsel %vm286, %v3804, 0
    %v3839 = vsel %vm286, %v3806, 0
    %v3841 = vsel %vm286, %v3809, 0
    %v3843 = vsel %vm286, %v3811, 0
    %v3845 = vsel %vm286, %v3814, 0
    %v3847 = vsel %vm286, %v3816, 0
    %3849 = vmatprep.subr.mxu0 0.0
    %3850 = vmatpush1.msra.mxu0 %v3291
    %3851 = vmatprep.subr.mxu0 0.0
    %3852 = vmatpush1.msra.mxu0 %v3292
    %3853 = vmatprep.subr.mxu0 0.0
    %3854 = vmatpush1.msra.mxu0 %v3293
    %3855 = vmatprep.subr.mxu0 0.0
    %3856 = vmatpush1.msra.mxu0 %v3294
    %3857 = vmatprep.subr.mxu0 0.0
    %3858 = vmatpush1.msra.mxu0 0.0
    %3859 = vmatprep.subr.mxu0 0.0
    %3860 = vmatpush1.msra.mxu0 0.0
    %3861 = vmatprep.subr.mxu0 0.0
    %3862 = vmatpush1.msra.mxu0 0.0
    %3863 = vmatprep.subr.mxu0 0.0
    %3864 = vmatpush1.msra.mxu0 0.0
    %3865 = vmatprep.subr.mxu0 0.0
    %3866 = vmatpush1.msra.mxu0 0.0
    %3867 = vmatprep.subr.mxu0 0.0
    %3868 = vmatpush1.msra.mxu0 0.0
    %3869 = vmatprep.subr.mxu0 0.0
    %3870 = vmatpush1.msra.mxu0 0.0
    %3871 = vmatprep.subr.mxu0 0.0
    %3872 = vmatpush1.msra.mxu0 0.0
    %3873 = vmatprep.subr.mxu0 0.0
    %3874 = vmatpush1.msra.mxu0 0.0
    %3875 = vmatprep.subr.mxu0 0.0
    %3876 = vmatpush1.msra.mxu0 0.0
    %3877 = vmatprep.subr.mxu0 0.0
    %3878 = vmatpush1.msra.mxu0 0.0
    %3879 = vmatprep.subr.mxu0 0.0
    %3880 = vmatpush1.msra.mxu0 0.0
    %3881 = vmatprep.subr.mxu0 0.0
    %3882 = vmatpush1.msra.mxu0 0.0
    %3883 = vmatprep.subr.mxu0 0.0
    %3884 = vmatpush1.msra.mxu0 0.0
    %3885 = vmatprep.subr.mxu0 0.0
    %3886 = vmatpush1.msra.mxu0 0.0
    %3887 = vmatprep.subr.mxu0 0.0
    %3888 = vmatpush1.msra.mxu0 0.0
    %3889 = vmatprep.subr.mxu0 0.0
    %3890 = vmatpush1.msra.mxu0 0.0
    %3891 = vmatprep.subr.mxu0 0.0
    %3892 = vmatpush1.msra.mxu0 0.0
    %3893 = vmatprep.subr.mxu0 0.0
    %3894 = vmatpush1.msra.mxu0 0.0
    %3895 = vmatprep.subr.mxu0 0.0
    %3896 = vmatpush1.msra.mxu0 0.0
    %3897 = vmatprep.subr.mxu0 0.0
    %3898 = vmatpush1.msra.mxu0 0.0
    %3899 = vmatprep.subr.mxu0 0.0
    %3900 = vmatpush1.msra.mxu0 0.0
    %3901 = vmatprep.subr.mxu0 0.0
    %3902 = vmatpush1.msra.mxu0 0.0
    %3903 = vmatprep.subr.mxu0 0.0
    %3904 = vmatpush1.msra.mxu0 0.0
    %3905 = vmatprep.subr.mxu0 0.0
    %3906 = vmatpush1.msra.mxu0 0.0
    %3907 = vmatprep.subr.mxu0 0.0
    %3908 = vmatpush1.msra.mxu0 0.0
    %3909 = vmatprep.subr.mxu0 0.0
    %3910 = vmatpush1.msra.mxu0 0.0
    %3911 = vmatprep.subr.mxu0 0.0
    %3912 = vmatpush1.msra.mxu0 0.0
    %3913 = vmatprep.mubr.f32.mxu0 0.0
    %3914 = vmatmul.mubr.f32.gmra.mrb[0].mxu0 %v3817
    %v3915 = vpop.f32.mrb[0].mxu0
    %v3916 = vadd.f32 0.0, %v3915
    %v3917 = vpop.f32.mrb[0].mxu0
    %3918 = vmatprep.mubr.f32.mxu0 0.0
    %3919 = vmatmul.mubr.f32.gmra.mrb[0].mxu0 %v3819
    %v3920 = vpop.f32.mrb[0].mxu0
    %v3921 = vadd.f32 0.0, %v3920
    %v3922 = vpop.f32.mrb[0].mxu0
    %3923 = vmatprep.mubr.f32.mxu0 0.0
    %3924 = vmatmul.mubr.f32.gmra.mrb[0].mxu0 %v3821
    %v3925 = vpop.f32.mrb[0].mxu0
    %v3926 = vadd.f32 0.0, %v3925
    %v3927 = vpop.f32.mrb[0].mxu0
    %3928 = vmatprep.mubr.f32.mxu0 0.0
    %3929 = vmatmul.mubr.f32.gmra.mrb[0].mxu0 %v3823
    %v3930 = vpop.f32.mrb[0].mxu0
    %v3931 = vadd.f32 0.0, %v3930
    %v3932 = vpop.f32.mrb[0].mxu0
    %3933 = vmatprep.mubr.f32.mxu0 0.0
    %3934 = vmatmul.mubr.f32.gmra.mrb[0].mxu0 %v3825
    %v3935 = vpop.f32.mrb[0].mxu0
    %v3936 = vadd.f32 0.0, %v3935
    %v3937 = vpop.f32.mrb[0].mxu0
    %3938 = vmatprep.mubr.f32.mxu0 0.0
    %3939 = vmatmul.mubr.f32.gmra.mrb[0].mxu0 %v3827
    %v3940 = vpop.f32.mrb[0].mxu0
    %v3941 = vadd.f32 0.0, %v3940
    %v3942 = vpop.f32.mrb[0].mxu0
    %3943 = vmatprep.mubr.f32.mxu0 0.0
    %3944 = vmatmul.mubr.f32.gmra.mrb[0].mxu0 %v3829
    %v3945 = vpop.f32.mrb[0].mxu0
    %v3946 = vadd.f32 0.0, %v3945
    %v3947 = vpop.f32.mrb[0].mxu0
    %3948 = vmatprep.mubr.f32.mxu0 0.0
    %3949 = vmatmul.mubr.f32.gmra.mrb[0].mxu0 %v3831
    %v3950 = vpop.f32.mrb[0].mxu0
    %v3951 = vadd.f32 0.0, %v3950
    %v3952 = vpop.f32.mrb[0].mxu0
    %3953 = vmatprep.mubr.f32.mxu0 0.0
    %3954 = vmatmul.mubr.f32.gmra.mrb[0].mxu0 %v3833
    %v3955 = vpop.f32.mrb[0].mxu0
    %v3956 = vadd.f32 0.0, %v3955
    %v3957 = vpop.f32.mrb[0].mxu0
    %3958 = vmatprep.mubr.f32.mxu0 0.0
    %3959 = vmatmul.mubr.f32.gmra.mrb[0].mxu0 %v3835
    %v3960 = vpop.f32.mrb[0].mxu0
    %v3961 = vadd.f32 0.0, %v3960
    %v3962 = vpop.f32.mrb[0].mxu0
    %3963 = vmatprep.mubr.f32.mxu0 0.0
    %3964 = vmatmul.mubr.f32.gmra.mrb[0].mxu0 %v3837
    %v3965 = vpop.f32.mrb[0].mxu0
    %v3966 = vadd.f32 0.0, %v3965
    %v3967 = vpop.f32.mrb[0].mxu0
    %3968 = vmatprep.mubr.f32.mxu0 0.0
    %3969 = vmatmul.mubr.f32.gmra.mrb[0].mxu0 %v3839
    %v3970 = vpop.f32.mrb[0].mxu0
    %v3971 = vadd.f32 0.0, %v3970
    %v3972 = vpop.f32.mrb[0].mxu0
    %3973 = vmatprep.mubr.f32.mxu0 0.0
    %3974 = vmatmul.mubr.f32.gmra.mrb[0].mxu0 %v3841
    %v3975 = vpop.f32.mrb[0].mxu0
    %v3976 = vadd.f32 0.0, %v3975
    %v3977 = vpop.f32.mrb[0].mxu0
    %3978 = vmatprep.mubr.f32.mxu0 0.0
    %3979 = vmatmul.mubr.f32.gmra.mrb[0].mxu0 %v3843
    %v3980 = vpop.f32.mrb[0].mxu0
    %v3981 = vadd.f32 0.0, %v3980
    %v3982 = vpop.f32.mrb[0].mxu0
    %3983 = vmatprep.mubr.f32.mxu0 0.0
    %3984 = vmatmul.mubr.f32.gmra.mrb[0].mxu0 %v3845
    %v3985 = vpop.f32.mrb[0].mxu0
    %v3986 = vadd.f32 0.0, %v3985
    %v3987 = vpop.f32.mrb[0].mxu0
    %3988 = vmatprep.mubr.f32.mxu0 0.0
    %3989 = vmatmul.mubr.f32.gmra.mrb[0].mxu0 %v3847
    %v3990 = vpop.f32.mrb[0].mxu0
    %v3991 = vadd.f32 0.0, %v3990
    %v3992 = vpop.f32.mrb[0].mxu0
    %3993 = vdwg.mxu0
    %v3994 = vadd.f32 %v3699, %v3916
    %v3995 = vadd.f32 %v3704, %v3921
    %v3996 = vadd.f32 %v3709, %v3926
    %v3997 = vadd.f32 %v3714, %v3931
    %v3998 = vadd.f32 %v3719, %v3936
    %v3999 = vadd.f32 %v3724, %v3941
    %v4000 = vadd.f32 %v3729, %v3946
    %v4001 = vadd.f32 %v3734, %v3951
    %v4002 = vadd.f32 %v3739, %v3956
    %v4003 = vadd.f32 %v3744, %v3961
    %v4004 = vadd.f32 %v3749, %v3966
    %v4005 = vadd.f32 %v3754, %v3971
    %v4006 = vadd.f32 %v3759, %v3976
    %v4007 = vadd.f32 %v3764, %v3981
    %v4008 = vadd.f32 %v3769, %v3986
    %v4009 = vadd.f32 %v3774, %v3991
    %v4010 = vld [vmem:[%s11] sm:$0x1]
    %v4012 = vlaneseq
    %v4013 = vshrl.u32 %v4012, 7
    %v4014 = vsub.s32 0, %v4013
    %v4015 = vrot.slane %v4010, %v4014
    %v4017 = vmul.f32 %v3994, %v4015
    %v4018 = vmul.f32 %v3995, %v4015
    %v4019 = vmul.f32 %v3996, %v4015
    %v4020 = vmul.f32 %v3997, %v4015
    %v4021 = vmul.f32 %v3998, %v4015
    %v4022 = vmul.f32 %v3999, %v4015
    %v4023 = vmul.f32 %v4000, %v4015
    %v4024 = vmul.f32 %v4001, %v4015
    %v4025 = vmul.f32 %v4002, %v4015
    %v4026 = vmul.f32 %v4003, %v4015
    %v4027 = vmul.f32 %v4004, %v4015
    %v4028 = vmul.f32 %v4005, %v4015
    %v4029 = vmul.f32 %v4006, %v4015
    %v4030 = vmul.f32 %v4007, %v4015
    %v4031 = vmul.f32 %v4008, %v4015
    %v4032 = vmul.f32 %v4009, %v4015
    %v4033 = vld [vmem:[%s12] sm:$0x1]
    %v4035 = vlaneseq
    %v4036 = vshrl.u32 %v4035, 7
    %v4037 = vsub.s32 0, %v4036
    %v4038 = vrot.slane %v4033, %v4037
    %v4040 = vadd.f32 %v4017, %v4038
    %v4041 = vadd.f32 %v4018, %v4038
    %v4042 = vadd.f32 %v4019, %v4038
    %v4043 = vadd.f32 %v4020, %v4038
    %v4044 = vadd.f32 %v4021, %v4038
    %v4045 = vadd.f32 %v4022, %v4038
    %v4046 = vadd.f32 %v4023, %v4038
    %v4047 = vadd.f32 %v4024, %v4038
    %v4048 = vadd.f32 %v4025, %v4038
    %v4049 = vadd.f32 %v4026, %v4038
    %v4050 = vadd.f32 %v4027, %v4038
    %v4051 = vadd.f32 %v4028, %v4038
    %v4052 = vadd.f32 %v4029, %v4038
    %v4053 = vadd.f32 %v4030, %v4038
    %v4054 = vadd.f32 %v4031, %v4038
    %v4055 = vadd.f32 %v4032, %v4038
    %v4056 = vmax.f32 %v4040, 0.0
    %v4057 = vmax.f32 %v4041, 0.0
    %v4058 = vmax.f32 %v4042, 0.0
    %v4059 = vmax.f32 %v4043, 0.0
    %v4060 = vmax.f32 %v4044, 0.0
    %v4061 = vmax.f32 %v4045, 0.0
    %v4062 = vmax.f32 %v4046, 0.0
    %v4063 = vmax.f32 %v4047, 0.0
    %v4064 = vmax.f32 %v4048, 0.0
    %v4065 = vmax.f32 %v4049, 0.0
    %v4066 = vmax.f32 %v4050, 0.0
    %v4067 = vmax.f32 %v4051, 0.0
    %v4068 = vmax.f32 %v4052, 0.0
    %v4069 = vmax.f32 %v4053, 0.0
    %v4070 = vmax.f32 %v4054, 0.0
    %v4071 = vmax.f32 %v4055, 0.0
    %v4072 = vadd.f32 %v4056, %v4057
    %v4073 = vrot.slane %v4072, 4
    %v4074 = vadd.f32 %v4072, %v4073
    %v4075 = vrot.slane %v4074, 2
    %v4076 = vadd.f32 %v4074, %v4075
    %v4077 = vrot.slane %v4076, 1
    %v4078 = vadd.f32 %v4076, %v4077
    %v4079 = vadd.f32 %v4058, %v4059
    %v4080 = vrot.slane %v4079, 4
    %v4081 = vadd.f32 %v4079, %v4080
    %v4082 = vrot.slane %v4081, 2
    %v4083 = vadd.f32 %v4081, %v4082
    %v4084 = vrot.slane %v4083, 1
    %v4085 = vadd.f32 %v4083, %v4084
    %v4086 = vadd.f32 %v4060, %v4061
    %v4087 = vrot.slane %v4086, 4
    %v4088 = vadd.f32 %v4086, %v4087
    %v4089 = vrot.slane %v4088, 2
    %v4090 = vadd.f32 %v4088, %v4089
    %v4091 = vrot.slane %v4090, 1
    %v4092 = vadd.f32 %v4090, %v4091
    %v4093 = vadd.f32 %v4062, %v4063
    %v4094 = vrot.slane %v4093, 4
    %v4095 = vadd.f32 %v4093, %v4094
    %v4096 = vrot.slane %v4095, 2
    %v4097 = vadd.f32 %v4095, %v4096
    %v4098 = vrot.slane %v4097, 1
    %v4099 = vadd.f32 %v4097, %v4098
    %v4100 = vadd.f32 %v4064, %v4065
    %v4101 = vrot.slane %v4100, 4
    %v4102 = vadd.f32 %v4100, %v4101
    %v4103 = vrot.slane %v4102, 2
    %v4104 = vadd.f32 %v4102, %v4103
    %v4105 = vrot.slane %v4104, 1
    %v4106 = vadd.f32 %v4104, %v4105
    %v4107 = vadd.f32 %v4066, %v4067
    %v4108 = vrot.slane %v4107, 4
    %v4109 = vadd.f32 %v4107, %v4108
    %v4110 = vrot.slane %v4109, 2
    %v4111 = vadd.f32 %v4109, %v4110
    %v4112 = vrot.slane %v4111, 1
    %v4113 = vadd.f32 %v4111, %v4112
    %v4114 = vadd.f32 %v4068, %v4069
    %v4115 = vrot.slane %v4114, 4
    %v4116 = vadd.f32 %v4114, %v4115
    %v4117 = vrot.slane %v4116, 2
    %v4118 = vadd.f32 %v4116, %v4117
    %v4119 = vrot.slane %v4118, 1
    %v4120 = vadd.f32 %v4118, %v4119
    %v4121 = vadd.f32 %v4070, %v4071
    %v4122 = vrot.slane %v4121, 4
    %v4123 = vadd.f32 %v4121, %v4122
    %v4124 = vrot.slane %v4123, 2
    %v4125 = vadd.f32 %v4123, %v4124
    %v4126 = vrot.slane %v4125, 1
    %v4127 = vadd.f32 %v4125, %v4126
    %v4128 = vrcp.pop 16.0
    %v4129 = vmul.f32 %v4078, %v4128
    %v4130 = vmul.f32 %v4085, %v4128
    %v4131 = vmul.f32 %v4092, %v4128
    %v4132 = vmul.f32 %v4099, %v4128
    %v4133 = vmul.f32 %v4106, %v4128
    %v4134 = vmul.f32 %v4113, %v4128
    %v4135 = vmul.f32 %v4120, %v4128
    %v4136 = vmul.f32 %v4127, %v4128
    %v4137 = vld [vmem:[%s13] sm:$0xff]
    %v4138 = vld [vmem:[%s13 + $0x8] sm:$0xff]
    %v4139 = vld [vmem:[%s13 + $0x10] sm:$0xff]
    %v4140 = vld [vmem:[%s13 + $0x18] sm:$0xff]
    %v4141 = vld [vmem:[%s14] sm:$0xff]
    %v4142 = vld [vmem:[%s14 + $0x8] sm:$0xff]
    %v4143 = vld [vmem:[%s14 + $0x10] sm:$0xff]
    %v4144 = vld [vmem:[%s14 + $0x18] sm:$0xff]
    %v4145 = vld [vmem:[%s14 + $0x20] sm:$0xff]
    %v4146 = vld [vmem:[%s14 + $0x28] sm:$0xff]
    %v4147 = vld [vmem:[%s14 + $0x30] sm:$0xff]
    %v4148 = vld [vmem:[%s14 + $0x38] sm:$0xff]
    %v4149 = vld [vmem:[%s14 + $0x40] sm:$0xff]
    %v4150 = vld [vmem:[%s14 + $0x48] sm:$0xff]
    %v4151 = vld [vmem:[%s14 + $0x50] sm:$0xff]
    %v4152 = vld [vmem:[%s14 + $0x58] sm:$0xff]
    %v4153 = vld [vmem:[%s14 + $0x60] sm:$0xff]
    %v4154 = vld [vmem:[%s14 + $0x68] sm:$0xff]
    %v4155 = vld [vmem:[%s14 + $0x70] sm:$0xff]
    %v4156 = vld [vmem:[%s14 + $0x78] sm:$0xff]
    %vm4165 = vcmask 1041409
    %v4166 = vsel %vm4165, %v4130, %v4129
    %vm4167 = vcmask 1042434
    %v4168 = vsel %vm4167, %v4131, %v4166
    %vm4169 = vcmask 1043459
    %v4170 = vsel %vm4169, %v4132, %v4168
    %vm4171 = vcmask 1044484
    %v4172 = vsel %vm4171, %v4133, %v4170
    %vm4173 = vcmask 1045509
    %v4174 = vsel %vm4173, %v4134, %v4172
    %vm4175 = vcmask 1046534
    %v4176 = vsel %vm4175, %v4135, %v4174
    %vm4177 = vcmask 1047559
    %v4178 = vsel %vm4177, %v4136, %v4176
    %4180 = vmatprep.subr.mxu0 0.0
    %4181 = vmatpush1.msra.mxu0 %v4141
    %4182 = vmatprep.subr.mxu0 0.0
    %4183 = vmatpush1.msra.mxu0 %v4142
    %4184 = vmatprep.subr.mxu0 0.0
    %4185 = vmatpush1.msra.mxu0 %v4143
    %4186 = vmatprep.subr.mxu0 0.0
    %4187 = vmatpush1.msra.mxu0 %v4144
    %4188 = vmatprep.subr.mxu0 0.0
    %4189 = vmatpush1.msra.mxu0 %v4145
    %4190 = vmatprep.subr.mxu0 0.0
    %4191 = vmatpush1.msra.mxu0 %v4146
    %4192 = vmatprep.subr.mxu0 0.0
    %4193 = vmatpush1.msra.mxu0 %v4147
    %4194 = vmatprep.subr.mxu0 0.0
    %4195 = vmatpush1.msra.mxu0 %v4148
    %4196 = vmatprep.subr.mxu0 0.0
    %4197 = vmatpush1.msra.mxu0 %v4149
    %4198 = vmatprep.subr.mxu0 0.0
    %4199 = vmatpush1.msra.mxu0 %v4150
    %4200 = vmatprep.subr.mxu0 0.0
    %4201 = vmatpush1.msra.mxu0 %v4151
    %4202 = vmatprep.subr.mxu0 0.0
    %4203 = vmatpush1.msra.mxu0 %v4152
    %4204 = vmatprep.subr.mxu0 0.0
    %4205 = vmatpush1.msra.mxu0 %v4153
    %4206 = vmatprep.subr.mxu0 0.0
    %4207 = vmatpush1.msra.mxu0 %v4154
    %4208 = vmatprep.subr.mxu0 0.0
    %4209 = vmatpush1.msra.mxu0 %v4155
    %4210 = vmatprep.subr.mxu0 0.0
    %4211 = vmatpush1.msra.mxu0 %v4156
    %4212 = vmatprep.subr.mxu0 0.0
    %4213 = vmatpush1.msra.mxu0 0.0
    %4214 = vmatprep.subr.mxu0 0.0
    %4215 = vmatpush1.msra.mxu0 0.0
    %4216 = vmatprep.subr.mxu0 0.0
    %4217 = vmatpush1.msra.mxu0 0.0
    %4218 = vmatprep.subr.mxu0 0.0
    %4219 = vmatpush1.msra.mxu0 0.0
    %4220 = vmatprep.subr.mxu0 0.0
    %4221 = vmatpush1.msra.mxu0 0.0
    %4222 = vmatprep.subr.mxu0 0.0
    %4223 = vmatpush1.msra.mxu0 0.0
    %4224 = vmatprep.subr.mxu0 0.0
    %4225 = vmatpush1.msra.mxu0 0.0
    %4226 = vmatprep.subr.mxu0 0.0
    %4227 = vmatpush1.msra.mxu0 0.0
    %4228 = vmatprep.subr.mxu0 0.0
    %4229 = vmatpush1.msra.mxu0 0.0
    %4230 = vmatprep.subr.mxu0 0.0
    %4231 = vmatpush1.msra.mxu0 0.0
    %4232 = vmatprep.subr.mxu0 0.0
    %4233 = vmatpush1.msra.mxu0 0.0
    %4234 = vmatprep.subr.mxu0 0.0
    %4235 = vmatpush1.msra.mxu0 0.0
    %4236 = vmatprep.subr.mxu0 0.0
    %4237 = vmatpush1.msra.mxu0 0.0
    %4238 = vmatprep.subr.mxu0 0.0
    %4239 = vmatpush1.msra.mxu0 0.0
    %4240 = vmatprep.subr.mxu0 0.0
    %4241 = vmatpush1.msra.mxu0 0.0
    %4242 = vmatprep.subr.mxu0 0.0
    %4243 = vmatpush1.msra.mxu0 0.0
    %4244 = vmatprep.mubr.f32.mxu0 0.0
    %4245 = vmatmul.mubr.f32.gmra.mrb[0].mxu0 %v4178
    %v4246 = vpop.f32.mrb[0].mxu0
    %v4247 = vadd.f32 0.0, %v4246
    %v4248 = vpop.f32.mrb[0].mxu0
    %4249 = vdwg.mxu0
    %4251 = vrot.lane.b32.xlu0 %v1884, 32
    %v4252 = vpop.permute.xlu0 %4251
    %v4253 = vsel %vm286, %v4252, 0
    %4255 = vmatprep.subr.mxu0 0.0
    %4256 = vmatpush1.msra.mxu0 %v4137
    %4257 = vmatprep.subr.mxu0 0.0
    %4258 = vmatpush1.msra.mxu0 %v4138
    %4259 = vmatprep.subr.mxu0 0.0
    %4260 = vmatpush1.msra.mxu0 %v4139
    %4261 = vmatprep.subr.mxu0 0.0
    %4262 = vmatpush1.msra.mxu0 %v4140
    %4263 = vmatprep.subr.mxu0 0.0
    %4264 = vmatpush1.msra.mxu0 0.0
    %4265 = vmatprep.subr.mxu0 0.0
    %4266 = vmatpush1.msra.mxu0 0.0
    %4267 = vmatprep.subr.mxu0 0.0
    %4268 = vmatpush1.msra.mxu0 0.0
    %4269 = vmatprep.subr.mxu0 0.0
    %4270 = vmatpush1.msra.mxu0 0.0
    %4271 = vmatprep.subr.mxu0 0.0
    %4272 = vmatpush1.msra.mxu0 0.0
    %4273 = vmatprep.subr.mxu0 0.0
    %4274 = vmatpush1.msra.mxu0 0.0
    %4275 = vmatprep.subr.mxu0 0.0
    %4276 = vmatpush1.msra.mxu0 0.0
    %4277 = vmatprep.subr.mxu0 0.0
    %4278 = vmatpush1.msra.mxu0 0.0
    %4279 = vmatprep.subr.mxu0 0.0
    %4280 = vmatpush1.msra.mxu0 0.0
    %4281 = vmatprep.subr.mxu0 0.0
    %4282 = vmatpush1.msra.mxu0 0.0
    %4283 = vmatprep.subr.mxu0 0.0
    %4284 = vmatpush1.msra.mxu0 0.0
    %4285 = vmatprep.subr.mxu0 0.0
    %4286 = vmatpush1.msra.mxu0 0.0
    %4287 = vmatprep.subr.mxu0 0.0
    %4288 = vmatpush1.msra.mxu0 0.0
    %4289 = vmatprep.subr.mxu0 0.0
    %4290 = vmatpush1.msra.mxu0 0.0
    %4291 = vmatprep.subr.mxu0 0.0
    %4292 = vmatpush1.msra.mxu0 0.0
    %4293 = vmatprep.subr.mxu0 0.0
    %4294 = vmatpush1.msra.mxu0 0.0
    %4295 = vmatprep.subr.mxu0 0.0
    %4296 = vmatpush1.msra.mxu0 0.0
    %4297 = vmatprep.subr.mxu0 0.0
    %4298 = vmatpush1.msra.mxu0 0.0
    %4299 = vmatprep.subr.mxu0 0.0
    %4300 = vmatpush1.msra.mxu0 0.0
    %4301 = vmatprep.subr.mxu0 0.0
    %4302 = vmatpush1.msra.mxu0 0.0
    %4303 = vmatprep.subr.mxu0 0.0
    %4304 = vmatpush1.msra.mxu0 0.0
    %4305 = vmatprep.subr.mxu0 0.0
    %4306 = vmatpush1.msra.mxu0 0.0
    %4307 = vmatprep.subr.mxu0 0.0
    %4308 = vmatpush1.msra.mxu0 0.0
    %4309 = vmatprep.subr.mxu0 0.0
    %4310 = vmatpush1.msra.mxu0 0.0
    %4311 = vmatprep.subr.mxu0 0.0
    %4312 = vmatpush1.msra.mxu0 0.0
    %4313 = vmatprep.subr.mxu0 0.0
    %4314 = vmatpush1.msra.mxu0 0.0
    %4315 = vmatprep.subr.mxu0 0.0
    %4316 = vmatpush1.msra.mxu0 0.0
    %4317 = vmatprep.subr.mxu0 0.0
    %4318 = vmatpush1.msra.mxu0 0.0
    %4319 = vmatprep.mubr.f32.mxu0 0.0
    %4320 = vmatmul.mubr.f32.gmra.mrb[0].mxu0 %v4253
    %v4321 = vpop.f32.mrb[0].mxu0
    %v4322 = vadd.f32 %v4247, %v4321
    %v4323 = vpop.f32.mrb[0].mxu0
    %4324 = vdwg.mxu0
    %v4325 = vld [vmem:[%s15] sm:$0x1]
    %v4327 = vlaneseq
    %v4328 = vshrl.u32 %v4327, 7
    %v4329 = vsub.s32 0, %v4328
    %v4330 = vrot.slane %v4325, %v4329
    %v4332 = vadd.f32 %v4322, %v4330
    %vm4333 = vcmask 48128
    %4334 = vst.msk [vmem:[#allocation8] sm:$0xff] %vm4333, %v4332
    // Predicated region
    $region78: #{tpu_custom_call.1} parent=1 // pred_check
      _
    $region79: #{tpu_custom_call.1} parent=1 // pred_check_branch
      %4336 = sbr.rel (0) target = $region81
    $region80: #{tpu_custom_call.1} parent=1 // pred_region
      %s4338 = ssub.s32 128, 128
      %4339 = vsyncadd [#allocation4], %s4338
      %s4341 = sshll.u32 [#allocation8], 4
      %s4342 = int_to_ptr.vmem [resolvable:$true] %s4341
      %4344 = dma.vmem_to_hbm [thread:$0]  %s4342, 128, %s16, [#allocation4]
    $region81: #{tpu_custom_call.1} parent=1 // pred_fallthru
      _
    // Predicated region
    $region82: #{tpu_custom_call.1} parent=1 // pred_check
      _
    $region83: #{tpu_custom_call.1} parent=1 // pred_check_branch
      %4346 = sbr.rel (0) target = $region85
    $region84: #{tpu_custom_call.1} parent=1 // pred_region
      %4347 = dma.done [#allocation4], 128
    $region85: #{tpu_custom_call.1} parent=1 // pred_fallthru
      _
    %4348 = vsyncpa [#allocation3], 1
    %4349 = vsyncpa [#allocation6], 1
    %4350 = vsyncpa [#allocation4], 1

</llo_original>
